<compile_context>
chip_gen: v7x
topology: tpu7x:2x2x1
jax: 0.10.0
libtpu: 0.0.40
codegen_flags: <defaults>
</compile_context>

<pallas_src>
import functools

import jax
import jax.numpy as jnp
from jax.experimental import pallas as pl
from jax.experimental.pallas import tpu as pltpu

KERNEL_SIZE = 7     # depthwise conv kernel size in each backbone block
LN_EPS = 1e-5       # PyTorch LayerNorm default


def _gelu_tanh(x):
    """tanh-form GELU: one EUP tanh + a handful of VALU ops (vs ~22 for the
    erf polynomial).  Differs from the exact erf form by <~1e-3 absolute."""
    c = 0.7978845608028654          # sqrt(2/pi)
    u = c * (x + 0.044715 * x * x * x)
    return 0.5 * x * (1.0 + jnp.tanh(u))


def _decoder_kernel(lens_ref, x_ref,
                    dw_w_ref, dw_b_ref, ln_g_ref, ln_b_ref,
                    w1_ref, b1_ref, w2_ref, b2_ref,
                    mel_wt_ref, mel_b_ref,
                    out_ref, *, layers, kernel_size):
    """One batch element per grid step: full (T_pad, D) tile resident in VMEM."""
    T, D = x_ref.shape
    pad = kernel_size // 2

    # Padding mask rebuilt from the scalar-prefetched length (SMEM) — no
    # lane-padded (T,1) HBM input / DMA per grid step.
    b = pl.program_id(0)
    length = lens_ref[b]
    t_idx = jax.lax.broadcasted_iota(jnp.int32, (T, 1), 0)
    mask = (t_idx < length).astype(jnp.float32)          # (T, 1)

    x0 = x_ref[...].astype(jnp.float32)                  # (T, D)

    def layer_body(l, x):
        residual = x

        # ---- depthwise conv1d, k=7, zero 'same' padding, via XLU rolls.
        # No per-tap edge masks: the wrapper guarantees >= pad trailing zero
        # rows, so backward-tap wraps read zeros and forward-tap wraps land on
        # rows >= length that the end-of-layer mask zeroes anyway.
        w_dw = dw_w_ref[l]                               # (K, D) f32
        acc = x * w_dw[pad]                              # center tap
        for k in range(kernel_size):
            o = k - pad
            if o == 0:
                continue
            acc = acc + pltpu.roll(x, shift=(-o) % T, axis=0) * w_dw[k]
        acc = acc + dw_b_ref[l]                          # (1, D) broadcast

        # ---- LayerNorm over channels (f32, eps = 1e-5)
        mu = jnp.mean(acc, axis=-1, keepdims=True)
        var = jnp.mean(jnp.square(acc - mu), axis=-1, keepdims=True)
        h = (acc - mu) * jax.lax.rsqrt(var + LN_EPS)
        h = h * ln_g_ref[l] + ln_b_ref[l]

        # ---- pointwise MLP: bf16 MXU operands, f32 accumulation, EUP GELU
        h1 = jnp.dot(h.astype(jnp.bfloat16), w1_ref[l],
                     preferred_element_type=jnp.float32) + b1_ref[l]
        h1 = _gelu_tanh(h1)
        h2 = jnp.dot(h1.astype(jnp.bfloat16), w2_ref[l],
                     preferred_element_type=jnp.float32) + b2_ref[l]

        # ---- residual (dropout/drop_path identity at eval) + padding mask
        return (residual + h2) * mask

    x = jax.lax.fori_loop(0, layers, layer_body, x0)

    # ---- mel projection computed transposed: (mel_pad, D) x (T, D)^T
    #      -> (mel_pad, T).  Fuses PyTorch's transpose(1,2) into the store and
    #      keeps the output store lane-dense (T is a multiple of 128).
    #      Worst case the contraction needs one per-batch (T,D) relayout in the
    #      epilogue (verify with pl.lower_as_mlir if it ever shows up hot).
    melT = jax.lax.dot_general(
        mel_wt_ref[...], x.astype(jnp.bfloat16),
        dimension_numbers=(((1,), (1,)), ((), ())),
        preferred_element_type=jnp.float32)
    out_ref[...] = (melT + mel_b_ref[...]).astype(out_ref.dtype)


def decoder_forward(x, lengths, mask, params, out_dtype=None):
    """x: (B, T, D) f32, lengths: (B,) int, mask: (B, T, 1) (unused — rebuilt
    in-kernel from lengths).  Returns (B, n_mel, T), matching PyTorch Decoder."""
    del mask  # padding mask is reconstructed in-kernel from `lengths`
    B, T, D = x.shape
    layers, _, hidden = params["w1"].shape
    n_mel = params["mel_w"].shape[1]
    out_dtype = x.dtype if out_dtype is None else out_dtype
    pad = KERNEL_SIZE // 2

    # T padded to a lane-dense multiple of 128 with at least `pad` trailing
    # zero rows (makes the wrapped conv taps exact with no edge masks).
    T_pad = ((T + pad + 127) // 128) * 128
    # mel is the sublane dim of the transposed output -> pad to 8, not 128.
    mel_pad = ((n_mel + 7) // 8) * 8

    x_pad = jnp.pad(x, ((0, 0), (0, T_pad - T), (0, 0)))
    lengths = lengths.astype(jnp.int32)

    # ---- weight preparation (cheap XLA ops; constant-folded under jit) ------
    w1_bf = params["w1"].astype(jnp.bfloat16)                 # (L, D, 4D)
    w2_bf = params["w2"].astype(jnp.bfloat16)                 # (L, 4D, D)
    mel_wt = jnp.transpose(params["mel_w"], (1, 0))           # (n_mel, D)
    mel_wt = jnp.pad(mel_wt, ((0, mel_pad - n_mel), (0, 0))).astype(jnp.bfloat16)
    mel_b = jnp.pad(params["mel_b"].reshape(-1), (0, mel_pad - n_mel))
    mel_b = mel_b.reshape(mel_pad, 1).astype(jnp.float32)
    dw_w = params["dw_w"].astype(jnp.float32)                 # (L, K, D)
    dw_b = params["dw_b"].reshape(layers, 1, D).astype(jnp.float32)
    ln_g = params["ln_g"].reshape(layers, 1, D).astype(jnp.float32)
    ln_b = params["ln_b"].reshape(layers, 1, D).astype(jnp.float32)
    b1 = params["b1"].reshape(layers, 1, hidden).astype(jnp.float32)
    b2 = params["b2"].reshape(layers, 1, D).astype(jnp.float32)

    weights = (dw_w, dw_b, ln_g, ln_b, w1_bf, b1, w2_bf, b2, mel_wt, mel_b)

    # ---- VMEM budget, capped per-generation --------------------------------
    weight_bytes = sum(int(a.size) * a.dtype.itemsize for a in weights)
    act_bytes = 4 * T_pad * (6 * D + 3 * hidden) + 2 * 4 * mel_pad * T_pad
    io_bytes = 2 * 4 * T_pad * D + 2 * 4 * mel_pad * T_pad
    vmem_limit = int(1.3 * (act_bytes + io_bytes + 2 * weight_bytes)) + (4 << 20)
    try:
        vmem_cap = int(pltpu.get_tpu_info().vmem_capacity_bytes)
    except Exception:  # pragma: no cover — conservative fallback (v7x size)
        vmem_cap = 64 << 20
    vmem_limit = max(16 << 20, min(vmem_limit, int(0.9 * vmem_cap)))

    kernel = functools.partial(_decoder_kernel, layers=layers,
                               kernel_size=KERNEL_SIZE)

    def build(weight_mode):
        def wspec(arr):
            nd = arr.ndim
            idx = lambda *a, nd=nd: (0,) * nd   # constant block index
            if weight_mode is None:
                return pl.BlockSpec(arr.shape, idx)
            return pl.BlockSpec(arr.shape, idx, pipeline_mode=weight_mode)

        grid_spec = pltpu.PrefetchScalarGridSpec(
            num_scalar_prefetch=1,
            grid=(B,),
            in_specs=[pl.BlockSpec((None, T_pad, D), lambda b, lens: (b, 0, 0)),
                      *[wspec(w) for w in weights]],
            out_specs=pl.BlockSpec((None, mel_pad, T_pad),
                                   lambda b, lens: (b, 0, 0)),
        )
        return pl.pallas_call(
            kernel,
            out_shape=jax.ShapeDtypeStruct((B, mel_pad, T_pad), out_dtype),
            grid_spec=grid_spec,
            compiler_params=pltpu.CompilerParams(
                dimension_semantics=("parallel",),
                vmem_limit_bytes=vmem_limit),
        )

    try:
        # Constant-index weights need only one pipeline buffer (halves their
        # resident VMEM — matters inside v7x's 64 MiB).
        out_pad = build(pl.Buffered(1))(lengths, x_pad, *weights)
    except Exception:  # pragma: no cover — fallback if Buffered(1) is rejected
        out_pad = build(None)(lengths, x_pad, *weights)

    # Slice off mel sublane padding and T lane padding; the (B, n_mel, T)
    # transpose already happened inside the kernel.
    return out_pad[:, :n_mel, :T]


# ----------------------------- references -----------------------------------

def _reference(x, mask, params, *, bf16_matmul, exact_gelu):
    """Pure-JAX reference.  bf16_matmul/exact_gelu select the 'matched'
    (kernel-numerics) or the 'exact' (f32, erf GELU) variant."""
    K = KERNEL_SIZE
    pad = K // 2
    L = params["w1"].shape[0]

    def mm(a, w):
        if bf16_matmul:
            return jnp.dot(a.astype(jnp.bfloat16), w.astype(jnp.bfloat16),
                           preferred_element_type=jnp.float32)
        return jnp.dot(a, w)

    h = x
    for l in range(L):
        res = h
        xp = jnp.pad(h, ((0, 0), (pad, pad), (0, 0)))
        a = sum(xp[:, k:k + h.shape[1], :] * params["dw_w"][l][k] for k in range(K))
        a = a + params["dw_b"][l]
        mu = a.mean(-1, keepdims=True)
        var = ((a - mu) ** 2).mean(-1, keepdims=True)
        a = (a - mu) * jax.lax.rsqrt(var + LN_EPS) * params["ln_g"][l] + params["ln_b"][l]
        a = mm(a, params["w1"][l]) + params["b1"][l]
        a = jax.nn.gelu(a, approximate=False) if exact_gelu else _gelu_tanh(a)
        a = mm(a, params["w2"][l]) + params["b2"][l]
        h = (res + a) * mask
    mel = mm(h, params["mel_w"]) + params["mel_b"][0]
    return jnp.transpose(mel, (0, 2, 1))


if __name__ == "__main__":
    # Small, forward-consistent shapes.
    B, T = 2, 16
    n_mel_channels, dim, layers = 8, 32, 2
    hidden = 4 * dim
    K = KERNEL_SIZE

    key = jax.random.PRNGKey(0)
    ks = jax.random.split(key, 12)
    f32 = jnp.float32
    params = {
        "dw_w": 0.1 * jax.random.normal(ks[0], (layers, K, dim), f32),
        "dw_b": 0.1 * jax.random.normal(ks[1], (layers, dim), f32),
        "ln_g": jnp.ones((layers, dim), f32),
        "ln_b": jnp.zeros((layers, dim), f32),
        "w1": 0.1 * jax.random.normal(ks[2], (layers, dim, hidden), f32),
        "b1": 0.1 * jax.random.normal(ks[3], (layers, hidden), f32),
        "w2": 0.1 * jax.random.normal(ks[4], (layers, hidden, dim), f32),
        "b2": 0.1 * jax.random.normal(ks[5], (layers, dim), f32),
        "mel_w": 0.1 * jax.random.normal(ks[6], (dim, n_mel_channels), f32),
        "mel_b": 0.1 * jax.random.normal(ks[7], (1, n_mel_channels), f32),
    }

    x = jax.random.normal(ks[8], (B, T, dim), f32)
    lengths = jnp.array([T, T - 4], dtype=jnp.int32)
    mask = (jnp.arange(T)[None, :] < lengths[:, None]).astype(f32)[..., None]  # (B,T,1)

    out = decoder_forward(x, lengths, mask, params)
    out = jax.block_until_ready(out)
    assert out.shape == (B, n_mel_channels, T), out.shape

    # Matched reference (bf16 matmuls + tanh GELU, like the kernel): tight check
    # of everything except dtype/approx choices.
    ref_m = _reference(x, mask, params, bf16_matmul=True, exact_gelu=False)
    err_m = float(jnp.max(jnp.abs(out - ref_m)))
    assert jnp.allclose(out, ref_m, atol=5e-3, rtol=5e-3), err_m

    # Exact f32 / erf-GELU reference: loose check of end-to-end semantics.
    ref_e = _reference(x, mask, params, bf16_matmul=False, exact_gelu=True)
    err_e = float(jnp.max(jnp.abs(out - ref_e)))
    assert jnp.allclose(out, ref_e, atol=5e-2, rtol=5e-2), err_e

    print("KERNEL_OK")
</pallas_src>

<mosaic_0001>
module attributes {stable_mosaic.version = 11 : i64} {
  func.func @_decoder_kernel(%arg0: i32, %arg1: memref<2xi32, #tpu.memory_space<smem>>, %arg2: memref<1x128x32xf32, #tpu.memory_space<vmem>>, %arg3: memref<2x7x32xf32, #tpu.memory_space<vmem>>, %arg4: memref<2x1x32xf32, #tpu.memory_space<vmem>>, %arg5: memref<2x1x32xf32, #tpu.memory_space<vmem>>, %arg6: memref<2x1x32xf32, #tpu.memory_space<vmem>>, %arg7: memref<2x32x128xbf16, #tpu.memory_space<vmem>>, %arg8: memref<2x1x128xf32, #tpu.memory_space<vmem>>, %arg9: memref<2x128x32xbf16, #tpu.memory_space<vmem>>, %arg10: memref<2x1x32xf32, #tpu.memory_space<vmem>>, %arg11: memref<8x32xbf16, #tpu.memory_space<vmem>>, %arg12: memref<8x1xf32, #tpu.memory_space<vmem>>, %arg13: memref<1x8x128xf32, #tpu.memory_space<vmem>>) attributes {dimension_semantics = [#tpu.dimension_semantics<parallel>], iteration_bounds = array<i64: 2>, scalar_prefetch = 1 : i64, scratch_operands = 0 : i64, tpu.core_type = #tpu.core_type<tc>, window_params = [{transform_indices = @transform_0, window_bounds = array<i64: 1, 128, 32>}, {pipeline_mode = #tpu.pipeline_mode<synchronous>, transform_indices = @transform_1, window_bounds = array<i64: 2, 7, 32>}, {pipeline_mode = #tpu.pipeline_mode<synchronous>, transform_indices = @transform_2, window_bounds = array<i64: 2, 1, 32>}, {pipeline_mode = #tpu.pipeline_mode<synchronous>, transform_indices = @transform_3, window_bounds = array<i64: 2, 1, 32>}, {pipeline_mode = #tpu.pipeline_mode<synchronous>, transform_indices = @transform_4, window_bounds = array<i64: 2, 1, 32>}, {pipeline_mode = #tpu.pipeline_mode<synchronous>, transform_indices = @transform_5, window_bounds = array<i64: 2, 32, 128>}, {pipeline_mode = #tpu.pipeline_mode<synchronous>, transform_indices = @transform_6, window_bounds = array<i64: 2, 1, 128>}, {pipeline_mode = #tpu.pipeline_mode<synchronous>, transform_indices = @transform_7, window_bounds = array<i64: 2, 128, 32>}, {pipeline_mode = #tpu.pipeline_mode<synchronous>, transform_indices = @transform_8, window_bounds = array<i64: 2, 1, 32>}, {pipeline_mode = #tpu.pipeline_mode<synchronous>, transform_indices = @transform_9, window_bounds = array<i64: 8, 32>}, {pipeline_mode = #tpu.pipeline_mode<synchronous>, transform_indices = @transform_10, window_bounds = array<i64: 8, 1>}, {transform_indices = @transform_11, window_bounds = array<i64: 1, 8, 128>}]} {
    %0 = arith.index_cast %arg0 : i32 to index
    %1 = memref.load %arg1[%0] : memref<2xi32, #tpu.memory_space<smem>>
    %2 = tpu.iota {dimensions = array<i32: 0>} : vector<128x1xi32>
    %3 = vector.broadcast %1 : i32 to vector<128x1xi32>
    %4 = arith.cmpi slt, %2, %3 : vector<128x1xi32>
    %5 = arith.extui %4 : vector<128x1xi1> to vector<128x1xi32>
    %6 = arith.sitofp %5 : vector<128x1xi32> to vector<128x1xf32>
    %c0 = arith.constant 0 : index
    %c0_0 = arith.constant 0 : index
    %c0_1 = arith.constant 0 : index
    %7 = vector.load %arg2[%c0, %c0_0, %c0_1] : memref<1x128x32xf32, #tpu.memory_space<vmem>>, vector<1x128x32xf32>
    %8 = vector.shape_cast %7 : vector<1x128x32xf32> to vector<128x32xf32>
    %c0_i32 = arith.constant 0 : i32
    %c2_i32 = arith.constant 2 : i32
    %9 = arith.addi %c0_i32, %c2_i32 : i32
    %c1_i32 = arith.constant 1 : i32
    %10 = scf.for %arg14 = %c0_i32 to %9 step %c1_i32 iter_args(%arg15 = %8) -> (vector<128x32xf32>)  : i32 {
      %20 = arith.index_cast %arg14 : i32 to index
      %c0_10 = arith.constant 0 : index
      %c0_11 = arith.constant 0 : index
      %21 = vector.load %arg3[%20, %c0_10, %c0_11] : memref<2x7x32xf32, #tpu.memory_space<vmem>>, vector<1x7x32xf32>
      %22 = vector.shape_cast %21 : vector<1x7x32xf32> to vector<7x32xf32>
      %23 = vector.extract_strided_slice %22 {offsets = [3, 0], sizes = [1, 32], strides = [1, 1]} : vector<7x32xf32> to vector<1x32xf32>
      %24 = vector.shape_cast %23 : vector<1x32xf32> to vector<32xf32>
      %25 = vector.shape_cast %24 : vector<32xf32> to vector<1x32xf32>
      %26 = vector.broadcast %25 : vector<1x32xf32> to vector<128x32xf32>
      %27 = arith.mulf %arg15, %26 : vector<128x32xf32>
      %c3_i32 = arith.constant 3 : i32
      %28 = tpu.dynamic_rotate %arg15 by %c3_i32 dim 0 : vector<128x32xf32>, i32 -> vector<128x32xf32>
      %29 = vector.extract_strided_slice %22 {offsets = [0, 0], sizes = [1, 32], strides = [1, 1]} : vector<7x32xf32> to vector<1x32xf32>
      %30 = vector.shape_cast %29 : vector<1x32xf32> to vector<32xf32>
      %31 = vector.shape_cast %30 : vector<32xf32> to vector<1x32xf32>
      %32 = vector.broadcast %31 : vector<1x32xf32> to vector<128x32xf32>
      %33 = arith.mulf %28, %32 : vector<128x32xf32>
      %34 = arith.addf %27, %33 : vector<128x32xf32>
      %c2_i32_12 = arith.constant 2 : i32
      %35 = tpu.dynamic_rotate %arg15 by %c2_i32_12 dim 0 : vector<128x32xf32>, i32 -> vector<128x32xf32>
      %36 = vector.extract_strided_slice %22 {offsets = [1, 0], sizes = [1, 32], strides = [1, 1]} : vector<7x32xf32> to vector<1x32xf32>
      %37 = vector.shape_cast %36 : vector<1x32xf32> to vector<32xf32>
      %38 = vector.shape_cast %37 : vector<32xf32> to vector<1x32xf32>
      %39 = vector.broadcast %38 : vector<1x32xf32> to vector<128x32xf32>
      %40 = arith.mulf %35, %39 : vector<128x32xf32>
      %41 = arith.addf %34, %40 : vector<128x32xf32>
      %c1_i32_13 = arith.constant 1 : i32
      %42 = tpu.dynamic_rotate %arg15 by %c1_i32_13 dim 0 : vector<128x32xf32>, i32 -> vector<128x32xf32>
      %43 = vector.extract_strided_slice %22 {offsets = [2, 0], sizes = [1, 32], strides = [1, 1]} : vector<7x32xf32> to vector<1x32xf32>
      %44 = vector.shape_cast %43 : vector<1x32xf32> to vector<32xf32>
      %45 = vector.shape_cast %44 : vector<32xf32> to vector<1x32xf32>
      %46 = vector.broadcast %45 : vector<1x32xf32> to vector<128x32xf32>
      %47 = arith.mulf %42, %46 : vector<128x32xf32>
      %48 = arith.addf %41, %47 : vector<128x32xf32>
      %c127_i32 = arith.constant 127 : i32
      %49 = tpu.dynamic_rotate %arg15 by %c127_i32 dim 0 : vector<128x32xf32>, i32 -> vector<128x32xf32>
      %50 = vector.extract_strided_slice %22 {offsets = [4, 0], sizes = [1, 32], strides = [1, 1]} : vector<7x32xf32> to vector<1x32xf32>
      %51 = vector.shape_cast %50 : vector<1x32xf32> to vector<32xf32>
      %52 = vector.shape_cast %51 : vector<32xf32> to vector<1x32xf32>
      %53 = vector.broadcast %52 : vector<1x32xf32> to vector<128x32xf32>
      %54 = arith.mulf %49, %53 : vector<128x32xf32>
      %55 = arith.addf %48, %54 : vector<128x32xf32>
      %c126_i32 = arith.constant 126 : i32
      %56 = tpu.dynamic_rotate %arg15 by %c126_i32 dim 0 : vector<128x32xf32>, i32 -> vector<128x32xf32>
      %57 = vector.extract_strided_slice %22 {offsets = [5, 0], sizes = [1, 32], strides = [1, 1]} : vector<7x32xf32> to vector<1x32xf32>
      %58 = vector.shape_cast %57 : vector<1x32xf32> to vector<32xf32>
      %59 = vector.shape_cast %58 : vector<32xf32> to vector<1x32xf32>
      %60 = vector.broadcast %59 : vector<1x32xf32> to vector<128x32xf32>
      %61 = arith.mulf %56, %60 : vector<128x32xf32>
      %62 = arith.addf %55, %61 : vector<128x32xf32>
      %c125_i32 = arith.constant 125 : i32
      %63 = tpu.dynamic_rotate %arg15 by %c125_i32 dim 0 : vector<128x32xf32>, i32 -> vector<128x32xf32>
      %64 = vector.extract_strided_slice %22 {offsets = [6, 0], sizes = [1, 32], strides = [1, 1]} : vector<7x32xf32> to vector<1x32xf32>
      %65 = vector.shape_cast %64 : vector<1x32xf32> to vector<32xf32>
      %66 = vector.shape_cast %65 : vector<32xf32> to vector<1x32xf32>
      %67 = vector.broadcast %66 : vector<1x32xf32> to vector<128x32xf32>
      %68 = arith.mulf %63, %67 : vector<128x32xf32>
      %69 = arith.addf %62, %68 : vector<128x32xf32>
      %70 = arith.index_cast %arg14 : i32 to index
      %c0_14 = arith.constant 0 : index
      %c0_15 = arith.constant 0 : index
      %71 = vector.load %arg4[%70, %c0_14, %c0_15] : memref<2x1x32xf32, #tpu.memory_space<vmem>>, vector<1x1x32xf32>
      %72 = vector.shape_cast %71 : vector<1x1x32xf32> to vector<1x32xf32>
      %73 = vector.broadcast %72 : vector<1x32xf32> to vector<128x32xf32>
      %74 = arith.addf %69, %73 : vector<128x32xf32>
      %cst_16 = arith.constant dense<0.000000e+00> : vector<128xf32>
      %75 = vector.multi_reduction <add>, %74, %cst_16 [1] : vector<128x32xf32> to vector<128xf32>
      %76 = vector.shape_cast %75 : vector<128xf32> to vector<128x1xf32>
      %cst_17 = arith.constant 3.200000e+01 : f32
      %77 = vector.broadcast %cst_17 : f32 to vector<128x1xf32>
      %78 = arith.divf %76, %77 : vector<128x1xf32>
      %79 = vector.broadcast %78 : vector<128x1xf32> to vector<128x32xf32>
      %80 = arith.subf %74, %79 : vector<128x32xf32>
      %81 = arith.mulf %80, %80 : vector<128x32xf32>
      %cst_18 = arith.constant dense<0.000000e+00> : vector<128xf32>
      %82 = vector.multi_reduction <add>, %81, %cst_18 [1] : vector<128x32xf32> to vector<128xf32>
      %83 = vector.shape_cast %82 : vector<128xf32> to vector<128x1xf32>
      %cst_19 = arith.constant 3.200000e+01 : f32
      %84 = vector.broadcast %cst_19 : f32 to vector<128x1xf32>
      %85 = arith.divf %83, %84 : vector<128x1xf32>
      %86 = vector.broadcast %78 : vector<128x1xf32> to vector<128x32xf32>
      %87 = arith.subf %74, %86 : vector<128x32xf32>
      %cst_20 = arith.constant 9.99999974E-6 : f32
      %88 = vector.broadcast %cst_20 : f32 to vector<128x1xf32>
      %89 = arith.addf %85, %88 : vector<128x1xf32>
      %90 = math.rsqrt %89 : vector<128x1xf32>
      %91 = vector.broadcast %90 : vector<128x1xf32> to vector<128x32xf32>
      %92 = arith.mulf %87, %91 : vector<128x32xf32>
      %93 = arith.index_cast %arg14 : i32 to index
      %c0_21 = arith.constant 0 : index
      %c0_22 = arith.constant 0 : index
      %94 = vector.load %arg5[%93, %c0_21, %c0_22] : memref<2x1x32xf32, #tpu.memory_space<vmem>>, vector<1x1x32xf32>
      %95 = vector.shape_cast %94 : vector<1x1x32xf32> to vector<1x32xf32>
      %96 = vector.broadcast %95 : vector<1x32xf32> to vector<128x32xf32>
      %97 = arith.mulf %92, %96 : vector<128x32xf32>
      %98 = arith.index_cast %arg14 : i32 to index
      %c0_23 = arith.constant 0 : index
      %c0_24 = arith.constant 0 : index
      %99 = vector.load %arg6[%98, %c0_23, %c0_24] : memref<2x1x32xf32, #tpu.memory_space<vmem>>, vector<1x1x32xf32>
      %100 = vector.shape_cast %99 : vector<1x1x32xf32> to vector<1x32xf32>
      %101 = vector.broadcast %100 : vector<1x32xf32> to vector<128x32xf32>
      %102 = arith.addf %97, %101 : vector<128x32xf32>
      %103 = arith.truncf %102 : vector<128x32xf32> to vector<128x32xbf16>
      %104 = arith.index_cast %arg14 : i32 to index
      %c0_25 = arith.constant 0 : index
      %c0_26 = arith.constant 0 : index
      %105 = vector.load %arg7[%104, %c0_25, %c0_26] : memref<2x32x128xbf16, #tpu.memory_space<vmem>>, vector<1x32x128xbf16>
      %106 = vector.shape_cast %105 : vector<1x32x128xbf16> to vector<32x128xbf16>
      %cst_27 = arith.constant dense<0.000000e+00> : vector<128x128xf32>
      %107 = tpu.matmul %103, %106, %cst_27 {dimension_numbers = #tpu.dot_dimension_numbers<[1], [0], [0], [1], [0, 0, 1, 1], [], []>} : vector<128x32xbf16>, vector<32x128xbf16>, vector<128x128xf32> -> vector<128x128xf32>
      %108 = arith.index_cast %arg14 : i32 to index
      %c0_28 = arith.constant 0 : index
      %c0_29 = arith.constant 0 : index
      %109 = vector.load %arg8[%108, %c0_28, %c0_29] : memref<2x1x128xf32, #tpu.memory_space<vmem>>, vector<1x1x128xf32>
      %110 = vector.shape_cast %109 : vector<1x1x128xf32> to vector<1x128xf32>
      %111 = vector.broadcast %110 : vector<1x128xf32> to vector<128x128xf32>
      %112 = arith.addf %107, %111 : vector<128x128xf32>
      %cst_30 = arith.constant 4.471500e-02 : f32
      %113 = vector.broadcast %cst_30 : f32 to vector<128x128xf32>
      %114 = arith.mulf %113, %112 : vector<128x128xf32>
      %115 = arith.mulf %114, %112 : vector<128x128xf32>
      %116 = arith.mulf %115, %112 : vector<128x128xf32>
      %117 = arith.addf %112, %116 : vector<128x128xf32>
      %cst_31 = arith.constant 0.797884583 : f32
      %118 = vector.broadcast %cst_31 : f32 to vector<128x128xf32>
      %119 = arith.mulf %118, %117 : vector<128x128xf32>
      %cst_32 = arith.constant 5.000000e-01 : f32
      %120 = vector.broadcast %cst_32 : f32 to vector<128x128xf32>
      %121 = arith.mulf %120, %112 : vector<128x128xf32>
      %122 = math.tanh %119 : vector<128x128xf32>
      %cst_33 = arith.constant 1.000000e+00 : f32
      %123 = vector.broadcast %cst_33 : f32 to vector<128x128xf32>
      %124 = arith.addf %123, %122 : vector<128x128xf32>
      %125 = arith.mulf %121, %124 : vector<128x128xf32>
      %126 = arith.truncf %125 : vector<128x128xf32> to vector<128x128xbf16>
      %127 = arith.index_cast %arg14 : i32 to index
      %c0_34 = arith.constant 0 : index
      %c0_35 = arith.constant 0 : index
      %128 = vector.load %arg9[%127, %c0_34, %c0_35] : memref<2x128x32xbf16, #tpu.memory_space<vmem>>, vector<1x128x32xbf16>
      %129 = vector.shape_cast %128 : vector<1x128x32xbf16> to vector<128x32xbf16>
      %cst_36 = arith.constant dense<0.000000e+00> : vector<128x32xf32>
      %130 = tpu.matmul %126, %129, %cst_36 {dimension_numbers = #tpu.dot_dimension_numbers<[1], [0], [0], [1], [0, 0, 1, 1], [], []>} : vector<128x128xbf16>, vector<128x32xbf16>, vector<128x32xf32> -> vector<128x32xf32>
      %131 = arith.index_cast %arg14 : i32 to index
      %c0_37 = arith.constant 0 : index
      %c0_38 = arith.constant 0 : index
      %132 = vector.load %arg10[%131, %c0_37, %c0_38] : memref<2x1x32xf32, #tpu.memory_space<vmem>>, vector<1x1x32xf32>
      %133 = vector.shape_cast %132 : vector<1x1x32xf32> to vector<1x32xf32>
      %134 = vector.broadcast %133 : vector<1x32xf32> to vector<128x32xf32>
      %135 = arith.addf %130, %134 : vector<128x32xf32>
      %136 = arith.addf %arg15, %135 : vector<128x32xf32>
      %137 = vector.broadcast %6 : vector<128x1xf32> to vector<128x32xf32>
      %138 = arith.mulf %136, %137 : vector<128x32xf32>
      scf.yield %138 : vector<128x32xf32>
    }
    %c2_i32_2 = arith.constant 2 : i32
    %c0_3 = arith.constant 0 : index
    %c0_4 = arith.constant 0 : index
    %11 = vector.load %arg11[%c0_3, %c0_4] : memref<8x32xbf16, #tpu.memory_space<vmem>>, vector<8x32xbf16>
    %12 = arith.truncf %10 : vector<128x32xf32> to vector<128x32xbf16>
    %cst = arith.constant dense<0.000000e+00> : vector<8x128xf32>
    %13 = tpu.matmul %11, %12, %cst {dimension_numbers = #tpu.dot_dimension_numbers<[1], [1], [0], [0], [0, 0, 1, 0], [], []>} : vector<8x32xbf16>, vector<128x32xbf16>, vector<8x128xf32> -> vector<8x128xf32>
    %c0_5 = arith.constant 0 : index
    %c0_6 = arith.constant 0 : index
    %14 = vector.load %arg12[%c0_5, %c0_6] : memref<8x1xf32, #tpu.memory_space<vmem>>, vector<8x1xf32>
    %15 = vector.broadcast %14 : vector<8x1xf32> to vector<8x128xf32>
    %16 = arith.addf %13, %15 : vector<8x128xf32>
    %c0_7 = arith.constant 0 : index
    %c0_8 = arith.constant 0 : index
    %c0_9 = arith.constant 0 : index
    %17 = vector.load %arg13[%c0_7, %c0_8, %c0_9] : memref<1x8x128xf32, #tpu.memory_space<vmem>>, vector<1x8x128xf32>
    %18 = vector.shape_cast %17 : vector<1x8x128xf32> to vector<8x128xf32>
    %19 = vector.shape_cast %16 : vector<8x128xf32> to vector<1x8x128xf32>
    tpu.vector_store %arg13[%c0_7, %c0_8, %c0_9], %19 {strides = array<i32>} : memref<1x8x128xf32, #tpu.memory_space<vmem>>, vector<1x8x128xf32>,
    return
  }
  func.func @transform_0(%arg0: i32, %arg1: memref<2xi32, #tpu.memory_space<smem>>) -> (i32, i32, i32) {
    %c0_i32 = arith.constant 0 : i32
    %c0_i32_0 = arith.constant 0 : i32
    %c0_i32_1 = arith.constant 0 : i32
    return %arg0, %c0_i32, %c0_i32_0 : i32, i32, i32
  }
  func.func @transform_1(%arg0: i32, %arg1: memref<2xi32, #tpu.memory_space<smem>>) -> (i32, i32, i32) {
    %c0_i32 = arith.constant 0 : i32
    %c0_i32_0 = arith.constant 0 : i32
    %c0_i32_1 = arith.constant 0 : i32
    %c0_i32_2 = arith.constant 0 : i32
    return %c0_i32, %c0_i32_0, %c0_i32_1 : i32, i32, i32
  }
  func.func @transform_2(%arg0: i32, %arg1: memref<2xi32, #tpu.memory_space<smem>>) -> (i32, i32, i32) {
    %c0_i32 = arith.constant 0 : i32
    %c0_i32_0 = arith.constant 0 : i32
    %c0_i32_1 = arith.constant 0 : i32
    %c0_i32_2 = arith.constant 0 : i32
    return %c0_i32, %c0_i32_0, %c0_i32_1 : i32, i32, i32
  }
  func.func @transform_3(%arg0: i32, %arg1: memref<2xi32, #tpu.memory_space<smem>>) -> (i32, i32, i32) {
    %c0_i32 = arith.constant 0 : i32
    %c0_i32_0 = arith.constant 0 : i32
    %c0_i32_1 = arith.constant 0 : i32
    %c0_i32_2 = arith.constant 0 : i32
    return %c0_i32, %c0_i32_0, %c0_i32_1 : i32, i32, i32
  }
  func.func @transform_4(%arg0: i32, %arg1: memref<2xi32, #tpu.memory_space<smem>>) -> (i32, i32, i32) {
    %c0_i32 = arith.constant 0 : i32
    %c0_i32_0 = arith.constant 0 : i32
    %c0_i32_1 = arith.constant 0 : i32
    %c0_i32_2 = arith.constant 0 : i32
    return %c0_i32, %c0_i32_0, %c0_i32_1 : i32, i32, i32
  }
  func.func @transform_5(%arg0: i32, %arg1: memref<2xi32, #tpu.memory_space<smem>>) -> (i32, i32, i32) {
    %c0_i32 = arith.constant 0 : i32
    %c0_i32_0 = arith.constant 0 : i32
    %c0_i32_1 = arith.constant 0 : i32
    %c0_i32_2 = arith.constant 0 : i32
    return %c0_i32, %c0_i32_0, %c0_i32_1 : i32, i32, i32
  }
  func.func @transform_6(%arg0: i32, %arg1: memref<2xi32, #tpu.memory_space<smem>>) -> (i32, i32, i32) {
    %c0_i32 = arith.constant 0 : i32
    %c0_i32_0 = arith.constant 0 : i32
    %c0_i32_1 = arith.constant 0 : i32
    %c0_i32_2 = arith.constant 0 : i32
    return %c0_i32, %c0_i32_0, %c0_i32_1 : i32, i32, i32
  }
  func.func @transform_7(%arg0: i32, %arg1: memref<2xi32, #tpu.memory_space<smem>>) -> (i32, i32, i32) {
    %c0_i32 = arith.constant 0 : i32
    %c0_i32_0 = arith.constant 0 : i32
    %c0_i32_1 = arith.constant 0 : i32
    %c0_i32_2 = arith.constant 0 : i32
    return %c0_i32, %c0_i32_0, %c0_i32_1 : i32, i32, i32
  }
  func.func @transform_8(%arg0: i32, %arg1: memref<2xi32, #tpu.memory_space<smem>>) -> (i32, i32, i32) {
    %c0_i32 = arith.constant 0 : i32
    %c0_i32_0 = arith.constant 0 : i32
    %c0_i32_1 = arith.constant 0 : i32
    %c0_i32_2 = arith.constant 0 : i32
    return %c0_i32, %c0_i32_0, %c0_i32_1 : i32, i32, i32
  }
  func.func @transform_9(%arg0: i32, %arg1: memref<2xi32, #tpu.memory_space<smem>>) -> (i32, i32) {
    %c0_i32 = arith.constant 0 : i32
    %c0_i32_0 = arith.constant 0 : i32
    %c0_i32_1 = arith.constant 0 : i32
    return %c0_i32, %c0_i32_0 : i32, i32
  }
  func.func @transform_10(%arg0: i32, %arg1: memref<2xi32, #tpu.memory_space<smem>>) -> (i32, i32) {
    %c0_i32 = arith.constant 0 : i32
    %c0_i32_0 = arith.constant 0 : i32
    %c0_i32_1 = arith.constant 0 : i32
    return %c0_i32, %c0_i32_0 : i32, i32
  }
  func.func @transform_11(%arg0: i32, %arg1: memref<2xi32, #tpu.memory_space<smem>>) -> (i32, i32, i32) {
    %c0_i32 = arith.constant 0 : i32
    %c0_i32_0 = arith.constant 0 : i32
    %c0_i32_1 = arith.constant 0 : i32
    return %arg0, %c0_i32, %c0_i32_0 : i32, i32, i32
  }
}

module attributes {stable_mosaic.version = 11 : i64} {
  func.func @_decoder_kernel(%arg0: i32, %arg1: memref<2xi32, #tpu.memory_space<smem>>, %arg2: memref<1x128x32xf32, #tpu.memory_space<vmem>>, %arg3: memref<2x7x32xf32, #tpu.memory_space<vmem>>, %arg4: memref<2x1x32xf32, #tpu.memory_space<vmem>>, %arg5: memref<2x1x32xf32, #tpu.memory_space<vmem>>, %arg6: memref<2x1x32xf32, #tpu.memory_space<vmem>>, %arg7: memref<2x32x128xbf16, #tpu.memory_space<vmem>>, %arg8: memref<2x1x128xf32, #tpu.memory_space<vmem>>, %arg9: memref<2x128x32xbf16, #tpu.memory_space<vmem>>, %arg10: memref<2x1x32xf32, #tpu.memory_space<vmem>>, %arg11: memref<8x32xbf16, #tpu.memory_space<vmem>>, %arg12: memref<8x1xf32, #tpu.memory_space<vmem>>, %arg13: memref<1x8x128xf32, #tpu.memory_space<vmem>>) attributes {dimension_semantics = [#tpu.dimension_semantics<parallel>], iteration_bounds = array<i64: 2>, scalar_prefetch = 1 : i64, scratch_operands = 0 : i64, tpu.core_type = #tpu.core_type<tc>, window_params = [{transform_indices = @transform_0, window_bounds = array<i64: 1, 128, 32>}, {pipeline_mode = #tpu.pipeline_mode<synchronous>, transform_indices = @transform_1, window_bounds = array<i64: 2, 7, 32>}, {pipeline_mode = #tpu.pipeline_mode<synchronous>, transform_indices = @transform_2, window_bounds = array<i64: 2, 1, 32>}, {pipeline_mode = #tpu.pipeline_mode<synchronous>, transform_indices = @transform_3, window_bounds = array<i64: 2, 1, 32>}, {pipeline_mode = #tpu.pipeline_mode<synchronous>, transform_indices = @transform_4, window_bounds = array<i64: 2, 1, 32>}, {pipeline_mode = #tpu.pipeline_mode<synchronous>, transform_indices = @transform_5, window_bounds = array<i64: 2, 32, 128>}, {pipeline_mode = #tpu.pipeline_mode<synchronous>, transform_indices = @transform_6, window_bounds = array<i64: 2, 1, 128>}, {pipeline_mode = #tpu.pipeline_mode<synchronous>, transform_indices = @transform_7, window_bounds = array<i64: 2, 128, 32>}, {pipeline_mode = #tpu.pipeline_mode<synchronous>, transform_indices = @transform_8, window_bounds = array<i64: 2, 1, 32>}, {pipeline_mode = #tpu.pipeline_mode<synchronous>, transform_indices = @transform_9, window_bounds = array<i64: 8, 32>}, {pipeline_mode = #tpu.pipeline_mode<synchronous>, transform_indices = @transform_10, window_bounds = array<i64: 8, 1>}, {transform_indices = @transform_11, window_bounds = array<i64: 1, 8, 128>}]} {
    %0 = arith.index_cast %arg0 : i32 to index
    %1 = memref.load %arg1[%0] : memref<2xi32, #tpu.memory_space<smem>>
    %2 = tpu.iota {dimensions = array<i32: 0>} : vector<128x1xi32>
    %3 = vector.broadcast %1 : i32 to vector<128x1xi32>
    %4 = arith.cmpi slt, %2, %3 : vector<128x1xi32>
    %5 = arith.extui %4 : vector<128x1xi1> to vector<128x1xi32>
    %6 = arith.sitofp %5 : vector<128x1xi32> to vector<128x1xf32>
    %c0 = arith.constant 0 : index
    %c0_0 = arith.constant 0 : index
    %c0_1 = arith.constant 0 : index
    %7 = vector.load %arg2[%c0, %c0_0, %c0_1] : memref<1x128x32xf32, #tpu.memory_space<vmem>>, vector<1x128x32xf32>
    %8 = vector.shape_cast %7 : vector<1x128x32xf32> to vector<128x32xf32>
    %c0_i32 = arith.constant 0 : i32
    %c2_i32 = arith.constant 2 : i32
    %9 = arith.addi %c0_i32, %c2_i32 : i32
    %c1_i32 = arith.constant 1 : i32
    %10 = scf.for %arg14 = %c0_i32 to %9 step %c1_i32 iter_args(%arg15 = %8) -> (vector<128x32xf32>)  : i32 {
      %20 = arith.index_cast %arg14 : i32 to index
      %c0_10 = arith.constant 0 : index
      %c0_11 = arith.constant 0 : index
      %21 = vector.load %arg3[%20, %c0_10, %c0_11] : memref<2x7x32xf32, #tpu.memory_space<vmem>>, vector<1x7x32xf32>
      %22 = vector.shape_cast %21 : vector<1x7x32xf32> to vector<7x32xf32>
      %23 = vector.extract_strided_slice %22 {offsets = [3, 0], sizes = [1, 32], strides = [1, 1]} : vector<7x32xf32> to vector<1x32xf32>
      %24 = vector.shape_cast %23 : vector<1x32xf32> to vector<32xf32>
      %25 = vector.shape_cast %24 : vector<32xf32> to vector<1x32xf32>
      %26 = vector.broadcast %25 : vector<1x32xf32> to vector<128x32xf32>
      %27 = arith.mulf %arg15, %26 : vector<128x32xf32>
      %c3_i32 = arith.constant 3 : i32
      %28 = tpu.dynamic_rotate %arg15 by %c3_i32 dim 0 : vector<128x32xf32>, i32 -> vector<128x32xf32>
      %29 = vector.extract_strided_slice %22 {offsets = [0, 0], sizes = [1, 32], strides = [1, 1]} : vector<7x32xf32> to vector<1x32xf32>
      %30 = vector.shape_cast %29 : vector<1x32xf32> to vector<32xf32>
      %31 = vector.shape_cast %30 : vector<32xf32> to vector<1x32xf32>
      %32 = vector.broadcast %31 : vector<1x32xf32> to vector<128x32xf32>
      %33 = arith.mulf %28, %32 : vector<128x32xf32>
      %34 = arith.addf %27, %33 : vector<128x32xf32>
      %c2_i32_12 = arith.constant 2 : i32
      %35 = tpu.dynamic_rotate %arg15 by %c2_i32_12 dim 0 : vector<128x32xf32>, i32 -> vector<128x32xf32>
      %36 = vector.extract_strided_slice %22 {offsets = [1, 0], sizes = [1, 32], strides = [1, 1]} : vector<7x32xf32> to vector<1x32xf32>
      %37 = vector.shape_cast %36 : vector<1x32xf32> to vector<32xf32>
      %38 = vector.shape_cast %37 : vector<32xf32> to vector<1x32xf32>
      %39 = vector.broadcast %38 : vector<1x32xf32> to vector<128x32xf32>
      %40 = arith.mulf %35, %39 : vector<128x32xf32>
      %41 = arith.addf %34, %40 : vector<128x32xf32>
      %c1_i32_13 = arith.constant 1 : i32
      %42 = tpu.dynamic_rotate %arg15 by %c1_i32_13 dim 0 : vector<128x32xf32>, i32 -> vector<128x32xf32>
      %43 = vector.extract_strided_slice %22 {offsets = [2, 0], sizes = [1, 32], strides = [1, 1]} : vector<7x32xf32> to vector<1x32xf32>
      %44 = vector.shape_cast %43 : vector<1x32xf32> to vector<32xf32>
      %45 = vector.shape_cast %44 : vector<32xf32> to vector<1x32xf32>
      %46 = vector.broadcast %45 : vector<1x32xf32> to vector<128x32xf32>
      %47 = arith.mulf %42, %46 : vector<128x32xf32>
      %48 = arith.addf %41, %47 : vector<128x32xf32>
      %c127_i32 = arith.constant 127 : i32
      %49 = tpu.dynamic_rotate %arg15 by %c127_i32 dim 0 : vector<128x32xf32>, i32 -> vector<128x32xf32>
      %50 = vector.extract_strided_slice %22 {offsets = [4, 0], sizes = [1, 32], strides = [1, 1]} : vector<7x32xf32> to vector<1x32xf32>
      %51 = vector.shape_cast %50 : vector<1x32xf32> to vector<32xf32>
      %52 = vector.shape_cast %51 : vector<32xf32> to vector<1x32xf32>
      %53 = vector.broadcast %52 : vector<1x32xf32> to vector<128x32xf32>
      %54 = arith.mulf %49, %53 : vector<128x32xf32>
      %55 = arith.addf %48, %54 : vector<128x32xf32>
      %c126_i32 = arith.constant 126 : i32
      %56 = tpu.dynamic_rotate %arg15 by %c126_i32 dim 0 : vector<128x32xf32>, i32 -> vector<128x32xf32>
      %57 = vector.extract_strided_slice %22 {offsets = [5, 0], sizes = [1, 32], strides = [1, 1]} : vector<7x32xf32> to vector<1x32xf32>
      %58 = vector.shape_cast %57 : vector<1x32xf32> to vector<32xf32>
      %59 = vector.shape_cast %58 : vector<32xf32> to vector<1x32xf32>
      %60 = vector.broadcast %59 : vector<1x32xf32> to vector<128x32xf32>
      %61 = arith.mulf %56, %60 : vector<128x32xf32>
      %62 = arith.addf %55, %61 : vector<128x32xf32>
      %c125_i32 = arith.constant 125 : i32
      %63 = tpu.dynamic_rotate %arg15 by %c125_i32 dim 0 : vector<128x32xf32>, i32 -> vector<128x32xf32>
      %64 = vector.extract_strided_slice %22 {offsets = [6, 0], sizes = [1, 32], strides = [1, 1]} : vector<7x32xf32> to vector<1x32xf32>
      %65 = vector.shape_cast %64 : vector<1x32xf32> to vector<32xf32>
      %66 = vector.shape_cast %65 : vector<32xf32> to vector<1x32xf32>
      %67 = vector.broadcast %66 : vector<1x32xf32> to vector<128x32xf32>
      %68 = arith.mulf %63, %67 : vector<128x32xf32>
      %69 = arith.addf %62, %68 : vector<128x32xf32>
      %70 = arith.index_cast %arg14 : i32 to index
      %c0_14 = arith.constant 0 : index
      %c0_15 = arith.constant 0 : index
      %71 = vector.load %arg4[%70, %c0_14, %c0_15] : memref<2x1x32xf32, #tpu.memory_space<vmem>>, vector<1x1x32xf32>
      %72 = vector.shape_cast %71 : vector<1x1x32xf32> to vector<1x32xf32>
      %73 = vector.broadcast %72 : vector<1x32xf32> to vector<128x32xf32>
      %74 = arith.addf %69, %73 : vector<128x32xf32>
      %cst_16 = arith.constant dense<0.000000e+00> : vector<128xf32>
      %75 = vector.multi_reduction <add>, %74, %cst_16 [1] : vector<128x32xf32> to vector<128xf32>
      %76 = vector.shape_cast %75 : vector<128xf32> to vector<128x1xf32>
      %cst_17 = arith.constant 3.200000e+01 : f32
      %77 = vector.broadcast %cst_17 : f32 to vector<128x1xf32>
      %78 = arith.divf %76, %77 : vector<128x1xf32>
      %79 = vector.broadcast %78 : vector<128x1xf32> to vector<128x32xf32>
      %80 = arith.subf %74, %79 : vector<128x32xf32>
      %81 = arith.mulf %80, %80 : vector<128x32xf32>
      %cst_18 = arith.constant dense<0.000000e+00> : vector<128xf32>
      %82 = vector.multi_reduction <add>, %81, %cst_18 [1] : vector<128x32xf32> to vector<128xf32>
      %83 = vector.shape_cast %82 : vector<128xf32> to vector<128x1xf32>
      %cst_19 = arith.constant 3.200000e+01 : f32
      %84 = vector.broadcast %cst_19 : f32 to vector<128x1xf32>
      %85 = arith.divf %83, %84 : vector<128x1xf32>
      %86 = vector.broadcast %78 : vector<128x1xf32> to vector<128x32xf32>
      %87 = arith.subf %74, %86 : vector<128x32xf32>
      %cst_20 = arith.constant 9.99999974E-6 : f32
      %88 = vector.broadcast %cst_20 : f32 to vector<128x1xf32>
      %89 = arith.addf %85, %88 : vector<128x1xf32>
      %90 = math.rsqrt %89 : vector<128x1xf32>
      %91 = vector.broadcast %90 : vector<128x1xf32> to vector<128x32xf32>
      %92 = arith.mulf %87, %91 : vector<128x32xf32>
      %93 = arith.index_cast %arg14 : i32 to index
      %c0_21 = arith.constant 0 : index
      %c0_22 = arith.constant 0 : index
      %94 = vector.load %arg5[%93, %c0_21, %c0_22] : memref<2x1x32xf32, #tpu.memory_space<vmem>>, vector<1x1x32xf32>
      %95 = vector.shape_cast %94 : vector<1x1x32xf32> to vector<1x32xf32>
      %96 = vector.broadcast %95 : vector<1x32xf32> to vector<128x32xf32>
      %97 = arith.mulf %92, %96 : vector<128x32xf32>
      %98 = arith.index_cast %arg14 : i32 to index
      %c0_23 = arith.constant 0 : index
      %c0_24 = arith.constant 0 : index
      %99 = vector.load %arg6[%98, %c0_23, %c0_24] : memref<2x1x32xf32, #tpu.memory_space<vmem>>, vector<1x1x32xf32>
      %100 = vector.shape_cast %99 : vector<1x1x32xf32> to vector<1x32xf32>
      %101 = vector.broadcast %100 : vector<1x32xf32> to vector<128x32xf32>
      %102 = arith.addf %97, %101 : vector<128x32xf32>
      %103 = arith.truncf %102 : vector<128x32xf32> to vector<128x32xbf16>
      %104 = arith.index_cast %arg14 : i32 to index
      %c0_25 = arith.constant 0 : index
      %c0_26 = arith.constant 0 : index
      %105 = vector.load %arg7[%104, %c0_25, %c0_26] : memref<2x32x128xbf16, #tpu.memory_space<vmem>>, vector<1x32x128xbf16>
      %106 = vector.shape_cast %105 : vector<1x32x128xbf16> to vector<32x128xbf16>
      %cst_27 = arith.constant dense<0.000000e+00> : vector<128x128xf32>
      %107 = tpu.matmul %103, %106, %cst_27 {dimension_numbers = #tpu.dot_dimension_numbers<[1], [0], [0], [1], [0, 0, 1, 1], [], []>} : vector<128x32xbf16>, vector<32x128xbf16>, vector<128x128xf32> -> vector<128x128xf32>
      %108 = arith.index_cast %arg14 : i32 to index
      %c0_28 = arith.constant 0 : index
      %c0_29 = arith.constant 0 : index
      %109 = vector.load %arg8[%108, %c0_28, %c0_29] : memref<2x1x128xf32, #tpu.memory_space<vmem>>, vector<1x1x128xf32>
      %110 = vector.shape_cast %109 : vector<1x1x128xf32> to vector<1x128xf32>
      %111 = vector.broadcast %110 : vector<1x128xf32> to vector<128x128xf32>
      %112 = arith.addf %107, %111 : vector<128x128xf32>
      %cst_30 = arith.constant 4.471500e-02 : f32
      %113 = vector.broadcast %cst_30 : f32 to vector<128x128xf32>
      %114 = arith.mulf %113, %112 : vector<128x128xf32>
      %115 = arith.mulf %114, %112 : vector<128x128xf32>
      %116 = arith.mulf %115, %112 : vector<128x128xf32>
      %117 = arith.addf %112, %116 : vector<128x128xf32>
      %cst_31 = arith.constant 0.797884583 : f32
      %118 = vector.broadcast %cst_31 : f32 to vector<128x128xf32>
      %119 = arith.mulf %118, %117 : vector<128x128xf32>
      %cst_32 = arith.constant 5.000000e-01 : f32
      %120 = vector.broadcast %cst_32 : f32 to vector<128x128xf32>
      %121 = arith.mulf %120, %112 : vector<128x128xf32>
      %122 = math.tanh %119 : vector<128x128xf32>
      %cst_33 = arith.constant 1.000000e+00 : f32
      %123 = vector.broadcast %cst_33 : f32 to vector<128x128xf32>
      %124 = arith.addf %123, %122 : vector<128x128xf32>
      %125 = arith.mulf %121, %124 : vector<128x128xf32>
      %126 = arith.truncf %125 : vector<128x128xf32> to vector<128x128xbf16>
      %127 = arith.index_cast %arg14 : i32 to index
      %c0_34 = arith.constant 0 : index
      %c0_35 = arith.constant 0 : index
      %128 = vector.load %arg9[%127, %c0_34, %c0_35] : memref<2x128x32xbf16, #tpu.memory_space<vmem>>, vector<1x128x32xbf16>
      %129 = vector.shape_cast %128 : vector<1x128x32xbf16> to vector<128x32xbf16>
      %cst_36 = arith.constant dense<0.000000e+00> : vector<128x32xf32>
      %130 = tpu.matmul %126, %129, %cst_36 {dimension_numbers = #tpu.dot_dimension_numbers<[1], [0], [0], [1], [0, 0, 1, 1], [], []>} : vector<128x128xbf16>, vector<128x32xbf16>, vector<128x32xf32> -> vector<128x32xf32>
      %131 = arith.index_cast %arg14 : i32 to index
      %c0_37 = arith.constant 0 : index
      %c0_38 = arith.constant 0 : index
      %132 = vector.load %arg10[%131, %c0_37, %c0_38] : memref<2x1x32xf32, #tpu.memory_space<vmem>>, vector<1x1x32xf32>
      %133 = vector.shape_cast %132 : vector<1x1x32xf32> to vector<1x32xf32>
      %134 = vector.broadcast %133 : vector<1x32xf32> to vector<128x32xf32>
      %135 = arith.addf %130, %134 : vector<128x32xf32>
      %136 = arith.addf %arg15, %135 : vector<128x32xf32>
      %137 = vector.broadcast %6 : vector<128x1xf32> to vector<128x32xf32>
      %138 = arith.mulf %136, %137 : vector<128x32xf32>
      scf.yield %138 : vector<128x32xf32>
    }
    %c2_i32_2 = arith.constant 2 : i32
    %c0_3 = arith.constant 0 : index
    %c0_4 = arith.constant 0 : index
    %11 = vector.load %arg11[%c0_3, %c0_4] : memref<8x32xbf16, #tpu.memory_space<vmem>>, vector<8x32xbf16>
    %12 = arith.truncf %10 : vector<128x32xf32> to vector<128x32xbf16>
    %cst = arith.constant dense<0.000000e+00> : vector<8x128xf32>
    %13 = tpu.matmul %11, %12, %cst {dimension_numbers = #tpu.dot_dimension_numbers<[1], [1], [0], [0], [0, 0, 1, 0], [], []>} : vector<8x32xbf16>, vector<128x32xbf16>, vector<8x128xf32> -> vector<8x128xf32>
    %c0_5 = arith.constant 0 : index
    %c0_6 = arith.constant 0 : index
    %14 = vector.load %arg12[%c0_5, %c0_6] : memref<8x1xf32, #tpu.memory_space<vmem>>, vector<8x1xf32>
    %15 = vector.broadcast %14 : vector<8x1xf32> to vector<8x128xf32>
    %16 = arith.addf %13, %15 : vector<8x128xf32>
    %c0_7 = arith.constant 0 : index
    %c0_8 = arith.constant 0 : index
    %c0_9 = arith.constant 0 : index
    %17 = vector.load %arg13[%c0_7, %c0_8, %c0_9] : memref<1x8x128xf32, #tpu.memory_space<vmem>>, vector<1x8x128xf32>
    %18 = vector.shape_cast %17 : vector<1x8x128xf32> to vector<8x128xf32>
    %19 = vector.shape_cast %16 : vector<8x128xf32> to vector<1x8x128xf32>
    tpu.vector_store %arg13[%c0_7, %c0_8, %c0_9], %19 {strides = array<i32>} : memref<1x8x128xf32, #tpu.memory_space<vmem>>, vector<1x8x128xf32>,
    return
  }
  func.func @transform_0(%arg0: i32, %arg1: memref<2xi32, #tpu.memory_space<smem>>) -> (i32, i32, i32) {
    %c0_i32 = arith.constant 0 : i32
    %c0_i32_0 = arith.constant 0 : i32
    %c0_i32_1 = arith.constant 0 : i32
    return %arg0, %c0_i32, %c0_i32_0 : i32, i32, i32
  }
  func.func @transform_1(%arg0: i32, %arg1: memref<2xi32, #tpu.memory_space<smem>>) -> (i32, i32, i32) {
    %c0_i32 = arith.constant 0 : i32
    %c0_i32_0 = arith.constant 0 : i32
    %c0_i32_1 = arith.constant 0 : i32
    %c0_i32_2 = arith.constant 0 : i32
    return %c0_i32, %c0_i32_0, %c0_i32_1 : i32, i32, i32
  }
  func.func @transform_2(%arg0: i32, %arg1: memref<2xi32, #tpu.memory_space<smem>>) -> (i32, i32, i32) {
    %c0_i32 = arith.constant 0 : i32
    %c0_i32_0 = arith.constant 0 : i32
    %c0_i32_1 = arith.constant 0 : i32
    %c0_i32_2 = arith.constant 0 : i32
    return %c0_i32, %c0_i32_0, %c0_i32_1 : i32, i32, i32
  }
  func.func @transform_3(%arg0: i32, %arg1: memref<2xi32, #tpu.memory_space<smem>>) -> (i32, i32, i32) {
    %c0_i32 = arith.constant 0 : i32
    %c0_i32_0 = arith.constant 0 : i32
    %c0_i32_1 = arith.constant 0 : i32
    %c0_i32_2 = arith.constant 0 : i32
    return %c0_i32, %c0_i32_0, %c0_i32_1 : i32, i32, i32
  }
  func.func @transform_4(%arg0: i32, %arg1: memref<2xi32, #tpu.memory_space<smem>>) -> (i32, i32, i32) {
    %c0_i32 = arith.constant 0 : i32
    %c0_i32_0 = arith.constant 0 : i32
    %c0_i32_1 = arith.constant 0 : i32
    %c0_i32_2 = arith.constant 0 : i32
    return %c0_i32, %c0_i32_0, %c0_i32_1 : i32, i32, i32
  }
  func.func @transform_5(%arg0: i32, %arg1: memref<2xi32, #tpu.memory_space<smem>>) -> (i32, i32, i32) {
    %c0_i32 = arith.constant 0 : i32
    %c0_i32_0 = arith.constant 0 : i32
    %c0_i32_1 = arith.constant 0 : i32
    %c0_i32_2 = arith.constant 0 : i32
    return %c0_i32, %c0_i32_0, %c0_i32_1 : i32, i32, i32
  }
  func.func @transform_6(%arg0: i32, %arg1: memref<2xi32, #tpu.memory_space<smem>>) -> (i32, i32, i32) {
    %c0_i32 = arith.constant 0 : i32
    %c0_i32_0 = arith.constant 0 : i32
    %c0_i32_1 = arith.constant 0 : i32
    %c0_i32_2 = arith.constant 0 : i32
    return %c0_i32, %c0_i32_0, %c0_i32_1 : i32, i32, i32
  }
  func.func @transform_7(%arg0: i32, %arg1: memref<2xi32, #tpu.memory_space<smem>>) -> (i32, i32, i32) {
    %c0_i32 = arith.constant 0 : i32
    %c0_i32_0 = arith.constant 0 : i32
    %c0_i32_1 = arith.constant 0 : i32
    %c0_i32_2 = arith.constant 0 : i32
    return %c0_i32, %c0_i32_0, %c0_i32_1 : i32, i32, i32
  }
  func.func @transform_8(%arg0: i32, %arg1: memref<2xi32, #tpu.memory_space<smem>>) -> (i32, i32, i32) {
    %c0_i32 = arith.constant 0 : i32
    %c0_i32_0 = arith.constant 0 : i32
    %c0_i32_1 = arith.constant 0 : i32
    %c0_i32_2 = arith.constant 0 : i32
    return %c0_i32, %c0_i32_0, %c0_i32_1 : i32, i32, i32
  }
  func.func @transform_9(%arg0: i32, %arg1: memref<2xi32, #tpu.memory_space<smem>>) -> (i32, i32) {
    %c0_i32 = arith.constant 0 : i32
    %c0_i32_0 = arith.constant 0 : i32
    %c0_i32_1 = arith.constant 0 : i32
    return %c0_i32, %c0_i32_0 : i32, i32
  }
  func.func @transform_10(%arg0: i32, %arg1: memref<2xi32, #tpu.memory_space<smem>>) -> (i32, i32) {
    %c0_i32 = arith.constant 0 : i32
    %c0_i32_0 = arith.constant 0 : i32
    %c0_i32_1 = arith.constant 0 : i32
    return %c0_i32, %c0_i32_0 : i32, i32
  }
  func.func @transform_11(%arg0: i32, %arg1: memref<2xi32, #tpu.memory_space<smem>>) -> (i32, i32, i32) {
    %c0_i32 = arith.constant 0 : i32
    %c0_i32_0 = arith.constant 0 : i32
    %c0_i32_1 = arith.constant 0 : i32
    return %arg0, %c0_i32, %c0_i32_0 : i32, i32, i32
  }
}

</mosaic_0001>

<llo_original>
// kernel: tpu_custom_call.1
$region0: #{tpu_custom_call.1}
  #allocation0 [shape = 'u32[]', space=smem, size = 0x4, offset = 0x4, fixed_abs, tag = 'smem constant byte address 0x4 - core index']
  #allocation1 [shape = 'u32[144,128]{1,0:T(1,128)}', space=vmem, size = 0x12000, scoped, tag = 'internal scratch']
  #allocation2 [shape = 's32[1]{0}', space=sflag, size = 0x4, scoped, tag = 'scoped memory for tpu_custom_call.1']
  #allocation3 [shape = 'u8[512]{0}', space=smem, size = 0x200, scoped, tag = 'prefetched SMEM operand 0']
  %s0 = inlined_call_operand.vmem [shape: s32[2], index: 0, kind: input, shape index: {}]
  %s1 = inlined_call_operand.vmem [shape: f32[2,128,32], index: 1, kind: input, shape index: {}]
  %s2 = inlined_call_operand.vmem [shape: f32[2,7,32], index: 2, kind: input, shape index: {}]
  %s3 = inlined_call_operand.vmem [shape: f32[2,1,32], index: 3, kind: input, shape index: {}]
  %s4 = inlined_call_operand.vmem [shape: f32[2,1,32], index: 4, kind: input, shape index: {}]
  %s5 = inlined_call_operand.vmem [shape: f32[2,1,32], index: 5, kind: input, shape index: {}]
  %s6 = inlined_call_operand.vmem [shape: bf16[2,32,128], index: 6, kind: input, shape index: {}]
  %s7 = inlined_call_operand.vmem [shape: f32[2,1,128], index: 7, kind: input, shape index: {}]
  %s8 = inlined_call_operand.vmem [shape: bf16[2,128,32], index: 8, kind: input, shape index: {}]
  %s9 = inlined_call_operand.vmem [shape: f32[2,1,32], index: 9, kind: input, shape index: {}]
  %s10 = inlined_call_operand.vmem [shape: bf16[8,32], index: 10, kind: input, shape index: {}]
  %s11 = inlined_call_operand.vmem [shape: f32[8,1], index: 11, kind: input, shape index: {}]
  %s12 = inlined_call_operand.hbm [shape: f32[2,8,128], index: 12, kind: output, shape index: {}]
  %s13 = sld [smem:[#allocation0]]
  $region84: #{tpu_custom_call.1} parent=0
    _
  %s15 = ssub.s32 1, %s13
  %s16 = scalar_select 0, %s15, %s13
  %s17 = sshll.u32 %s0, 4
  %s18 = int_to_ptr.vmem [resolvable:$true] %s17
  %20 = dma.vmem_to_smem %s18, 16, [#allocation3], [#allocation2]
  %21 = dma.done [#allocation2], 16
  %22 = sfence
  $region1: #{tpu_custom_call.1} parent=0
    #allocation4 [shape = 'u8[8192]{0}', space=vmem, size = 0x2000, scoped, tag = 'output window, operand 0']
    #allocation5 [shape = 's32[2]{0}', space=sflag, size = 0x8, scoped, tag = 'scoped memory for tpu_custom_call.1']
    %23 = vsyncpa [#allocation5], 0
    %s24 = scalar_lea.sflag [#allocation5], 1
    %25 = vsyncpa %s24, 0
    loop: start=0, step=1, limit=4
    $region2: #{tpu_custom_call.1} parent=1 // loop_pre_header
      _
    $region3: #{tpu_custom_call.1} parent=1 // loop_header
      %s27 = sphi 0, %s31
      %p28 = scmp.ge.s32.totalorder %s27, 4
      %s37 = sphi 0, %s39
      %s40 = sphi 0, %s37
      %s41 = sphi 0, %s40
      %s57 = sphi 0, %s41
      %s61 = sphi 0, %s61
      %s63 = sphi 0, %s61
      %s64 = sphi 0, %s63
      %s78 = sphi 0, %s64
      %s82 = sphi 0, %s82
      %s84 = sphi 0, %s82
      %s85 = sphi 0, %s84
      %s99 = sphi 0, %s85
      %s103 = sphi 0, %s103
      %s105 = sphi 0, %s103
      %s106 = sphi 0, %s105
      %s120 = sphi 0, %s106
      %s124 = sphi 0, %s124
      %s126 = sphi 0, %s124
      %s127 = sphi 0, %s126
      %s141 = sphi 0, %s127
      %s145 = sphi 0, %s145
      %s147 = sphi 0, %s145
      %s148 = sphi 0, %s147
      %s162 = sphi 0, %s148
      %s166 = sphi 0, %s166
      %s168 = sphi 0, %s166
      %s169 = sphi 0, %s168
      %s183 = sphi 0, %s169
      %s187 = sphi 0, %s187
      %s189 = sphi 0, %s187
      %s190 = sphi 0, %s189
      %s204 = sphi 0, %s190
      %s208 = sphi 0, %s208
      %s210 = sphi 0, %s208
      %s211 = sphi 0, %s210
      %s225 = sphi 0, %s211
      %s229 = sphi 0, %s229
      %s231 = sphi 0, %s229
      %s232 = sphi 0, %s231
      %s246 = sphi 0, %s232
      %s250 = sphi 0, %s250
      %s252 = sphi 0, %s250
      %s253 = sphi 0, %s252
      %s267 = sphi 0, %s253
      %s273 = sphi 0, %s275
      %s276 = sphi 0, %s273
      %s277 = sphi 0, %s276
      %s293 = sphi 0, %s277
    $region4: #{tpu_custom_call.1} parent=1 // loop_header_branch
      %30 = sbr.rel (%p28) target = $region8
    $region5: #{tpu_custom_call.1} parent=1 // loop_body
      %s32 = ssub.s32 %s27, 1
      %s33 = ssub.s32 %s27, 2
      %s34 = sadd.s32 %s27, 1
      %s35 = ssub.s32 %s27, %s34
      %p36 = scmp.eq.s32.totalorder %s35, 0
      %s38 = sadd.s32 %s37, 1
      %s39 = scalar_select %p36, %s37, %s38
      %p42 = pneg %p36
      %p43 = scmp.eq.s32.totalorder %s27, 1
      %p44 = por %p42, %p43
      %p45 = scmp.ne.s32.totalorder %s37, %s40
      %p46 = scmp.eq.s32.totalorder %s27, 0
      %p47 = por %p45, %p46
      %p48 = scmp.ne.s32.totalorder %s37, %s40
      %p49 = scmp.eq.s32.totalorder %s32, 1
      %p50 = por %p48, %p49
      %p51 = scmp.ne.s32.totalorder %s40, %s41
      %p52 = scmp.eq.s32.totalorder %s32, 0
      %p53 = por %p51, %p52
      %p54 = scmp.ne.s32.totalorder %s40, %s41
      %p55 = scmp.eq.s32.totalorder %s33, 1
      %p56 = por %p54, %p55
      %p58 = scmp.ne.s32.totalorder %s41, %s57
      %p59 = scmp.eq.s32.totalorder %s33, 0
      %p60 = por %p58, %p59
      %s62 = sadd.s32 %s61, 1
      %p65 = scmp.eq.s32.totalorder %s27, 1
      %p66 = scmp.ne.s32.totalorder %s61, %s63
      %p67 = scmp.eq.s32.totalorder %s27, 0
      %p68 = por %p66, %p67
      %p69 = scmp.ne.s32.totalorder %s61, %s63
      %p70 = scmp.eq.s32.totalorder %s32, 1
      %p71 = por %p69, %p70
      %p72 = scmp.ne.s32.totalorder %s63, %s64
      %p73 = scmp.eq.s32.totalorder %s32, 0
      %p74 = por %p72, %p73
      %p75 = scmp.ne.s32.totalorder %s63, %s64
      %p76 = scmp.eq.s32.totalorder %s33, 1
      %p77 = por %p75, %p76
      %p79 = scmp.ne.s32.totalorder %s64, %s78
      %p80 = scmp.eq.s32.totalorder %s33, 0
      %p81 = por %p79, %p80
      %s83 = sadd.s32 %s82, 1
      %p86 = scmp.eq.s32.totalorder %s27, 1
      %p87 = scmp.ne.s32.totalorder %s82, %s84
      %p88 = scmp.eq.s32.totalorder %s27, 0
      %p89 = por %p87, %p88
      %p90 = scmp.ne.s32.totalorder %s82, %s84
      %p91 = scmp.eq.s32.totalorder %s32, 1
      %p92 = por %p90, %p91
      %p93 = scmp.ne.s32.totalorder %s84, %s85
      %p94 = scmp.eq.s32.totalorder %s32, 0
      %p95 = por %p93, %p94
      %p96 = scmp.ne.s32.totalorder %s84, %s85
      %p97 = scmp.eq.s32.totalorder %s33, 1
      %p98 = por %p96, %p97
      %p100 = scmp.ne.s32.totalorder %s85, %s99
      %p101 = scmp.eq.s32.totalorder %s33, 0
      %p102 = por %p100, %p101
      %s104 = sadd.s32 %s103, 1
      %p107 = scmp.eq.s32.totalorder %s27, 1
      %p108 = scmp.ne.s32.totalorder %s103, %s105
      %p109 = scmp.eq.s32.totalorder %s27, 0
      %p110 = por %p108, %p109
      %p111 = scmp.ne.s32.totalorder %s103, %s105
      %p112 = scmp.eq.s32.totalorder %s32, 1
      %p113 = por %p111, %p112
      %p114 = scmp.ne.s32.totalorder %s105, %s106
      %p115 = scmp.eq.s32.totalorder %s32, 0
      %p116 = por %p114, %p115
      %p117 = scmp.ne.s32.totalorder %s105, %s106
      %p118 = scmp.eq.s32.totalorder %s33, 1
      %p119 = por %p117, %p118
      %p121 = scmp.ne.s32.totalorder %s106, %s120
      %p122 = scmp.eq.s32.totalorder %s33, 0
      %p123 = por %p121, %p122
      %s125 = sadd.s32 %s124, 1
      %p128 = scmp.eq.s32.totalorder %s27, 1
      %p129 = scmp.ne.s32.totalorder %s124, %s126
      %p130 = scmp.eq.s32.totalorder %s27, 0
      %p131 = por %p129, %p130
      %p132 = scmp.ne.s32.totalorder %s124, %s126
      %p133 = scmp.eq.s32.totalorder %s32, 1
      %p134 = por %p132, %p133
      %p135 = scmp.ne.s32.totalorder %s126, %s127
      %p136 = scmp.eq.s32.totalorder %s32, 0
      %p137 = por %p135, %p136
      %p138 = scmp.ne.s32.totalorder %s126, %s127
      %p139 = scmp.eq.s32.totalorder %s33, 1
      %p140 = por %p138, %p139
      %p142 = scmp.ne.s32.totalorder %s127, %s141
      %p143 = scmp.eq.s32.totalorder %s33, 0
      %p144 = por %p142, %p143
      %s146 = sadd.s32 %s145, 1
      %p149 = scmp.eq.s32.totalorder %s27, 1
      %p150 = scmp.ne.s32.totalorder %s145, %s147
      %p151 = scmp.eq.s32.totalorder %s27, 0
      %p152 = por %p150, %p151
      %p153 = scmp.ne.s32.totalorder %s145, %s147
      %p154 = scmp.eq.s32.totalorder %s32, 1
      %p155 = por %p153, %p154
      %p156 = scmp.ne.s32.totalorder %s147, %s148
      %p157 = scmp.eq.s32.totalorder %s32, 0
      %p158 = por %p156, %p157
      %p159 = scmp.ne.s32.totalorder %s147, %s148
      %p160 = scmp.eq.s32.totalorder %s33, 1
      %p161 = por %p159, %p160
      %p163 = scmp.ne.s32.totalorder %s148, %s162
      %p164 = scmp.eq.s32.totalorder %s33, 0
      %p165 = por %p163, %p164
      %s167 = sadd.s32 %s166, 1
      %p170 = scmp.eq.s32.totalorder %s27, 1
      %p171 = scmp.ne.s32.totalorder %s166, %s168
      %p172 = scmp.eq.s32.totalorder %s27, 0
      %p173 = por %p171, %p172
      %p174 = scmp.ne.s32.totalorder %s166, %s168
      %p175 = scmp.eq.s32.totalorder %s32, 1
      %p176 = por %p174, %p175
      %p177 = scmp.ne.s32.totalorder %s168, %s169
      %p178 = scmp.eq.s32.totalorder %s32, 0
      %p179 = por %p177, %p178
      %p180 = scmp.ne.s32.totalorder %s168, %s169
      %p181 = scmp.eq.s32.totalorder %s33, 1
      %p182 = por %p180, %p181
      %p184 = scmp.ne.s32.totalorder %s169, %s183
      %p185 = scmp.eq.s32.totalorder %s33, 0
      %p186 = por %p184, %p185
      %s188 = sadd.s32 %s187, 1
      %p191 = scmp.eq.s32.totalorder %s27, 1
      %p192 = scmp.ne.s32.totalorder %s187, %s189
      %p193 = scmp.eq.s32.totalorder %s27, 0
      %p194 = por %p192, %p193
      %p195 = scmp.ne.s32.totalorder %s187, %s189
      %p196 = scmp.eq.s32.totalorder %s32, 1
      %p197 = por %p195, %p196
      %p198 = scmp.ne.s32.totalorder %s189, %s190
      %p199 = scmp.eq.s32.totalorder %s32, 0
      %p200 = por %p198, %p199
      %p201 = scmp.ne.s32.totalorder %s189, %s190
      %p202 = scmp.eq.s32.totalorder %s33, 1
      %p203 = por %p201, %p202
      %p205 = scmp.ne.s32.totalorder %s190, %s204
      %p206 = scmp.eq.s32.totalorder %s33, 0
      %p207 = por %p205, %p206
      %s209 = sadd.s32 %s208, 1
      %p212 = scmp.eq.s32.totalorder %s27, 1
      %p213 = scmp.ne.s32.totalorder %s208, %s210
      %p214 = scmp.eq.s32.totalorder %s27, 0
      %p215 = por %p213, %p214
      %p216 = scmp.ne.s32.totalorder %s208, %s210
      %p217 = scmp.eq.s32.totalorder %s32, 1
      %p218 = por %p216, %p217
      %p219 = scmp.ne.s32.totalorder %s210, %s211
      %p220 = scmp.eq.s32.totalorder %s32, 0
      %p221 = por %p219, %p220
      %p222 = scmp.ne.s32.totalorder %s210, %s211
      %p223 = scmp.eq.s32.totalorder %s33, 1
      %p224 = por %p222, %p223
      %p226 = scmp.ne.s32.totalorder %s211, %s225
      %p227 = scmp.eq.s32.totalorder %s33, 0
      %p228 = por %p226, %p227
      %s230 = sadd.s32 %s229, 1
      %p233 = scmp.eq.s32.totalorder %s27, 1
      %p234 = scmp.ne.s32.totalorder %s229, %s231
      %p235 = scmp.eq.s32.totalorder %s27, 0
      %p236 = por %p234, %p235
      %p237 = scmp.ne.s32.totalorder %s229, %s231
      %p238 = scmp.eq.s32.totalorder %s32, 1
      %p239 = por %p237, %p238
      %p240 = scmp.ne.s32.totalorder %s231, %s232
      %p241 = scmp.eq.s32.totalorder %s32, 0
      %p242 = por %p240, %p241
      %p243 = scmp.ne.s32.totalorder %s231, %s232
      %p244 = scmp.eq.s32.totalorder %s33, 1
      %p245 = por %p243, %p244
      %p247 = scmp.ne.s32.totalorder %s232, %s246
      %p248 = scmp.eq.s32.totalorder %s33, 0
      %p249 = por %p247, %p248
      %s251 = sadd.s32 %s250, 1
      %p254 = scmp.eq.s32.totalorder %s27, 1
      %p255 = scmp.ne.s32.totalorder %s250, %s252
      %p256 = scmp.eq.s32.totalorder %s27, 0
      %p257 = por %p255, %p256
      %p258 = scmp.ne.s32.totalorder %s250, %s252
      %p259 = scmp.eq.s32.totalorder %s32, 1
      %p260 = por %p258, %p259
      %p261 = scmp.ne.s32.totalorder %s252, %s253
      %p262 = scmp.eq.s32.totalorder %s32, 0
      %p263 = por %p261, %p262
      %p264 = scmp.ne.s32.totalorder %s252, %s253
      %p265 = scmp.eq.s32.totalorder %s33, 1
      %p266 = por %p264, %p265
      %p268 = scmp.ne.s32.totalorder %s253, %s267
      %p269 = scmp.eq.s32.totalorder %s33, 0
      %p270 = por %p268, %p269
      %s271 = ssub.s32 %s27, %s34
      %p272 = scmp.eq.s32.totalorder %s271, 0
      %s274 = sadd.s32 %s273, 1
      %s275 = scalar_select %p272, %s273, %s274
      %p278 = pneg %p272
      %p279 = scmp.eq.s32.totalorder %s27, 1
      %p280 = por %p278, %p279
      %p281 = scmp.ne.s32.totalorder %s273, %s276
      %p282 = scmp.eq.s32.totalorder %s27, 0
      %p283 = por %p281, %p282
      %p284 = scmp.ne.s32.totalorder %s273, %s276
      %p285 = scmp.eq.s32.totalorder %s32, 1
      %p286 = por %p284, %p285
      %p287 = scmp.ne.s32.totalorder %s276, %s277
      %p288 = scmp.eq.s32.totalorder %s32, 0
      %p289 = por %p287, %p288
      %p290 = scmp.ne.s32.totalorder %s276, %s277
      %p291 = scmp.eq.s32.totalorder %s33, 1
      %p292 = por %p290, %p291
      %p294 = scmp.ne.s32.totalorder %s277, %s293
      %p295 = scmp.eq.s32.totalorder %s33, 0
      %p296 = por %p294, %p295
      %p297 = scmp.le.s32.totalorder 1, %s27
      %p298 = scmp.lt.s32.totalorder %s27, 3
      %p299 = pnand %p297, %p298
      %p300 = pneg %p299
      // Predicated region
      $region9: #{tpu_custom_call.1} parent=5 // pred_check
        _
      $region10: #{tpu_custom_call.1} parent=5 // pred_check_branch
        %302 = sbr.rel (%p299) target = $region12
      $region11: #{tpu_custom_call.1} parent=5 // pred_region
        %s303 = ssub.s32 %s27, 1
        // Predicated region
        $region13: #{tpu_custom_call.1} parent=11 // pred_check
          %p304 = pneg %p74
        $region14: #{tpu_custom_call.1} parent=11 // pred_check_branch
          %306 = sbr.rel (%p304) target = $region16
        $region15: #{tpu_custom_call.1} parent=11 // pred_region
          _
        $region16: #{tpu_custom_call.1} parent=11 // pred_fallthru
          _
        // Predicated region
        $region17: #{tpu_custom_call.1} parent=11 // pred_check
          %p307 = pneg %p95
        $region18: #{tpu_custom_call.1} parent=11 // pred_check_branch
          %309 = sbr.rel (%p307) target = $region20
        $region19: #{tpu_custom_call.1} parent=11 // pred_region
          _
        $region20: #{tpu_custom_call.1} parent=11 // pred_fallthru
          _
        // Predicated region
        $region21: #{tpu_custom_call.1} parent=11 // pred_check
          %p310 = pneg %p116
        $region22: #{tpu_custom_call.1} parent=11 // pred_check_branch
          %312 = sbr.rel (%p310) target = $region24
        $region23: #{tpu_custom_call.1} parent=11 // pred_region
          _
        $region24: #{tpu_custom_call.1} parent=11 // pred_fallthru
          _
        // Predicated region
        $region25: #{tpu_custom_call.1} parent=11 // pred_check
          %p313 = pneg %p137
        $region26: #{tpu_custom_call.1} parent=11 // pred_check_branch
          %315 = sbr.rel (%p313) target = $region28
        $region27: #{tpu_custom_call.1} parent=11 // pred_region
          _
        $region28: #{tpu_custom_call.1} parent=11 // pred_fallthru
          _
        // Predicated region
        $region29: #{tpu_custom_call.1} parent=11 // pred_check
          %p316 = pneg %p158
        $region30: #{tpu_custom_call.1} parent=11 // pred_check_branch
          %318 = sbr.rel (%p316) target = $region32
        $region31: #{tpu_custom_call.1} parent=11 // pred_region
          _
        $region32: #{tpu_custom_call.1} parent=11 // pred_fallthru
          _
        // Predicated region
        $region33: #{tpu_custom_call.1} parent=11 // pred_check
          %p319 = pneg %p179
        $region34: #{tpu_custom_call.1} parent=11 // pred_check_branch
          %321 = sbr.rel (%p319) target = $region36
        $region35: #{tpu_custom_call.1} parent=11 // pred_region
          _
        $region36: #{tpu_custom_call.1} parent=11 // pred_fallthru
          _
        // Predicated region
        $region37: #{tpu_custom_call.1} parent=11 // pred_check
          %p322 = pneg %p200
        $region38: #{tpu_custom_call.1} parent=11 // pred_check_branch
          %324 = sbr.rel (%p322) target = $region40
        $region39: #{tpu_custom_call.1} parent=11 // pred_region
          _
        $region40: #{tpu_custom_call.1} parent=11 // pred_fallthru
          _
        // Predicated region
        $region41: #{tpu_custom_call.1} parent=11 // pred_check
          %p325 = pneg %p221
        $region42: #{tpu_custom_call.1} parent=11 // pred_check_branch
          %327 = sbr.rel (%p325) target = $region44
        $region43: #{tpu_custom_call.1} parent=11 // pred_region
          _
        $region44: #{tpu_custom_call.1} parent=11 // pred_fallthru
          _
        // Predicated region
        $region45: #{tpu_custom_call.1} parent=11 // pred_check
          %p328 = pneg %p242
        $region46: #{tpu_custom_call.1} parent=11 // pred_check_branch
          %330 = sbr.rel (%p328) target = $region48
        $region47: #{tpu_custom_call.1} parent=11 // pred_region
          _
        $region48: #{tpu_custom_call.1} parent=11 // pred_fallthru
          _
        // Predicated region
        $region49: #{tpu_custom_call.1} parent=11 // pred_check
          %p331 = pneg %p263
        $region50: #{tpu_custom_call.1} parent=11 // pred_check_branch
          %333 = sbr.rel (%p331) target = $region52
        $region51: #{tpu_custom_call.1} parent=11 // pred_region
          _
        $region52: #{tpu_custom_call.1} parent=11 // pred_fallthru
          _
      $region12: #{tpu_custom_call.1} parent=5 // pred_fallthru
        _
      %p334 = scmp.lt.s32.totalorder %s27, 2
      // Predicated region
      $region53: #{tpu_custom_call.1} parent=5 // pred_check
        %p335 = pneg %p334
      $region54: #{tpu_custom_call.1} parent=5 // pred_check_branch
        %337 = sbr.rel (%p335) target = $region56
      $region55: #{tpu_custom_call.1} parent=5 // pred_region
        // Predicated region
        $region57: #{tpu_custom_call.1} parent=55 // pred_check
          %p338 = pneg %p47
        $region58: #{tpu_custom_call.1} parent=55 // pred_check_branch
          %340 = sbr.rel (%p338) target = $region60
        $region59: #{tpu_custom_call.1} parent=55 // pred_region
          %p341 = scmp.lt.s32.totalorder %s27, 1
          %s342 = scalar_select %p341, %s27, 1
          %s343 = smul.addr %s342, 16
          %s344 = smul.addr %s343, 8
          %s345 = scalar_lea.vmem %s1, %s344
        $region60: #{tpu_custom_call.1} parent=55 // pred_fallthru
          _
      $region56: #{tpu_custom_call.1} parent=5 // pred_fallthru
        _
      %p346 = scmp.le.s32.totalorder 1, %s27
      %p347 = scmp.lt.s32.totalorder %s27, 3
      %p348 = pnand %p346, %p347
      %p349 = pneg %p348
      // Predicated region
      $region61: #{tpu_custom_call.1} parent=5 // pred_check
        _
      $region62: #{tpu_custom_call.1} parent=5 // pred_check_branch
        %351 = sbr.rel (%p348) target = $region64
      $region63: #{tpu_custom_call.1} parent=5 // pred_region
        %s352 = ssub.s32 %s27, 1
        %p353 = scmp.lt.s32.totalorder %s32, 1
        %s354 = scalar_select %p353, %s32, 1
        %s355 = smul.addr %s354, 16
        %s356 = smul.addr %s355, 8
        %s357 = scalar_lea.vmem %s1, %s356
        %p358 = pneg %p53
        %p359 = pneg %p50
        %p360 = pneg %p74
        %p361 = pneg %p71
        %p362 = pneg %p95
        %p363 = pneg %p92
        %p364 = pneg %p116
        %p365 = pneg %p113
        %p366 = pneg %p137
        %p367 = pneg %p134
        %p368 = pneg %p158
        %p369 = pneg %p155
        %p370 = pneg %p179
        %p371 = pneg %p176
        %p372 = pneg %p200
        %p373 = pneg %p197
        %p374 = pneg %p221
        %p375 = pneg %p218
        %p376 = pneg %p242
        %p377 = pneg %p239
        %p378 = pneg %p263
        %p379 = pneg %p260
        %p380 = pneg %p289
        %p381 = pneg %p286
        %s382 = sand.u32 %s276, 1
        %s383 = scalar_lea.sflag [#allocation5], %s382
        %s384 = sand.u32 %s276, 1
        %s385 = smul.addr %s384, 8
        %s386 = scalar_lea.vmem [#allocation4], %s385
        %p387 = scmp.lt.s32.totalorder %s32, 1
        %s388 = scalar_select %p387, %s32, 1
        %s389 = smul.addr %s388, 16
        %s390 = smul.addr %s389, 8
        %s391 = scalar_lea.vmem %s1, %s390
        %s393 = sld [smem:[#allocation3 + %s32]]
        %v394 = vlaneseq
        %v395 = vshrl.u32 %v394, 7
        %v396 = vadd.s32 %v395, 8
        %v397 = vadd.s32 %v395, 16
        %v398 = vadd.s32 %v395, 24
        %v399 = vadd.s32 %v395, 32
        %v400 = vadd.s32 %v395, 40
        %v401 = vadd.s32 %v395, 48
        %v402 = vadd.s32 %v395, 56
        %v403 = vadd.s32 %v395, 64
        %v404 = vadd.s32 %v395, 72
        %v405 = vadd.s32 %v395, 80
        %v406 = vadd.s32 %v395, 88
        %v407 = vadd.s32 %v395, 96
        %v408 = vadd.s32 %v395, 104
        %v409 = vadd.s32 %v395, 112
        %v410 = vadd.s32 %v395, 120
        %v411 = vstv %s393
        %vm412 = vcmp.lt.s32.totalorder %v395, %v411
        %vm413 = vcmp.lt.s32.totalorder %v396, %v411
        %vm414 = vcmp.lt.s32.totalorder %v397, %v411
        %vm415 = vcmp.lt.s32.totalorder %v398, %v411
        %vm416 = vcmp.lt.s32.totalorder %v399, %v411
        %vm417 = vcmp.lt.s32.totalorder %v400, %v411
        %vm418 = vcmp.lt.s32.totalorder %v401, %v411
        %vm419 = vcmp.lt.s32.totalorder %v402, %v411
        %vm420 = vcmp.lt.s32.totalorder %v403, %v411
        %vm421 = vcmp.lt.s32.totalorder %v404, %v411
        %vm422 = vcmp.lt.s32.totalorder %v405, %v411
        %vm423 = vcmp.lt.s32.totalorder %v406, %v411
        %vm424 = vcmp.lt.s32.totalorder %v407, %v411
        %vm425 = vcmp.lt.s32.totalorder %v408, %v411
        %vm426 = vcmp.lt.s32.totalorder %v409, %v411
        %vm427 = vcmp.lt.s32.totalorder %v410, %v411
        %v428 = vsel %vm412, 1, 0
        %v429 = vsel %vm413, 1, 0
        %v430 = vsel %vm414, 1, 0
        %v431 = vsel %vm415, 1, 0
        %v432 = vsel %vm416, 1, 0
        %v433 = vsel %vm417, 1, 0
        %v434 = vsel %vm418, 1, 0
        %v435 = vsel %vm419, 1, 0
        %v436 = vsel %vm420, 1, 0
        %v437 = vsel %vm421, 1, 0
        %v438 = vsel %vm422, 1, 0
        %v439 = vsel %vm423, 1, 0
        %v440 = vsel %vm424, 1, 0
        %v441 = vsel %vm425, 1, 0
        %v442 = vsel %vm426, 1, 0
        %v443 = vsel %vm427, 1, 0
        %v444 = vcvt.s32.f32 %v428
        %v445 = vcvt.s32.f32 %v429
        %v446 = vcvt.s32.f32 %v430
        %v447 = vcvt.s32.f32 %v431
        %v448 = vcvt.s32.f32 %v432
        %v449 = vcvt.s32.f32 %v433
        %v450 = vcvt.s32.f32 %v434
        %v451 = vcvt.s32.f32 %v435
        %v452 = vcvt.s32.f32 %v436
        %v453 = vcvt.s32.f32 %v437
        %v454 = vcvt.s32.f32 %v438
        %v455 = vcvt.s32.f32 %v439
        %v456 = vcvt.s32.f32 %v440
        %v457 = vcvt.s32.f32 %v441
        %v458 = vcvt.s32.f32 %v442
        %v459 = vcvt.s32.f32 %v443
        %v460 = vld [vmem:[%s391] sm:$0xff]
        %v461 = vld [vmem:[%s391 + $0x8] sm:$0xff]
        %v462 = vld [vmem:[%s391 + $0x10] sm:$0xff]
        %v463 = vld [vmem:[%s391 + $0x18] sm:$0xff]
        %v464 = vld [vmem:[%s391 + $0x20] sm:$0xff]
        %v465 = vld [vmem:[%s391 + $0x28] sm:$0xff]
        %v466 = vld [vmem:[%s391 + $0x30] sm:$0xff]
        %v467 = vld [vmem:[%s391 + $0x38] sm:$0xff]
        %v468 = vld [vmem:[%s391 + $0x40] sm:$0xff]
        %v469 = vld [vmem:[%s391 + $0x48] sm:$0xff]
        %v470 = vld [vmem:[%s391 + $0x50] sm:$0xff]
        %v471 = vld [vmem:[%s391 + $0x58] sm:$0xff]
        %v472 = vld [vmem:[%s391 + $0x60] sm:$0xff]
        %v473 = vld [vmem:[%s391 + $0x68] sm:$0xff]
        %v474 = vld [vmem:[%s391 + $0x70] sm:$0xff]
        %v475 = vld [vmem:[%s391 + $0x78] sm:$0xff]
        loop: start=0, step=1, limit=2
        $region65: #{tpu_custom_call.1} parent=63 // loop_pre_header
          _
        $region66: #{tpu_custom_call.1} parent=63 // loop_header
          %s477 = sphi 0, %s481
          %p478 = scmp.ge.s32.totalorder %s477, 2
          %v482 = vphi %v460, %v1713
          %v483 = vphi %v461, %v1714
          %v484 = vphi %v462, %v1715
          %v485 = vphi %v463, %v1716
          %v486 = vphi %v464, %v1717
          %v487 = vphi %v465, %v1718
          %v488 = vphi %v466, %v1719
          %v489 = vphi %v467, %v1720
          %v490 = vphi %v468, %v1721
          %v491 = vphi %v469, %v1722
          %v492 = vphi %v470, %v1723
          %v493 = vphi %v471, %v1724
          %v494 = vphi %v472, %v1725
          %v495 = vphi %v473, %v1726
          %v496 = vphi %v474, %v1727
          %v497 = vphi %v475, %v1728
        $region67: #{tpu_custom_call.1} parent=63 // loop_header_branch
          %480 = sbr.rel (%p478) target = $region71
        $region68: #{tpu_custom_call.1} parent=63 // loop_body
          %s498 = smul.u32 %s477, 8
          %s499 = scalar_lea.vmem %s2, %s498
          %v500 = vld [vmem:[%s499] sm:$0x7f]
          %v501 = vlaneseq
          %v502 = vshrl.u32 %v501, 7
          %v503 = vsub.s32 3, %v502
          %v504 = vrot.slane %v500, %v503
          %v505 = vmul.f32 %v482, %v504
          %v506 = vmul.f32 %v483, %v504
          %v507 = vmul.f32 %v484, %v504
          %v508 = vmul.f32 %v485, %v504
          %v509 = vmul.f32 %v486, %v504
          %v510 = vmul.f32 %v487, %v504
          %v511 = vmul.f32 %v488, %v504
          %v512 = vmul.f32 %v489, %v504
          %v513 = vmul.f32 %v490, %v504
          %v514 = vmul.f32 %v491, %v504
          %v515 = vmul.f32 %v492, %v504
          %v516 = vmul.f32 %v493, %v504
          %v517 = vmul.f32 %v494, %v504
          %v518 = vmul.f32 %v495, %v504
          %v519 = vmul.f32 %v496, %v504
          %v520 = vmul.f32 %v497, %v504
          %v521 = vrot.slane %v482, 5
          %v522 = vrot.slane %v483, 5
          %v523 = vrot.slane %v484, 5
          %v524 = vrot.slane %v485, 5
          %v525 = vrot.slane %v486, 5
          %v526 = vrot.slane %v487, 5
          %v527 = vrot.slane %v488, 5
          %v528 = vrot.slane %v489, 5
          %v529 = vrot.slane %v490, 5
          %v530 = vrot.slane %v491, 5
          %v531 = vrot.slane %v492, 5
          %v532 = vrot.slane %v493, 5
          %v533 = vrot.slane %v494, 5
          %v534 = vrot.slane %v495, 5
          %v535 = vrot.slane %v496, 5
          %v536 = vrot.slane %v497, 5
          %vm537 = vcmp.lt.s32.totalorder %v395, 3
          %v538 = vsel %vm537, %v535, %v536
          %v539 = vsel %vm537, %v534, %v535
          %v540 = vsel %vm537, %v533, %v534
          %v541 = vsel %vm537, %v532, %v533
          %v542 = vsel %vm537, %v531, %v532
          %v543 = vsel %vm537, %v530, %v531
          %v544 = vsel %vm537, %v529, %v530
          %v545 = vsel %vm537, %v528, %v529
          %v546 = vsel %vm537, %v527, %v528
          %v547 = vsel %vm537, %v526, %v527
          %v548 = vsel %vm537, %v525, %v526
          %v549 = vsel %vm537, %v524, %v525
          %v550 = vsel %vm537, %v523, %v524
          %v551 = vsel %vm537, %v522, %v523
          %v552 = vsel %vm537, %v521, %v522
          %v553 = vsel %vm537, %v536, %v521
          %v554 = vlaneseq
          %v555 = vshrl.u32 %v554, 7
          %v556 = vsub.s32 0, %v555
          %v557 = vrot.slane %v500, %v556
          %v558 = vmul.f32 %v553, %v557
          %v559 = vmul.f32 %v552, %v557
          %v560 = vmul.f32 %v551, %v557
          %v561 = vmul.f32 %v550, %v557
          %v562 = vmul.f32 %v549, %v557
          %v563 = vmul.f32 %v548, %v557
          %v564 = vmul.f32 %v547, %v557
          %v565 = vmul.f32 %v546, %v557
          %v566 = vmul.f32 %v545, %v557
          %v567 = vmul.f32 %v544, %v557
          %v568 = vmul.f32 %v543, %v557
          %v569 = vmul.f32 %v542, %v557
          %v570 = vmul.f32 %v541, %v557
          %v571 = vmul.f32 %v540, %v557
          %v572 = vmul.f32 %v539, %v557
          %v573 = vmul.f32 %v538, %v557
          %v574 = vadd.f32 %v505, %v558
          %v575 = vadd.f32 %v506, %v559
          %v576 = vadd.f32 %v507, %v560
          %v577 = vadd.f32 %v508, %v561
          %v578 = vadd.f32 %v509, %v562
          %v579 = vadd.f32 %v510, %v563
          %v580 = vadd.f32 %v511, %v564
          %v581 = vadd.f32 %v512, %v565
          %v582 = vadd.f32 %v513, %v566
          %v583 = vadd.f32 %v514, %v567
          %v584 = vadd.f32 %v515, %v568
          %v585 = vadd.f32 %v516, %v569
          %v586 = vadd.f32 %v517, %v570
          %v587 = vadd.f32 %v518, %v571
          %v588 = vadd.f32 %v519, %v572
          %v589 = vadd.f32 %v520, %v573
          %v590 = vrot.slane %v482, 6
          %v591 = vrot.slane %v483, 6
          %v592 = vrot.slane %v484, 6
          %v593 = vrot.slane %v485, 6
          %v594 = vrot.slane %v486, 6
          %v595 = vrot.slane %v487, 6
          %v596 = vrot.slane %v488, 6
          %v597 = vrot.slane %v489, 6
          %v598 = vrot.slane %v490, 6
          %v599 = vrot.slane %v491, 6
          %v600 = vrot.slane %v492, 6
          %v601 = vrot.slane %v493, 6
          %v602 = vrot.slane %v494, 6
          %v603 = vrot.slane %v495, 6
          %v604 = vrot.slane %v496, 6
          %v605 = vrot.slane %v497, 6
          %vm606 = vcmp.lt.s32.totalorder %v395, 2
          %v607 = vsel %vm606, %v604, %v605
          %v608 = vsel %vm606, %v603, %v604
          %v609 = vsel %vm606, %v602, %v603
          %v610 = vsel %vm606, %v601, %v602
          %v611 = vsel %vm606, %v600, %v601
          %v612 = vsel %vm606, %v599, %v600
          %v613 = vsel %vm606, %v598, %v599
          %v614 = vsel %vm606, %v597, %v598
          %v615 = vsel %vm606, %v596, %v597
          %v616 = vsel %vm606, %v595, %v596
          %v617 = vsel %vm606, %v594, %v595
          %v618 = vsel %vm606, %v593, %v594
          %v619 = vsel %vm606, %v592, %v593
          %v620 = vsel %vm606, %v591, %v592
          %v621 = vsel %vm606, %v590, %v591
          %v622 = vsel %vm606, %v605, %v590
          %v623 = vlaneseq
          %v624 = vshrl.u32 %v623, 7
          %v625 = vsub.s32 1, %v624
          %v626 = vrot.slane %v500, %v625
          %v627 = vmul.f32 %v622, %v626
          %v628 = vmul.f32 %v621, %v626
          %v629 = vmul.f32 %v620, %v626
          %v630 = vmul.f32 %v619, %v626
          %v631 = vmul.f32 %v618, %v626
          %v632 = vmul.f32 %v617, %v626
          %v633 = vmul.f32 %v616, %v626
          %v634 = vmul.f32 %v615, %v626
          %v635 = vmul.f32 %v614, %v626
          %v636 = vmul.f32 %v613, %v626
          %v637 = vmul.f32 %v612, %v626
          %v638 = vmul.f32 %v611, %v626
          %v639 = vmul.f32 %v610, %v626
          %v640 = vmul.f32 %v609, %v626
          %v641 = vmul.f32 %v608, %v626
          %v642 = vmul.f32 %v607, %v626
          %v643 = vadd.f32 %v574, %v627
          %v644 = vadd.f32 %v575, %v628
          %v645 = vadd.f32 %v576, %v629
          %v646 = vadd.f32 %v577, %v630
          %v647 = vadd.f32 %v578, %v631
          %v648 = vadd.f32 %v579, %v632
          %v649 = vadd.f32 %v580, %v633
          %v650 = vadd.f32 %v581, %v634
          %v651 = vadd.f32 %v582, %v635
          %v652 = vadd.f32 %v583, %v636
          %v653 = vadd.f32 %v584, %v637
          %v654 = vadd.f32 %v585, %v638
          %v655 = vadd.f32 %v586, %v639
          %v656 = vadd.f32 %v587, %v640
          %v657 = vadd.f32 %v588, %v641
          %v658 = vadd.f32 %v589, %v642
          %v659 = vrot.slane %v482, 7
          %v660 = vrot.slane %v483, 7
          %v661 = vrot.slane %v484, 7
          %v662 = vrot.slane %v485, 7
          %v663 = vrot.slane %v486, 7
          %v664 = vrot.slane %v487, 7
          %v665 = vrot.slane %v488, 7
          %v666 = vrot.slane %v489, 7
          %v667 = vrot.slane %v490, 7
          %v668 = vrot.slane %v491, 7
          %v669 = vrot.slane %v492, 7
          %v670 = vrot.slane %v493, 7
          %v671 = vrot.slane %v494, 7
          %v672 = vrot.slane %v495, 7
          %v673 = vrot.slane %v496, 7
          %v674 = vrot.slane %v497, 7
          %vm675 = vcmp.lt.s32.totalorder %v395, 1
          %v676 = vsel %vm675, %v673, %v674
          %v677 = vsel %vm675, %v672, %v673
          %v678 = vsel %vm675, %v671, %v672
          %v679 = vsel %vm675, %v670, %v671
          %v680 = vsel %vm675, %v669, %v670
          %v681 = vsel %vm675, %v668, %v669
          %v682 = vsel %vm675, %v667, %v668
          %v683 = vsel %vm675, %v666, %v667
          %v684 = vsel %vm675, %v665, %v666
          %v685 = vsel %vm675, %v664, %v665
          %v686 = vsel %vm675, %v663, %v664
          %v687 = vsel %vm675, %v662, %v663
          %v688 = vsel %vm675, %v661, %v662
          %v689 = vsel %vm675, %v660, %v661
          %v690 = vsel %vm675, %v659, %v660
          %v691 = vsel %vm675, %v674, %v659
          %v692 = vlaneseq
          %v693 = vshrl.u32 %v692, 7
          %v694 = vsub.s32 2, %v693
          %v695 = vrot.slane %v500, %v694
          %v696 = vmul.f32 %v691, %v695
          %v697 = vmul.f32 %v690, %v695
          %v698 = vmul.f32 %v689, %v695
          %v699 = vmul.f32 %v688, %v695
          %v700 = vmul.f32 %v687, %v695
          %v701 = vmul.f32 %v686, %v695
          %v702 = vmul.f32 %v685, %v695
          %v703 = vmul.f32 %v684, %v695
          %v704 = vmul.f32 %v683, %v695
          %v705 = vmul.f32 %v682, %v695
          %v706 = vmul.f32 %v681, %v695
          %v707 = vmul.f32 %v680, %v695
          %v708 = vmul.f32 %v679, %v695
          %v709 = vmul.f32 %v678, %v695
          %v710 = vmul.f32 %v677, %v695
          %v711 = vmul.f32 %v676, %v695
          %v712 = vadd.f32 %v643, %v696
          %v713 = vadd.f32 %v644, %v697
          %v714 = vadd.f32 %v645, %v698
          %v715 = vadd.f32 %v646, %v699
          %v716 = vadd.f32 %v647, %v700
          %v717 = vadd.f32 %v648, %v701
          %v718 = vadd.f32 %v649, %v702
          %v719 = vadd.f32 %v650, %v703
          %v720 = vadd.f32 %v651, %v704
          %v721 = vadd.f32 %v652, %v705
          %v722 = vadd.f32 %v653, %v706
          %v723 = vadd.f32 %v654, %v707
          %v724 = vadd.f32 %v655, %v708
          %v725 = vadd.f32 %v656, %v709
          %v726 = vadd.f32 %v657, %v710
          %v727 = vadd.f32 %v658, %v711
          %v728 = vrot.slane %v482, 1
          %v729 = vrot.slane %v483, 1
          %v730 = vrot.slane %v484, 1
          %v731 = vrot.slane %v485, 1
          %v732 = vrot.slane %v486, 1
          %v733 = vrot.slane %v487, 1
          %v734 = vrot.slane %v488, 1
          %v735 = vrot.slane %v489, 1
          %v736 = vrot.slane %v490, 1
          %v737 = vrot.slane %v491, 1
          %v738 = vrot.slane %v492, 1
          %v739 = vrot.slane %v493, 1
          %v740 = vrot.slane %v494, 1
          %v741 = vrot.slane %v495, 1
          %v742 = vrot.slane %v496, 1
          %v743 = vrot.slane %v497, 1
          %vm744 = vcmp.lt.s32.totalorder %v395, 7
          %v745 = vsel %vm744, %v742, %v743
          %v746 = vsel %vm744, %v741, %v742
          %v747 = vsel %vm744, %v740, %v741
          %v748 = vsel %vm744, %v739, %v740
          %v749 = vsel %vm744, %v738, %v739
          %v750 = vsel %vm744, %v737, %v738
          %v751 = vsel %vm744, %v736, %v737
          %v752 = vsel %vm744, %v735, %v736
          %v753 = vsel %vm744, %v734, %v735
          %v754 = vsel %vm744, %v733, %v734
          %v755 = vsel %vm744, %v732, %v733
          %v756 = vsel %vm744, %v731, %v732
          %v757 = vsel %vm744, %v730, %v731
          %v758 = vsel %vm744, %v729, %v730
          %v759 = vsel %vm744, %v728, %v729
          %v760 = vsel %vm744, %v743, %v728
          %v761 = vlaneseq
          %v762 = vshrl.u32 %v761, 7
          %v763 = vsub.s32 4, %v762
          %v764 = vrot.slane %v500, %v763
          %v765 = vmul.f32 %v759, %v764
          %v766 = vmul.f32 %v758, %v764
          %v767 = vmul.f32 %v757, %v764
          %v768 = vmul.f32 %v756, %v764
          %v769 = vmul.f32 %v755, %v764
          %v770 = vmul.f32 %v754, %v764
          %v771 = vmul.f32 %v753, %v764
          %v772 = vmul.f32 %v752, %v764
          %v773 = vmul.f32 %v751, %v764
          %v774 = vmul.f32 %v750, %v764
          %v775 = vmul.f32 %v749, %v764
          %v776 = vmul.f32 %v748, %v764
          %v777 = vmul.f32 %v747, %v764
          %v778 = vmul.f32 %v746, %v764
          %v779 = vmul.f32 %v745, %v764
          %v780 = vmul.f32 %v760, %v764
          %v781 = vadd.f32 %v712, %v765
          %v782 = vadd.f32 %v713, %v766
          %v783 = vadd.f32 %v714, %v767
          %v784 = vadd.f32 %v715, %v768
          %v785 = vadd.f32 %v716, %v769
          %v786 = vadd.f32 %v717, %v770
          %v787 = vadd.f32 %v718, %v771
          %v788 = vadd.f32 %v719, %v772
          %v789 = vadd.f32 %v720, %v773
          %v790 = vadd.f32 %v721, %v774
          %v791 = vadd.f32 %v722, %v775
          %v792 = vadd.f32 %v723, %v776
          %v793 = vadd.f32 %v724, %v777
          %v794 = vadd.f32 %v725, %v778
          %v795 = vadd.f32 %v726, %v779
          %v796 = vadd.f32 %v727, %v780
          %v797 = vrot.slane %v482, 2
          %v798 = vrot.slane %v483, 2
          %v799 = vrot.slane %v484, 2
          %v800 = vrot.slane %v485, 2
          %v801 = vrot.slane %v486, 2
          %v802 = vrot.slane %v487, 2
          %v803 = vrot.slane %v488, 2
          %v804 = vrot.slane %v489, 2
          %v805 = vrot.slane %v490, 2
          %v806 = vrot.slane %v491, 2
          %v807 = vrot.slane %v492, 2
          %v808 = vrot.slane %v493, 2
          %v809 = vrot.slane %v494, 2
          %v810 = vrot.slane %v495, 2
          %v811 = vrot.slane %v496, 2
          %v812 = vrot.slane %v497, 2
          %vm813 = vcmp.lt.s32.totalorder %v395, 6
          %v814 = vsel %vm813, %v811, %v812
          %v815 = vsel %vm813, %v810, %v811
          %v816 = vsel %vm813, %v809, %v810
          %v817 = vsel %vm813, %v808, %v809
          %v818 = vsel %vm813, %v807, %v808
          %v819 = vsel %vm813, %v806, %v807
          %v820 = vsel %vm813, %v805, %v806
          %v821 = vsel %vm813, %v804, %v805
          %v822 = vsel %vm813, %v803, %v804
          %v823 = vsel %vm813, %v802, %v803
          %v824 = vsel %vm813, %v801, %v802
          %v825 = vsel %vm813, %v800, %v801
          %v826 = vsel %vm813, %v799, %v800
          %v827 = vsel %vm813, %v798, %v799
          %v828 = vsel %vm813, %v797, %v798
          %v829 = vsel %vm813, %v812, %v797
          %v830 = vlaneseq
          %v831 = vshrl.u32 %v830, 7
          %v832 = vsub.s32 5, %v831
          %v833 = vrot.slane %v500, %v832
          %v834 = vmul.f32 %v828, %v833
          %v835 = vmul.f32 %v827, %v833
          %v836 = vmul.f32 %v826, %v833
          %v837 = vmul.f32 %v825, %v833
          %v838 = vmul.f32 %v824, %v833
          %v839 = vmul.f32 %v823, %v833
          %v840 = vmul.f32 %v822, %v833
          %v841 = vmul.f32 %v821, %v833
          %v842 = vmul.f32 %v820, %v833
          %v843 = vmul.f32 %v819, %v833
          %v844 = vmul.f32 %v818, %v833
          %v845 = vmul.f32 %v817, %v833
          %v846 = vmul.f32 %v816, %v833
          %v847 = vmul.f32 %v815, %v833
          %v848 = vmul.f32 %v814, %v833
          %v849 = vmul.f32 %v829, %v833
          %v850 = vadd.f32 %v781, %v834
          %v851 = vadd.f32 %v782, %v835
          %v852 = vadd.f32 %v783, %v836
          %v853 = vadd.f32 %v784, %v837
          %v854 = vadd.f32 %v785, %v838
          %v855 = vadd.f32 %v786, %v839
          %v856 = vadd.f32 %v787, %v840
          %v857 = vadd.f32 %v788, %v841
          %v858 = vadd.f32 %v789, %v842
          %v859 = vadd.f32 %v790, %v843
          %v860 = vadd.f32 %v791, %v844
          %v861 = vadd.f32 %v792, %v845
          %v862 = vadd.f32 %v793, %v846
          %v863 = vadd.f32 %v794, %v847
          %v864 = vadd.f32 %v795, %v848
          %v865 = vadd.f32 %v796, %v849
          %v866 = vrot.slane %v482, 3
          %v867 = vrot.slane %v483, 3
          %v868 = vrot.slane %v484, 3
          %v869 = vrot.slane %v485, 3
          %v870 = vrot.slane %v486, 3
          %v871 = vrot.slane %v487, 3
          %v872 = vrot.slane %v488, 3
          %v873 = vrot.slane %v489, 3
          %v874 = vrot.slane %v490, 3
          %v875 = vrot.slane %v491, 3
          %v876 = vrot.slane %v492, 3
          %v877 = vrot.slane %v493, 3
          %v878 = vrot.slane %v494, 3
          %v879 = vrot.slane %v495, 3
          %v880 = vrot.slane %v496, 3
          %v881 = vrot.slane %v497, 3
          %vm882 = vcmp.lt.s32.totalorder %v395, 5
          %v883 = vsel %vm882, %v880, %v881
          %v884 = vsel %vm882, %v879, %v880
          %v885 = vsel %vm882, %v878, %v879
          %v886 = vsel %vm882, %v877, %v878
          %v887 = vsel %vm882, %v876, %v877
          %v888 = vsel %vm882, %v875, %v876
          %v889 = vsel %vm882, %v874, %v875
          %v890 = vsel %vm882, %v873, %v874
          %v891 = vsel %vm882, %v872, %v873
          %v892 = vsel %vm882, %v871, %v872
          %v893 = vsel %vm882, %v870, %v871
          %v894 = vsel %vm882, %v869, %v870
          %v895 = vsel %vm882, %v868, %v869
          %v896 = vsel %vm882, %v867, %v868
          %v897 = vsel %vm882, %v866, %v867
          %v898 = vsel %vm882, %v881, %v866
          %v899 = vlaneseq
          %v900 = vshrl.u32 %v899, 7
          %v901 = vsub.s32 6, %v900
          %v902 = vrot.slane %v500, %v901
          %v903 = vmul.f32 %v897, %v902
          %v904 = vmul.f32 %v896, %v902
          %v905 = vmul.f32 %v895, %v902
          %v906 = vmul.f32 %v894, %v902
          %v907 = vmul.f32 %v893, %v902
          %v908 = vmul.f32 %v892, %v902
          %v909 = vmul.f32 %v891, %v902
          %v910 = vmul.f32 %v890, %v902
          %v911 = vmul.f32 %v889, %v902
          %v912 = vmul.f32 %v888, %v902
          %v913 = vmul.f32 %v887, %v902
          %v914 = vmul.f32 %v886, %v902
          %v915 = vmul.f32 %v885, %v902
          %v916 = vmul.f32 %v884, %v902
          %v917 = vmul.f32 %v883, %v902
          %v918 = vmul.f32 %v898, %v902
          %v919 = vadd.f32 %v850, %v903
          %v920 = vadd.f32 %v851, %v904
          %v921 = vadd.f32 %v852, %v905
          %v922 = vadd.f32 %v853, %v906
          %v923 = vadd.f32 %v854, %v907
          %v924 = vadd.f32 %v855, %v908
          %v925 = vadd.f32 %v856, %v909
          %v926 = vadd.f32 %v857, %v910
          %v927 = vadd.f32 %v858, %v911
          %v928 = vadd.f32 %v859, %v912
          %v929 = vadd.f32 %v860, %v913
          %v930 = vadd.f32 %v861, %v914
          %v931 = vadd.f32 %v862, %v915
          %v932 = vadd.f32 %v863, %v916
          %v933 = vadd.f32 %v864, %v917
          %v934 = vadd.f32 %v865, %v918
          %s935 = scalar_lea.vmem %s3, %s477
          %v936 = vld [vmem:[%s935] sm:$0x1]
          %v938 = vlaneseq
          %v939 = vshrl.u32 %v938, 7
          %v940 = vsub.s32 0, %v939
          %v941 = vrot.slane %v936, %v940
          %v943 = vadd.f32 %v919, %v941
          %v944 = vadd.f32 %v920, %v941
          %v945 = vadd.f32 %v921, %v941
          %v946 = vadd.f32 %v922, %v941
          %v947 = vadd.f32 %v923, %v941
          %v948 = vadd.f32 %v924, %v941
          %v949 = vadd.f32 %v925, %v941
          %v950 = vadd.f32 %v926, %v941
          %v951 = vadd.f32 %v927, %v941
          %v952 = vadd.f32 %v928, %v941
          %v953 = vadd.f32 %v929, %v941
          %v954 = vadd.f32 %v930, %v941
          %v955 = vadd.f32 %v931, %v941
          %v956 = vadd.f32 %v932, %v941
          %v957 = vadd.f32 %v933, %v941
          %v958 = vadd.f32 %v934, %v941
          %vm959 = vcmask 261120
          %v960 = vsel %vm959, %v943, 0.0
          %961 = vadd.xlane.f32.xlu0 %v960
          %v962 = vpop.xlane.xlu0 %961
          %v963 = vsel %vm959, %v944, 0.0
          %964 = vadd.xlane.f32.xlu0 %v963
          %v965 = vpop.xlane.xlu0 %964
          %v966 = vsel %vm959, %v945, 0.0
          %967 = vadd.xlane.f32.xlu0 %v966
          %v968 = vpop.xlane.xlu0 %967
          %v969 = vsel %vm959, %v946, 0.0
          %970 = vadd.xlane.f32.xlu0 %v969
          %v971 = vpop.xlane.xlu0 %970
          %v972 = vsel %vm959, %v947, 0.0
          %973 = vadd.xlane.f32.xlu0 %v972
          %v974 = vpop.xlane.xlu0 %973
          %v975 = vsel %vm959, %v948, 0.0
          %976 = vadd.xlane.f32.xlu0 %v975
          %v977 = vpop.xlane.xlu0 %976
          %v978 = vsel %vm959, %v949, 0.0
          %979 = vadd.xlane.f32.xlu0 %v978
          %v980 = vpop.xlane.xlu0 %979
          %v981 = vsel %vm959, %v950, 0.0
          %982 = vadd.xlane.f32.xlu0 %v981
          %v983 = vpop.xlane.xlu0 %982
          %v984 = vsel %vm959, %v951, 0.0
          %985 = vadd.xlane.f32.xlu0 %v984
          %v986 = vpop.xlane.xlu0 %985
          %v987 = vsel %vm959, %v952, 0.0
          %988 = vadd.xlane.f32.xlu0 %v987
          %v989 = vpop.xlane.xlu0 %988
          %v990 = vsel %vm959, %v953, 0.0
          %991 = vadd.xlane.f32.xlu0 %v990
          %v992 = vpop.xlane.xlu0 %991
          %v993 = vsel %vm959, %v954, 0.0
          %994 = vadd.xlane.f32.xlu0 %v993
          %v995 = vpop.xlane.xlu0 %994
          %v996 = vsel %vm959, %v955, 0.0
          %997 = vadd.xlane.f32.xlu0 %v996
          %v998 = vpop.xlane.xlu0 %997
          %v999 = vsel %vm959, %v956, 0.0
          %1000 = vadd.xlane.f32.xlu0 %v999
          %v1001 = vpop.xlane.xlu0 %1000
          %v1002 = vsel %vm959, %v957, 0.0
          %1003 = vadd.xlane.f32.xlu0 %v1002
          %v1004 = vpop.xlane.xlu0 %1003
          %v1005 = vsel %vm959, %v958, 0.0
          %1006 = vadd.xlane.f32.xlu0 %v1005
          %v1007 = vpop.xlane.xlu0 %1006
          %v1008 = vrcp.pop 32.0
          %v1009 = vmul.f32 %v962, %v1008
          %v1010 = vmul.f32 %v965, %v1008
          %v1011 = vmul.f32 %v968, %v1008
          %v1012 = vmul.f32 %v971, %v1008
          %v1013 = vmul.f32 %v974, %v1008
          %v1014 = vmul.f32 %v977, %v1008
          %v1015 = vmul.f32 %v980, %v1008
          %v1016 = vmul.f32 %v983, %v1008
          %v1017 = vmul.f32 %v986, %v1008
          %v1018 = vmul.f32 %v989, %v1008
          %v1019 = vmul.f32 %v992, %v1008
          %v1020 = vmul.f32 %v995, %v1008
          %v1021 = vmul.f32 %v998, %v1008
          %v1022 = vmul.f32 %v1001, %v1008
          %v1023 = vmul.f32 %v1004, %v1008
          %v1024 = vmul.f32 %v1007, %v1008
          %v1025 = vsub.f32 %v943, %v1009
          %v1026 = vsub.f32 %v944, %v1010
          %v1027 = vsub.f32 %v945, %v1011
          %v1028 = vsub.f32 %v946, %v1012
          %v1029 = vsub.f32 %v947, %v1013
          %v1030 = vsub.f32 %v948, %v1014
          %v1031 = vsub.f32 %v949, %v1015
          %v1032 = vsub.f32 %v950, %v1016
          %v1033 = vsub.f32 %v951, %v1017
          %v1034 = vsub.f32 %v952, %v1018
          %v1035 = vsub.f32 %v953, %v1019
          %v1036 = vsub.f32 %v954, %v1020
          %v1037 = vsub.f32 %v955, %v1021
          %v1038 = vsub.f32 %v956, %v1022
          %v1039 = vsub.f32 %v957, %v1023
          %v1040 = vsub.f32 %v958, %v1024
          %v1041 = vmul.f32 %v1025, %v1025
          %v1042 = vmul.f32 %v1026, %v1026
          %v1043 = vmul.f32 %v1027, %v1027
          %v1044 = vmul.f32 %v1028, %v1028
          %v1045 = vmul.f32 %v1029, %v1029
          %v1046 = vmul.f32 %v1030, %v1030
          %v1047 = vmul.f32 %v1031, %v1031
          %v1048 = vmul.f32 %v1032, %v1032
          %v1049 = vmul.f32 %v1033, %v1033
          %v1050 = vmul.f32 %v1034, %v1034
          %v1051 = vmul.f32 %v1035, %v1035
          %v1052 = vmul.f32 %v1036, %v1036
          %v1053 = vmul.f32 %v1037, %v1037
          %v1054 = vmul.f32 %v1038, %v1038
          %v1055 = vmul.f32 %v1039, %v1039
          %v1056 = vmul.f32 %v1040, %v1040
          %v1057 = vsel %vm959, %v1041, 0.0
          %1058 = vadd.xlane.f32.xlu0 %v1057
          %v1059 = vpop.xlane.xlu0 %1058
          %v1060 = vsel %vm959, %v1042, 0.0
          %1061 = vadd.xlane.f32.xlu0 %v1060
          %v1062 = vpop.xlane.xlu0 %1061
          %v1063 = vsel %vm959, %v1043, 0.0
          %1064 = vadd.xlane.f32.xlu0 %v1063
          %v1065 = vpop.xlane.xlu0 %1064
          %v1066 = vsel %vm959, %v1044, 0.0
          %1067 = vadd.xlane.f32.xlu0 %v1066
          %v1068 = vpop.xlane.xlu0 %1067
          %v1069 = vsel %vm959, %v1045, 0.0
          %1070 = vadd.xlane.f32.xlu0 %v1069
          %v1071 = vpop.xlane.xlu0 %1070
          %v1072 = vsel %vm959, %v1046, 0.0
          %1073 = vadd.xlane.f32.xlu0 %v1072
          %v1074 = vpop.xlane.xlu0 %1073
          %v1075 = vsel %vm959, %v1047, 0.0
          %1076 = vadd.xlane.f32.xlu0 %v1075
          %v1077 = vpop.xlane.xlu0 %1076
          %v1078 = vsel %vm959, %v1048, 0.0
          %1079 = vadd.xlane.f32.xlu0 %v1078
          %v1080 = vpop.xlane.xlu0 %1079
          %v1081 = vsel %vm959, %v1049, 0.0
          %1082 = vadd.xlane.f32.xlu0 %v1081
          %v1083 = vpop.xlane.xlu0 %1082
          %v1084 = vsel %vm959, %v1050, 0.0
          %1085 = vadd.xlane.f32.xlu0 %v1084
          %v1086 = vpop.xlane.xlu0 %1085
          %v1087 = vsel %vm959, %v1051, 0.0
          %1088 = vadd.xlane.f32.xlu0 %v1087
          %v1089 = vpop.xlane.xlu0 %1088
          %v1090 = vsel %vm959, %v1052, 0.0
          %1091 = vadd.xlane.f32.xlu0 %v1090
          %v1092 = vpop.xlane.xlu0 %1091
          %v1093 = vsel %vm959, %v1053, 0.0
          %1094 = vadd.xlane.f32.xlu0 %v1093
          %v1095 = vpop.xlane.xlu0 %1094
          %v1096 = vsel %vm959, %v1054, 0.0
          %1097 = vadd.xlane.f32.xlu0 %v1096
          %v1098 = vpop.xlane.xlu0 %1097
          %v1099 = vsel %vm959, %v1055, 0.0
          %1100 = vadd.xlane.f32.xlu0 %v1099
          %v1101 = vpop.xlane.xlu0 %1100
          %v1102 = vsel %vm959, %v1056, 0.0
          %1103 = vadd.xlane.f32.xlu0 %v1102
          %v1104 = vpop.xlane.xlu0 %1103
          %v1105 = vmul.f32 %v1059, %v1008
          %v1106 = vmul.f32 %v1062, %v1008
          %v1107 = vmul.f32 %v1065, %v1008
          %v1108 = vmul.f32 %v1068, %v1008
          %v1109 = vmul.f32 %v1071, %v1008
          %v1110 = vmul.f32 %v1074, %v1008
          %v1111 = vmul.f32 %v1077, %v1008
          %v1112 = vmul.f32 %v1080, %v1008
          %v1113 = vmul.f32 %v1083, %v1008
          %v1114 = vmul.f32 %v1086, %v1008
          %v1115 = vmul.f32 %v1089, %v1008
          %v1116 = vmul.f32 %v1092, %v1008
          %v1117 = vmul.f32 %v1095, %v1008
          %v1118 = vmul.f32 %v1098, %v1008
          %v1119 = vmul.f32 %v1101, %v1008
          %v1120 = vmul.f32 %v1104, %v1008
          %v1121 = vadd.f32 %v1105, 1e-05
          %v1122 = vadd.f32 %v1106, 1e-05
          %v1123 = vadd.f32 %v1107, 1e-05
          %v1124 = vadd.f32 %v1108, 1e-05
          %v1125 = vadd.f32 %v1109, 1e-05
          %v1126 = vadd.f32 %v1110, 1e-05
          %v1127 = vadd.f32 %v1111, 1e-05
          %v1128 = vadd.f32 %v1112, 1e-05
          %v1129 = vadd.f32 %v1113, 1e-05
          %v1130 = vadd.f32 %v1114, 1e-05
          %v1131 = vadd.f32 %v1115, 1e-05
          %v1132 = vadd.f32 %v1116, 1e-05
          %v1133 = vadd.f32 %v1117, 1e-05
          %v1134 = vadd.f32 %v1118, 1e-05
          %v1135 = vadd.f32 %v1119, 1e-05
          %v1136 = vadd.f32 %v1120, 1e-05
          %v1137 = vrsqrt.pop %v1121
          %v1138 = vrsqrt.pop %v1122
          %v1139 = vrsqrt.pop %v1123
          %v1140 = vrsqrt.pop %v1124
          %v1141 = vrsqrt.pop %v1125
          %v1142 = vrsqrt.pop %v1126
          %v1143 = vrsqrt.pop %v1127
          %v1144 = vrsqrt.pop %v1128
          %v1145 = vrsqrt.pop %v1129
          %v1146 = vrsqrt.pop %v1130
          %v1147 = vrsqrt.pop %v1131
          %v1148 = vrsqrt.pop %v1132
          %v1149 = vrsqrt.pop %v1133
          %v1150 = vrsqrt.pop %v1134
          %v1151 = vrsqrt.pop %v1135
          %v1152 = vrsqrt.pop %v1136
          %v1153 = vmul.f32 %v1025, %v1137
          %v1154 = vmul.f32 %v1026, %v1138
          %v1155 = vmul.f32 %v1027, %v1139
          %v1156 = vmul.f32 %v1028, %v1140
          %v1157 = vmul.f32 %v1029, %v1141
          %v1158 = vmul.f32 %v1030, %v1142
          %v1159 = vmul.f32 %v1031, %v1143
          %v1160 = vmul.f32 %v1032, %v1144
          %v1161 = vmul.f32 %v1033, %v1145
          %v1162 = vmul.f32 %v1034, %v1146
          %v1163 = vmul.f32 %v1035, %v1147
          %v1164 = vmul.f32 %v1036, %v1148
          %v1165 = vmul.f32 %v1037, %v1149
          %v1166 = vmul.f32 %v1038, %v1150
          %v1167 = vmul.f32 %v1039, %v1151
          %v1168 = vmul.f32 %v1040, %v1152
          %s1169 = scalar_lea.vmem %s4, %s477
          %v1170 = vld [vmem:[%s1169] sm:$0x1]
          %v1172 = vlaneseq
          %v1173 = vshrl.u32 %v1172, 7
          %v1174 = vsub.s32 0, %v1173
          %v1175 = vrot.slane %v1170, %v1174
          %v1177 = vmul.f32 %v1153, %v1175
          %v1178 = vmul.f32 %v1154, %v1175
          %v1179 = vmul.f32 %v1155, %v1175
          %v1180 = vmul.f32 %v1156, %v1175
          %v1181 = vmul.f32 %v1157, %v1175
          %v1182 = vmul.f32 %v1158, %v1175
          %v1183 = vmul.f32 %v1159, %v1175
          %v1184 = vmul.f32 %v1160, %v1175
          %v1185 = vmul.f32 %v1161, %v1175
          %v1186 = vmul.f32 %v1162, %v1175
          %v1187 = vmul.f32 %v1163, %v1175
          %v1188 = vmul.f32 %v1164, %v1175
          %v1189 = vmul.f32 %v1165, %v1175
          %v1190 = vmul.f32 %v1166, %v1175
          %v1191 = vmul.f32 %v1167, %v1175
          %v1192 = vmul.f32 %v1168, %v1175
          %s1193 = scalar_lea.vmem %s5, %s477
          %v1194 = vld [vmem:[%s1193] sm:$0x1]
          %v1196 = vlaneseq
          %v1197 = vshrl.u32 %v1196, 7
          %v1198 = vsub.s32 0, %v1197
          %v1199 = vrot.slane %v1194, %v1198
          %v1201 = vadd.f32 %v1177, %v1199
          %v1202 = vadd.f32 %v1178, %v1199
          %v1203 = vadd.f32 %v1179, %v1199
          %v1204 = vadd.f32 %v1180, %v1199
          %v1205 = vadd.f32 %v1181, %v1199
          %v1206 = vadd.f32 %v1182, %v1199
          %v1207 = vadd.f32 %v1183, %v1199
          %v1208 = vadd.f32 %v1184, %v1199
          %v1209 = vadd.f32 %v1185, %v1199
          %v1210 = vadd.f32 %v1186, %v1199
          %v1211 = vadd.f32 %v1187, %v1199
          %v1212 = vadd.f32 %v1188, %v1199
          %v1213 = vadd.f32 %v1189, %v1199
          %v1214 = vadd.f32 %v1190, %v1199
          %v1215 = vadd.f32 %v1191, %v1199
          %v1216 = vadd.f32 %v1192, %v1199
          %v1217 = vpack.c.bf16 %v1202, %v1201
          %v1218 = vpack.c.bf16 %v1204, %v1203
          %v1219 = vpack.c.bf16 %v1206, %v1205
          %v1220 = vpack.c.bf16 %v1208, %v1207
          %v1221 = vpack.c.bf16 %v1210, %v1209
          %v1222 = vpack.c.bf16 %v1212, %v1211
          %v1223 = vpack.c.bf16 %v1214, %v1213
          %v1224 = vpack.c.bf16 %v1216, %v1215
          %s1225 = smul.u32 %s477, 4
          %s1226 = smul.addr %s1225, 4
          %s1227 = scalar_lea.vmem %s6, %s1226
          %v1228 = vld [vmem:[%s1227] sm:$0xf]
          %v1229 = vld [vmem:[%s1227 + $0x4] sm:$0xf]
          %v1230 = vld [vmem:[%s1227 + $0x8] sm:$0xf]
          %v1231 = vld [vmem:[%s1227 + $0xc] sm:$0xf]
          %s1232 = scalar_lea.vmem %s7, %s477
          %v1233 = vld [vmem:[%s1232] sm:$0x1]
          %v1235 = vlaneseq
          %v1236 = vshrl.u32 %v1235, 7
          %v1237 = vsub.s32 0, %v1236
          %v1238 = vrot.slane %v1233, %v1237
          %v1244 = vunpack.c.l.b16 %v1228
          %v1245 = vunpack.c.l.b16 %v1229
          %v1246 = vunpack.c.l.b16 %v1230
          %v1247 = vunpack.c.l.b16 %v1231
          %v1248 = vpack.c.b16 %v1245, %v1244
          %v1249 = vpack.c.b16 %v1247, %v1246
          %v1253 = vsel %vm959, %v1217, 0
          %v1256 = vsel %vm959, %v1218, 0
          %v1259 = vsel %vm959, %v1219, 0
          %v1262 = vsel %vm959, %v1220, 0
          %v1265 = vsel %vm959, %v1221, 0
          %v1268 = vsel %vm959, %v1222, 0
          %v1271 = vsel %vm959, %v1223, 0
          %v1274 = vsel %vm959, %v1224, 0
          %1276 = vmatprep.subr.bf16.mxu0 0
          %1277 = vmatpush1.bf16.msra.mxu0 %v1248
          %1278 = vmatprep.subr.bf16.mxu0 0
          %1279 = vmatpush1.bf16.msra.mxu0 %v1249
          %1280 = vmatprep.subr.bf16.mxu0 0
          %1281 = vmatpush1.bf16.msra.mxu0 0
          %1282 = vmatprep.subr.bf16.mxu0 0
          %1283 = vmatpush1.bf16.msra.mxu0 0
          %1284 = vmatprep.subr.bf16.mxu0 0
          %1285 = vmatpush1.bf16.msra.mxu0 0
          %1286 = vmatprep.subr.bf16.mxu0 0
          %1287 = vmatpush1.bf16.msra.mxu0 0
          %1288 = vmatprep.subr.bf16.mxu0 0
          %1289 = vmatpush1.bf16.msra.mxu0 0
          %1290 = vmatprep.subr.bf16.mxu0 0
          %1291 = vmatpush1.bf16.msra.mxu0 0
          %1292 = vmatprep.subr.bf16.mxu0 0
          %1293 = vmatpush1.bf16.msra.mxu0 0
          %1294 = vmatprep.subr.bf16.mxu0 0
          %1295 = vmatpush1.bf16.msra.mxu0 0
          %1296 = vmatprep.subr.bf16.mxu0 0
          %1297 = vmatpush1.bf16.msra.mxu0 0
          %1298 = vmatprep.subr.bf16.mxu0 0
          %1299 = vmatpush1.bf16.msra.mxu0 0
          %1300 = vmatprep.subr.bf16.mxu0 0
          %1301 = vmatpush1.bf16.msra.mxu0 0
          %1302 = vmatprep.subr.bf16.mxu0 0
          %1303 = vmatpush1.bf16.msra.mxu0 0
          %1304 = vmatprep.subr.bf16.mxu0 0
          %1305 = vmatpush1.bf16.msra.mxu0 0
          %1306 = vmatprep.subr.bf16.mxu0 0
          %1307 = vmatpush1.bf16.msra.mxu0 0
          %1308 = vmatprep.mubr.bf16.mxu0 0
          %1309 = vmatmul.mubr.bf16.gmra.mrb[0].mxu0 %v1253
          %v1310 = vpop.f32.mrb[0].mxu0
          %v1311 = vadd.f32 %v1238, %v1310
          %v1312 = vpop.f32.mrb[0].mxu0
          %v1313 = vpop.f32.mrb[0].mxu0
          %v1314 = vadd.f32 %v1238, %v1313
          %v1315 = vpop.f32.mrb[0].mxu0
          %1316 = vmatprep.mubr.bf16.mxu0 0
          %1317 = vmatmul.mubr.bf16.gmra.mrb[0].mxu0 %v1256
          %v1318 = vpop.f32.mrb[0].mxu0
          %v1319 = vadd.f32 %v1238, %v1318
          %v1320 = vpop.f32.mrb[0].mxu0
          %v1321 = vpop.f32.mrb[0].mxu0
          %v1322 = vadd.f32 %v1238, %v1321
          %v1323 = vpop.f32.mrb[0].mxu0
          %1324 = vmatprep.mubr.bf16.mxu0 0
          %1325 = vmatmul.mubr.bf16.gmra.mrb[0].mxu0 %v1259
          %v1326 = vpop.f32.mrb[0].mxu0
          %v1327 = vadd.f32 %v1238, %v1326
          %v1328 = vpop.f32.mrb[0].mxu0
          %v1329 = vpop.f32.mrb[0].mxu0
          %v1330 = vadd.f32 %v1238, %v1329
          %v1331 = vpop.f32.mrb[0].mxu0
          %1332 = vmatprep.mubr.bf16.mxu0 0
          %1333 = vmatmul.mubr.bf16.gmra.mrb[0].mxu0 %v1262
          %v1334 = vpop.f32.mrb[0].mxu0
          %v1335 = vadd.f32 %v1238, %v1334
          %v1336 = vpop.f32.mrb[0].mxu0
          %v1337 = vpop.f32.mrb[0].mxu0
          %v1338 = vadd.f32 %v1238, %v1337
          %v1339 = vpop.f32.mrb[0].mxu0
          %1340 = vmatprep.mubr.bf16.mxu0 0
          %1341 = vmatmul.mubr.bf16.gmra.mrb[0].mxu0 %v1265
          %v1342 = vpop.f32.mrb[0].mxu0
          %v1343 = vadd.f32 %v1238, %v1342
          %v1344 = vpop.f32.mrb[0].mxu0
          %v1345 = vpop.f32.mrb[0].mxu0
          %v1346 = vadd.f32 %v1238, %v1345
          %v1347 = vpop.f32.mrb[0].mxu0
          %1348 = vmatprep.mubr.bf16.mxu0 0
          %1349 = vmatmul.mubr.bf16.gmra.mrb[0].mxu0 %v1268
          %v1350 = vpop.f32.mrb[0].mxu0
          %v1351 = vadd.f32 %v1238, %v1350
          %v1352 = vpop.f32.mrb[0].mxu0
          %v1353 = vpop.f32.mrb[0].mxu0
          %v1354 = vadd.f32 %v1238, %v1353
          %v1355 = vpop.f32.mrb[0].mxu0
          %1356 = vmatprep.mubr.bf16.mxu0 0
          %1357 = vmatmul.mubr.bf16.gmra.mrb[0].mxu0 %v1271
          %v1358 = vpop.f32.mrb[0].mxu0
          %v1359 = vadd.f32 %v1238, %v1358
          %v1360 = vpop.f32.mrb[0].mxu0
          %v1361 = vpop.f32.mrb[0].mxu0
          %v1362 = vadd.f32 %v1238, %v1361
          %v1363 = vpop.f32.mrb[0].mxu0
          %1364 = vmatprep.mubr.bf16.mxu0 0
          %1365 = vmatmul.mubr.bf16.gmra.mrb[0].mxu0 %v1274
          %v1366 = vpop.f32.mrb[0].mxu0
          %v1367 = vadd.f32 %v1238, %v1366
          %v1368 = vpop.f32.mrb[0].mxu0
          %v1369 = vpop.f32.mrb[0].mxu0
          %v1370 = vadd.f32 %v1238, %v1369
          %v1371 = vpop.f32.mrb[0].mxu0
          %1372 = vdwg.mxu0
          %v1373 = vmul.f32 %v1311, 0.044715
          %v1374 = vmul.f32 %v1314, 0.044715
          %v1375 = vmul.f32 %v1319, 0.044715
          %v1376 = vmul.f32 %v1322, 0.044715
          %v1377 = vmul.f32 %v1327, 0.044715
          %v1378 = vmul.f32 %v1330, 0.044715
          %v1379 = vmul.f32 %v1335, 0.044715
          %v1380 = vmul.f32 %v1338, 0.044715
          %v1381 = vmul.f32 %v1343, 0.044715
          %v1382 = vmul.f32 %v1346, 0.044715
          %v1383 = vmul.f32 %v1351, 0.044715
          %v1384 = vmul.f32 %v1354, 0.044715
          %v1385 = vmul.f32 %v1359, 0.044715
          %v1386 = vmul.f32 %v1362, 0.044715
          %v1387 = vmul.f32 %v1367, 0.044715
          %v1388 = vmul.f32 %v1370, 0.044715
          %v1389 = vmul.f32 %v1373, %v1311
          %v1390 = vmul.f32 %v1374, %v1314
          %v1391 = vmul.f32 %v1375, %v1319
          %v1392 = vmul.f32 %v1376, %v1322
          %v1393 = vmul.f32 %v1377, %v1327
          %v1394 = vmul.f32 %v1378, %v1330
          %v1395 = vmul.f32 %v1379, %v1335
          %v1396 = vmul.f32 %v1380, %v1338
          %v1397 = vmul.f32 %v1381, %v1343
          %v1398 = vmul.f32 %v1382, %v1346
          %v1399 = vmul.f32 %v1383, %v1351
          %v1400 = vmul.f32 %v1384, %v1354
          %v1401 = vmul.f32 %v1385, %v1359
          %v1402 = vmul.f32 %v1386, %v1362
          %v1403 = vmul.f32 %v1387, %v1367
          %v1404 = vmul.f32 %v1388, %v1370
          %v1405 = vmul.f32 %v1389, %v1311
          %v1406 = vmul.f32 %v1390, %v1314
          %v1407 = vmul.f32 %v1391, %v1319
          %v1408 = vmul.f32 %v1392, %v1322
          %v1409 = vmul.f32 %v1393, %v1327
          %v1410 = vmul.f32 %v1394, %v1330
          %v1411 = vmul.f32 %v1395, %v1335
          %v1412 = vmul.f32 %v1396, %v1338
          %v1413 = vmul.f32 %v1397, %v1343
          %v1414 = vmul.f32 %v1398, %v1346
          %v1415 = vmul.f32 %v1399, %v1351
          %v1416 = vmul.f32 %v1400, %v1354
          %v1417 = vmul.f32 %v1401, %v1359
          %v1418 = vmul.f32 %v1402, %v1362
          %v1419 = vmul.f32 %v1403, %v1367
          %v1420 = vmul.f32 %v1404, %v1370
          %v1421 = vadd.f32 %v1311, %v1405
          %v1422 = vadd.f32 %v1314, %v1406
          %v1423 = vadd.f32 %v1319, %v1407
          %v1424 = vadd.f32 %v1322, %v1408
          %v1425 = vadd.f32 %v1327, %v1409
          %v1426 = vadd.f32 %v1330, %v1410
          %v1427 = vadd.f32 %v1335, %v1411
          %v1428 = vadd.f32 %v1338, %v1412
          %v1429 = vadd.f32 %v1343, %v1413
          %v1430 = vadd.f32 %v1346, %v1414
          %v1431 = vadd.f32 %v1351, %v1415
          %v1432 = vadd.f32 %v1354, %v1416
          %v1433 = vadd.f32 %v1359, %v1417
          %v1434 = vadd.f32 %v1362, %v1418
          %v1435 = vadd.f32 %v1367, %v1419
          %v1436 = vadd.f32 %v1370, %v1420
          %v1437 = vmul.f32 %v1421, 0.7978846
          %v1438 = vmul.f32 %v1422, 0.7978846
          %v1439 = vmul.f32 %v1423, 0.7978846
          %v1440 = vmul.f32 %v1424, 0.7978846
          %v1441 = vmul.f32 %v1425, 0.7978846
          %v1442 = vmul.f32 %v1426, 0.7978846
          %v1443 = vmul.f32 %v1427, 0.7978846
          %v1444 = vmul.f32 %v1428, 0.7978846
          %v1445 = vmul.f32 %v1429, 0.7978846
          %v1446 = vmul.f32 %v1430, 0.7978846
          %v1447 = vmul.f32 %v1431, 0.7978846
          %v1448 = vmul.f32 %v1432, 0.7978846
          %v1449 = vmul.f32 %v1433, 0.7978846
          %v1450 = vmul.f32 %v1434, 0.7978846
          %v1451 = vmul.f32 %v1435, 0.7978846
          %v1452 = vmul.f32 %v1436, 0.7978846
          %v1453 = vmul.f32 %v1311, 0.5
          %v1454 = vmul.f32 %v1314, 0.5
          %v1455 = vmul.f32 %v1319, 0.5
          %v1456 = vmul.f32 %v1322, 0.5
          %v1457 = vmul.f32 %v1327, 0.5
          %v1458 = vmul.f32 %v1330, 0.5
          %v1459 = vmul.f32 %v1335, 0.5
          %v1460 = vmul.f32 %v1338, 0.5
          %v1461 = vmul.f32 %v1343, 0.5
          %v1462 = vmul.f32 %v1346, 0.5
          %v1463 = vmul.f32 %v1351, 0.5
          %v1464 = vmul.f32 %v1354, 0.5
          %v1465 = vmul.f32 %v1359, 0.5
          %v1466 = vmul.f32 %v1362, 0.5
          %v1467 = vmul.f32 %v1367, 0.5
          %v1468 = vmul.f32 %v1370, 0.5
          %v1469 = vtanh.pop %v1437
          %v1470 = vtanh.pop %v1438
          %v1471 = vtanh.pop %v1439
          %v1472 = vtanh.pop %v1440
          %v1473 = vtanh.pop %v1441
          %v1474 = vtanh.pop %v1442
          %v1475 = vtanh.pop %v1443
          %v1476 = vtanh.pop %v1444
          %v1477 = vtanh.pop %v1445
          %v1478 = vtanh.pop %v1446
          %v1479 = vtanh.pop %v1447
          %v1480 = vtanh.pop %v1448
          %v1481 = vtanh.pop %v1449
          %v1482 = vtanh.pop %v1450
          %v1483 = vtanh.pop %v1451
          %v1484 = vtanh.pop %v1452
          %v1485 = vadd.f32 %v1469, 1.0
          %v1486 = vadd.f32 %v1470, 1.0
          %v1487 = vadd.f32 %v1471, 1.0
          %v1488 = vadd.f32 %v1472, 1.0
          %v1489 = vadd.f32 %v1473, 1.0
          %v1490 = vadd.f32 %v1474, 1.0
          %v1491 = vadd.f32 %v1475, 1.0
          %v1492 = vadd.f32 %v1476, 1.0
          %v1493 = vadd.f32 %v1477, 1.0
          %v1494 = vadd.f32 %v1478, 1.0
          %v1495 = vadd.f32 %v1479, 1.0
          %v1496 = vadd.f32 %v1480, 1.0
          %v1497 = vadd.f32 %v1481, 1.0
          %v1498 = vadd.f32 %v1482, 1.0
          %v1499 = vadd.f32 %v1483, 1.0
          %v1500 = vadd.f32 %v1484, 1.0
          %v1501 = vmul.f32 %v1453, %v1485
          %v1502 = vmul.f32 %v1454, %v1486
          %v1503 = vmul.f32 %v1455, %v1487
          %v1504 = vmul.f32 %v1456, %v1488
          %v1505 = vmul.f32 %v1457, %v1489
          %v1506 = vmul.f32 %v1458, %v1490
          %v1507 = vmul.f32 %v1459, %v1491
          %v1508 = vmul.f32 %v1460, %v1492
          %v1509 = vmul.f32 %v1461, %v1493
          %v1510 = vmul.f32 %v1462, %v1494
          %v1511 = vmul.f32 %v1463, %v1495
          %v1512 = vmul.f32 %v1464, %v1496
          %v1513 = vmul.f32 %v1465, %v1497
          %v1514 = vmul.f32 %v1466, %v1498
          %v1515 = vmul.f32 %v1467, %v1499
          %v1516 = vmul.f32 %v1468, %v1500
          %v1517 = vpack.c.bf16 %v1502, %v1501
          %v1518 = vpack.c.bf16 %v1504, %v1503
          %v1519 = vpack.c.bf16 %v1506, %v1505
          %v1520 = vpack.c.bf16 %v1508, %v1507
          %v1521 = vpack.c.bf16 %v1510, %v1509
          %v1522 = vpack.c.bf16 %v1512, %v1511
          %v1523 = vpack.c.bf16 %v1514, %v1513
          %v1524 = vpack.c.bf16 %v1516, %v1515
          %s1525 = smul.u32 %s477, 16
          %s1526 = smul.addr %s1525, 4
          %s1527 = scalar_lea.vmem %s8, %s1526
          %v1528 = vld [vmem:[%s1527] sm:$0xf]
          %v1529 = vld [vmem:[%s1527 + $0x4] sm:$0xf]
          %v1530 = vld [vmem:[%s1527 + $0x8] sm:$0xf]
          %v1531 = vld [vmem:[%s1527 + $0xc] sm:$0xf]
          %v1532 = vld [vmem:[%s1527 + $0x10] sm:$0xf]
          %v1533 = vld [vmem:[%s1527 + $0x14] sm:$0xf]
          %v1534 = vld [vmem:[%s1527 + $0x18] sm:$0xf]
          %v1535 = vld [vmem:[%s1527 + $0x1c] sm:$0xf]
          %v1536 = vld [vmem:[%s1527 + $0x20] sm:$0xf]
          %v1537 = vld [vmem:[%s1527 + $0x24] sm:$0xf]
          %v1538 = vld [vmem:[%s1527 + $0x28] sm:$0xf]
          %v1539 = vld [vmem:[%s1527 + $0x2c] sm:$0xf]
          %v1540 = vld [vmem:[%s1527 + $0x30] sm:$0xf]
          %v1541 = vld [vmem:[%s1527 + $0x34] sm:$0xf]
          %v1542 = vld [vmem:[%s1527 + $0x38] sm:$0xf]
          %v1543 = vld [vmem:[%s1527 + $0x3c] sm:$0xf]
          %s1544 = scalar_lea.vmem %s9, %s477
          %v1545 = vld [vmem:[%s1544] sm:$0x1]
          %v1547 = vlaneseq
          %v1548 = vshrl.u32 %v1547, 7
          %v1549 = vsub.s32 0, %v1548
          %v1550 = vrot.slane %v1545, %v1549
          %v1568 = vunpack.c.l.b16 %v1528
          %v1569 = vunpack.c.l.b16 %v1529
          %v1570 = vunpack.c.l.b16 %v1530
          %v1571 = vunpack.c.l.b16 %v1531
          %v1572 = vunpack.c.l.b16 %v1532
          %v1573 = vunpack.c.l.b16 %v1533
          %v1574 = vunpack.c.l.b16 %v1534
          %v1575 = vunpack.c.l.b16 %v1535
          %v1576 = vunpack.c.l.b16 %v1536
          %v1577 = vunpack.c.l.b16 %v1537
          %v1578 = vunpack.c.l.b16 %v1538
          %v1579 = vunpack.c.l.b16 %v1539
          %v1580 = vunpack.c.l.b16 %v1540
          %v1581 = vunpack.c.l.b16 %v1541
          %v1582 = vunpack.c.l.b16 %v1542
          %v1583 = vunpack.c.l.b16 %v1543
          %v1584 = vpack.c.b16 %v1569, %v1568
          %v1585 = vpack.c.b16 %v1571, %v1570
          %v1586 = vpack.c.b16 %v1573, %v1572
          %v1587 = vpack.c.b16 %v1575, %v1574
          %v1588 = vpack.c.b16 %v1577, %v1576
          %v1589 = vpack.c.b16 %v1579, %v1578
          %v1590 = vpack.c.b16 %v1581, %v1580
          %v1591 = vpack.c.b16 %v1583, %v1582
          %1600 = vmatprep.subr.bf16.mxu0 0
          %1601 = vmatpush1.bf16.msra.mxu0 %v1584
          %1602 = vmatprep.subr.bf16.mxu0 0
          %1603 = vmatpush1.bf16.msra.mxu0 %v1585
          %1604 = vmatprep.subr.bf16.mxu0 0
          %1605 = vmatpush1.bf16.msra.mxu0 %v1586
          %1606 = vmatprep.subr.bf16.mxu0 0
          %1607 = vmatpush1.bf16.msra.mxu0 %v1587
          %1608 = vmatprep.subr.bf16.mxu0 0
          %1609 = vmatpush1.bf16.msra.mxu0 %v1588
          %1610 = vmatprep.subr.bf16.mxu0 0
          %1611 = vmatpush1.bf16.msra.mxu0 %v1589
          %1612 = vmatprep.subr.bf16.mxu0 0
          %1613 = vmatpush1.bf16.msra.mxu0 %v1590
          %1614 = vmatprep.subr.bf16.mxu0 0
          %1615 = vmatpush1.bf16.msra.mxu0 %v1591
          %1616 = vmatprep.subr.bf16.mxu0 0
          %1617 = vmatpush1.bf16.msra.mxu0 0
          %1618 = vmatprep.subr.bf16.mxu0 0
          %1619 = vmatpush1.bf16.msra.mxu0 0
          %1620 = vmatprep.subr.bf16.mxu0 0
          %1621 = vmatpush1.bf16.msra.mxu0 0
          %1622 = vmatprep.subr.bf16.mxu0 0
          %1623 = vmatpush1.bf16.msra.mxu0 0
          %1624 = vmatprep.subr.bf16.mxu0 0
          %1625 = vmatpush1.bf16.msra.mxu0 0
          %1626 = vmatprep.subr.bf16.mxu0 0
          %1627 = vmatpush1.bf16.msra.mxu0 0
          %1628 = vmatprep.subr.bf16.mxu0 0
          %1629 = vmatpush1.bf16.msra.mxu0 0
          %1630 = vmatprep.subr.bf16.mxu0 0
          %1631 = vmatpush1.bf16.msra.mxu0 0
          %1632 = vmatprep.mubr.bf16.mxu0 0
          %1633 = vmatmul.mubr.bf16.gmra.mrb[0].mxu0 %v1517
          %v1634 = vpop.f32.mrb[0].mxu0
          %v1635 = vadd.f32 %v1550, %v1634
          %v1636 = vpop.f32.mrb[0].mxu0
          %v1637 = vpop.f32.mrb[0].mxu0
          %v1638 = vadd.f32 %v1550, %v1637
          %v1639 = vpop.f32.mrb[0].mxu0
          %1640 = vmatprep.mubr.bf16.mxu0 0
          %1641 = vmatmul.mubr.bf16.gmra.mrb[0].mxu0 %v1518
          %v1642 = vpop.f32.mrb[0].mxu0
          %v1643 = vadd.f32 %v1550, %v1642
          %v1644 = vpop.f32.mrb[0].mxu0
          %v1645 = vpop.f32.mrb[0].mxu0
          %v1646 = vadd.f32 %v1550, %v1645
          %v1647 = vpop.f32.mrb[0].mxu0
          %1648 = vmatprep.mubr.bf16.mxu0 0
          %1649 = vmatmul.mubr.bf16.gmra.mrb[0].mxu0 %v1519
          %v1650 = vpop.f32.mrb[0].mxu0
          %v1651 = vadd.f32 %v1550, %v1650
          %v1652 = vpop.f32.mrb[0].mxu0
          %v1653 = vpop.f32.mrb[0].mxu0
          %v1654 = vadd.f32 %v1550, %v1653
          %v1655 = vpop.f32.mrb[0].mxu0
          %1656 = vmatprep.mubr.bf16.mxu0 0
          %1657 = vmatmul.mubr.bf16.gmra.mrb[0].mxu0 %v1520
          %v1658 = vpop.f32.mrb[0].mxu0
          %v1659 = vadd.f32 %v1550, %v1658
          %v1660 = vpop.f32.mrb[0].mxu0
          %v1661 = vpop.f32.mrb[0].mxu0
          %v1662 = vadd.f32 %v1550, %v1661
          %v1663 = vpop.f32.mrb[0].mxu0
          %1664 = vmatprep.mubr.bf16.mxu0 0
          %1665 = vmatmul.mubr.bf16.gmra.mrb[0].mxu0 %v1521
          %v1666 = vpop.f32.mrb[0].mxu0
          %v1667 = vadd.f32 %v1550, %v1666
          %v1668 = vpop.f32.mrb[0].mxu0
          %v1669 = vpop.f32.mrb[0].mxu0
          %v1670 = vadd.f32 %v1550, %v1669
          %v1671 = vpop.f32.mrb[0].mxu0
          %1672 = vmatprep.mubr.bf16.mxu0 0
          %1673 = vmatmul.mubr.bf16.gmra.mrb[0].mxu0 %v1522
          %v1674 = vpop.f32.mrb[0].mxu0
          %v1675 = vadd.f32 %v1550, %v1674
          %v1676 = vpop.f32.mrb[0].mxu0
          %v1677 = vpop.f32.mrb[0].mxu0
          %v1678 = vadd.f32 %v1550, %v1677
          %v1679 = vpop.f32.mrb[0].mxu0
          %1680 = vmatprep.mubr.bf16.mxu0 0
          %1681 = vmatmul.mubr.bf16.gmra.mrb[0].mxu0 %v1523
          %v1682 = vpop.f32.mrb[0].mxu0
          %v1683 = vadd.f32 %v1550, %v1682
          %v1684 = vpop.f32.mrb[0].mxu0
          %v1685 = vpop.f32.mrb[0].mxu0
          %v1686 = vadd.f32 %v1550, %v1685
          %v1687 = vpop.f32.mrb[0].mxu0
          %1688 = vmatprep.mubr.bf16.mxu0 0
          %1689 = vmatmul.mubr.bf16.gmra.mrb[0].mxu0 %v1524
          %v1690 = vpop.f32.mrb[0].mxu0
          %v1691 = vadd.f32 %v1550, %v1690
          %v1692 = vpop.f32.mrb[0].mxu0
          %v1693 = vpop.f32.mrb[0].mxu0
          %v1694 = vadd.f32 %v1550, %v1693
          %v1695 = vpop.f32.mrb[0].mxu0
          %1696 = vdwg.mxu0
          %v1697 = vadd.f32 %v482, %v1635
          %v1698 = vadd.f32 %v483, %v1638
          %v1699 = vadd.f32 %v484, %v1643
          %v1700 = vadd.f32 %v485, %v1646
          %v1701 = vadd.f32 %v486, %v1651
          %v1702 = vadd.f32 %v487, %v1654
          %v1703 = vadd.f32 %v488, %v1659
          %v1704 = vadd.f32 %v489, %v1662
          %v1705 = vadd.f32 %v490, %v1667
          %v1706 = vadd.f32 %v491, %v1670
          %v1707 = vadd.f32 %v492, %v1675
          %v1708 = vadd.f32 %v493, %v1678
          %v1709 = vadd.f32 %v494, %v1683
          %v1710 = vadd.f32 %v495, %v1686
          %v1711 = vadd.f32 %v496, %v1691
          %v1712 = vadd.f32 %v497, %v1694
          %v1713 = vmul.f32 %v1697, %v444
          %v1714 = vmul.f32 %v1698, %v445
          %v1715 = vmul.f32 %v1699, %v446
          %v1716 = vmul.f32 %v1700, %v447
          %v1717 = vmul.f32 %v1701, %v448
          %v1718 = vmul.f32 %v1702, %v449
          %v1719 = vmul.f32 %v1703, %v450
          %v1720 = vmul.f32 %v1704, %v451
          %v1721 = vmul.f32 %v1705, %v452
          %v1722 = vmul.f32 %v1706, %v453
          %v1723 = vmul.f32 %v1707, %v454
          %v1724 = vmul.f32 %v1708, %v455
          %v1725 = vmul.f32 %v1709, %v456
          %v1726 = vmul.f32 %v1710, %v457
          %v1727 = vmul.f32 %v1711, %v458
          %v1728 = vmul.f32 %v1712, %v459
        $region69: #{tpu_custom_call.1} parent=63 // loop_footer
          %s481 = sadd.s32 1, %s477
        $region70: #{tpu_custom_call.1} parent=63 // loop_footer_branch
          %476 = sbr.rel target = $region66
        $region71: #{tpu_custom_call.1} parent=63 // loop_exit
          _
        %v1729 = vld [vmem:[%s10] sm:$0xf]
        %v1730 = vpack.c.bf16 %v483, %v482
        %v1731 = vpack.c.bf16 %v485, %v484
        %v1732 = vpack.c.bf16 %v487, %v486
        %v1733 = vpack.c.bf16 %v489, %v488
        %v1734 = vpack.c.bf16 %v491, %v490
        %v1735 = vpack.c.bf16 %v493, %v492
        %v1736 = vpack.c.bf16 %v495, %v494
        %v1737 = vpack.c.bf16 %v497, %v496
        %v1738 = vld [vmem:[%s11] sm:$0xff]
        %1740 = vset.pattern.permute.xlu0 0
        %1741 = vperm.xlu0 %1740, %v1738
        %v1742 = vpop.permute.xlu0 %1741
        %vm1744 = vcmask 261120
        %v1746 = vsel %vm1744, %v1729, 0
        %v1749 = vsel %vm1744, %v1730, 0
        %v1752 = vsel %vm1744, %v1731, 0
        %v1755 = vsel %vm1744, %v1732, 0
        %v1758 = vsel %vm1744, %v1733, 0
        %v1761 = vsel %vm1744, %v1734, 0
        %v1764 = vsel %vm1744, %v1735, 0
        %v1767 = vsel %vm1744, %v1736, 0
        %v1770 = vsel %vm1744, %v1737, 0
        %1772 = vmatprep.subr.bf16.mxu0 0
        %1773 = vmatpush1.bf16.xpose.msra.mxu0 %v1749
        %1774 = vmatprep.subr.bf16.mxu0 0
        %1775 = vmatpush1.bf16.xpose.msra.mxu0 %v1752
        %1776 = vmatprep.subr.bf16.mxu0 0
        %1777 = vmatpush1.bf16.xpose.msra.mxu0 %v1755
        %1778 = vmatprep.subr.bf16.mxu0 0
        %1779 = vmatpush1.bf16.xpose.msra.mxu0 %v1758
        %1780 = vmatprep.subr.bf16.mxu0 0
        %1781 = vmatpush1.bf16.xpose.msra.mxu0 %v1761
        %1782 = vmatprep.subr.bf16.mxu0 0
        %1783 = vmatpush1.bf16.xpose.msra.mxu0 %v1764
        %1784 = vmatprep.subr.bf16.mxu0 0
        %1785 = vmatpush1.bf16.xpose.msra.mxu0 %v1767
        %1786 = vmatprep.subr.bf16.mxu0 0
        %1787 = vmatpush1.bf16.xpose.msra.mxu0 %v1770
        %1788 = vmatprep.subr.bf16.mxu0 0
        %1789 = vmatpush1.bf16.xpose.msra.mxu0 0
        %1790 = vmatprep.subr.bf16.mxu0 0
        %1791 = vmatpush1.bf16.xpose.msra.mxu0 0
        %1792 = vmatprep.subr.bf16.mxu0 0
        %1793 = vmatpush1.bf16.xpose.msra.mxu0 0
        %1794 = vmatprep.subr.bf16.mxu0 0
        %1795 = vmatpush1.bf16.xpose.msra.mxu0 0
        %1796 = vmatprep.subr.bf16.mxu0 0
        %1797 = vmatpush1.bf16.xpose.msra.mxu0 0
        %1798 = vmatprep.subr.bf16.mxu0 0
        %1799 = vmatpush1.bf16.xpose.msra.mxu0 0
        %1800 = vmatprep.subr.bf16.mxu0 0
        %1801 = vmatpush1.bf16.xpose.msra.mxu0 0
        %1802 = vmatprep.subr.bf16.mxu0 0
        %1803 = vmatpush1.bf16.xpose.msra.mxu0 0
        %1804 = vmatprep.mubr.bf16.mxu0 0
        %1805 = vmatmul.mubr.bf16.gmra.mrb[0].mxu0 %v1746
        %v1806 = vpop.f32.mrb[0].mxu0
        %v1807 = vadd.f32 %v1742, %v1806
        %v1808 = vpop.f32.mrb[0].mxu0
        %v1809 = vpop.f32.mrb[0].mxu0
        %v1810 = vpop.f32.mrb[0].mxu0
        %1811 = vdwg.mxu0
        %1812 = vst [vmem:[%s386] sm:$0xff] %v1807
        %s1813 = sand.u32 %s276, 1
        %s1814 = scalar_lea.sflag [#allocation5], %s1813
        %s1815 = sand.u32 %s276, 1
        %s1816 = smul.addr %s1815, 8
        %s1817 = scalar_lea.vmem [#allocation4], %s1816
        // Predicated region
        $region72: #{tpu_custom_call.1} parent=63 // pred_check
          %p1818 = pneg %p286
        $region73: #{tpu_custom_call.1} parent=63 // pred_check_branch
          %1820 = sbr.rel (%p1818) target = $region75
        $region74: #{tpu_custom_call.1} parent=63 // pred_region
          %s1822 = ssub.s32 128, 128
          %1823 = vsyncadd %s1814, %s1822
          %s1824 = smul.addr %s32, 128
          %s1825 = scalar_lea.hbm %s12, %s1824
          %s1827 = sshll.u32 %s1817, 4
          %s1828 = int_to_ptr.vmem [resolvable:$true] %s1827
          %1830 = dma.vmem_to_hbm [thread:$0]  %s1828, 128, %s1825, %s1814
        $region75: #{tpu_custom_call.1} parent=63 // pred_fallthru
          _
      $region64: #{tpu_custom_call.1} parent=5 // pred_fallthru
        _
      %p1831 = scmp.le.s32.totalorder 2, %s27
      // Predicated region
      $region76: #{tpu_custom_call.1} parent=5 // pred_check
        %p1832 = pneg %p1831
      $region77: #{tpu_custom_call.1} parent=5 // pred_check_branch
        %1834 = sbr.rel (%p1832) target = $region79
      $region78: #{tpu_custom_call.1} parent=5 // pred_region
        %s1835 = ssub.s32 %s27, 2
        // Predicated region
        $region80: #{tpu_custom_call.1} parent=78 // pred_check
          %p1836 = pneg %p292
        $region81: #{tpu_custom_call.1} parent=78 // pred_check_branch
          %1838 = sbr.rel (%p1836) target = $region83
        $region82: #{tpu_custom_call.1} parent=78 // pred_region
          %s1839 = sand.u32 %s277, 1
          %s1840 = scalar_lea.sflag [#allocation5], %s1839
          %s1841 = sand.u32 %s277, 1
          %s1842 = smul.addr %s1841, 8
          %s1843 = scalar_lea.vmem [#allocation4], %s1842
          %1844 = dma.done %s1840, 128
        $region83: #{tpu_custom_call.1} parent=78 // pred_fallthru
          _
      $region79: #{tpu_custom_call.1} parent=5 // pred_fallthru
        _
    $region6: #{tpu_custom_call.1} parent=1 // loop_footer
      %s31 = sadd.s32 1, %s27
    $region7: #{tpu_custom_call.1} parent=1 // loop_footer_branch
      %26 = sbr.rel target = $region3
    $region8: #{tpu_custom_call.1} parent=1 // loop_exit
      _
    %1845 = vsyncpa [#allocation5], 1
    %s1846 = scalar_lea.sflag [#allocation5], 1
    %1847 = vsyncpa %s1846, 1

// kernel: tpu_custom_call.1
$region0: #{tpu_custom_call.1}
  #allocation0 [shape = 'u32[]', space=smem, size = 0x4, offset = 0x4, fixed_abs, tag = 'smem constant byte address 0x4 - core index']
  #allocation1 [shape = 'u32[144,128]{1,0:T(1,128)}', space=vmem, size = 0x12000, scoped, tag = 'internal scratch']
  #allocation2 [shape = 's32[1]{0}', space=sflag, size = 0x4, scoped, tag = 'scoped memory for tpu_custom_call.1']
  #allocation3 [shape = 'u8[512]{0}', space=smem, size = 0x200, scoped, tag = 'prefetched SMEM operand 0']
  %s0 = inlined_call_operand.vmem [shape: s32[2], index: 0, kind: input, shape index: {}]
  %s1 = inlined_call_operand.vmem [shape: f32[2,128,32], index: 1, kind: input, shape index: {}]
  %s2 = inlined_call_operand.vmem [shape: f32[2,7,32], index: 2, kind: input, shape index: {}]
  %s3 = inlined_call_operand.vmem [shape: f32[2,1,32], index: 3, kind: input, shape index: {}]
  %s4 = inlined_call_operand.vmem [shape: f32[2,1,32], index: 4, kind: input, shape index: {}]
  %s5 = inlined_call_operand.vmem [shape: f32[2,1,32], index: 5, kind: input, shape index: {}]
  %s6 = inlined_call_operand.vmem [shape: bf16[2,32,128], index: 6, kind: input, shape index: {}]
  %s7 = inlined_call_operand.vmem [shape: f32[2,1,128], index: 7, kind: input, shape index: {}]
  %s8 = inlined_call_operand.vmem [shape: bf16[2,128,32], index: 8, kind: input, shape index: {}]
  %s9 = inlined_call_operand.vmem [shape: f32[2,1,32], index: 9, kind: input, shape index: {}]
  %s10 = inlined_call_operand.vmem [shape: bf16[8,32], index: 10, kind: input, shape index: {}]
  %s11 = inlined_call_operand.vmem [shape: f32[8,1], index: 11, kind: input, shape index: {}]
  %s12 = inlined_call_operand.hbm [shape: f32[2,8,128], index: 12, kind: output, shape index: {}]
  %s13 = sld [smem:[#allocation0]]
  $region84: #{tpu_custom_call.1} parent=0
    _
  %s15 = ssub.s32 1, %s13
  %s16 = scalar_select 0, %s15, %s13
  %s17 = sshll.u32 %s0, 4
  %s18 = int_to_ptr.vmem [resolvable:$true] %s17
  %20 = dma.vmem_to_smem %s18, 16, [#allocation3], [#allocation2]
  %21 = dma.done [#allocation2], 16
  %22 = sfence
  $region1: #{tpu_custom_call.1} parent=0
    #allocation4 [shape = 'u8[8192]{0}', space=vmem, size = 0x2000, scoped, tag = 'output window, operand 0']
    #allocation5 [shape = 's32[2]{0}', space=sflag, size = 0x8, scoped, tag = 'scoped memory for tpu_custom_call.1']
    %23 = vsyncpa [#allocation5], 0
    %s24 = scalar_lea.sflag [#allocation5], 1
    %25 = vsyncpa %s24, 0
    loop: start=0, step=1, limit=4
    $region2: #{tpu_custom_call.1} parent=1 // loop_pre_header
      _
    $region3: #{tpu_custom_call.1} parent=1 // loop_header
      %s27 = sphi 0, %s31
      %p28 = scmp.ge.s32.totalorder %s27, 4
      %s37 = sphi 0, %s39
      %s40 = sphi 0, %s37
      %s41 = sphi 0, %s40
      %s57 = sphi 0, %s41
      %s61 = sphi 0, %s61
      %s63 = sphi 0, %s61
      %s64 = sphi 0, %s63
      %s78 = sphi 0, %s64
      %s82 = sphi 0, %s82
      %s84 = sphi 0, %s82
      %s85 = sphi 0, %s84
      %s99 = sphi 0, %s85
      %s103 = sphi 0, %s103
      %s105 = sphi 0, %s103
      %s106 = sphi 0, %s105
      %s120 = sphi 0, %s106
      %s124 = sphi 0, %s124
      %s126 = sphi 0, %s124
      %s127 = sphi 0, %s126
      %s141 = sphi 0, %s127
      %s145 = sphi 0, %s145
      %s147 = sphi 0, %s145
      %s148 = sphi 0, %s147
      %s162 = sphi 0, %s148
      %s166 = sphi 0, %s166
      %s168 = sphi 0, %s166
      %s169 = sphi 0, %s168
      %s183 = sphi 0, %s169
      %s187 = sphi 0, %s187
      %s189 = sphi 0, %s187
      %s190 = sphi 0, %s189
      %s204 = sphi 0, %s190
      %s208 = sphi 0, %s208
      %s210 = sphi 0, %s208
      %s211 = sphi 0, %s210
      %s225 = sphi 0, %s211
      %s229 = sphi 0, %s229
      %s231 = sphi 0, %s229
      %s232 = sphi 0, %s231
      %s246 = sphi 0, %s232
      %s250 = sphi 0, %s250
      %s252 = sphi 0, %s250
      %s253 = sphi 0, %s252
      %s267 = sphi 0, %s253
      %s273 = sphi 0, %s275
      %s276 = sphi 0, %s273
      %s277 = sphi 0, %s276
      %s293 = sphi 0, %s277
    $region4: #{tpu_custom_call.1} parent=1 // loop_header_branch
      %30 = sbr.rel (%p28) target = $region8
    $region5: #{tpu_custom_call.1} parent=1 // loop_body
      %s32 = ssub.s32 %s27, 1
      %s33 = ssub.s32 %s27, 2
      %s34 = sadd.s32 %s27, 1
      %s35 = ssub.s32 %s27, %s34
      %p36 = scmp.eq.s32.totalorder %s35, 0
      %s38 = sadd.s32 %s37, 1
      %s39 = scalar_select %p36, %s37, %s38
      %p42 = pneg %p36
      %p43 = scmp.eq.s32.totalorder %s27, 1
      %p44 = por %p42, %p43
      %p45 = scmp.ne.s32.totalorder %s37, %s40
      %p46 = scmp.eq.s32.totalorder %s27, 0
      %p47 = por %p45, %p46
      %p48 = scmp.ne.s32.totalorder %s37, %s40
      %p49 = scmp.eq.s32.totalorder %s32, 1
      %p50 = por %p48, %p49
      %p51 = scmp.ne.s32.totalorder %s40, %s41
      %p52 = scmp.eq.s32.totalorder %s32, 0
      %p53 = por %p51, %p52
      %p54 = scmp.ne.s32.totalorder %s40, %s41
      %p55 = scmp.eq.s32.totalorder %s33, 1
      %p56 = por %p54, %p55
      %p58 = scmp.ne.s32.totalorder %s41, %s57
      %p59 = scmp.eq.s32.totalorder %s33, 0
      %p60 = por %p58, %p59
      %s62 = sadd.s32 %s61, 1
      %p65 = scmp.eq.s32.totalorder %s27, 1
      %p66 = scmp.ne.s32.totalorder %s61, %s63
      %p67 = scmp.eq.s32.totalorder %s27, 0
      %p68 = por %p66, %p67
      %p69 = scmp.ne.s32.totalorder %s61, %s63
      %p70 = scmp.eq.s32.totalorder %s32, 1
      %p71 = por %p69, %p70
      %p72 = scmp.ne.s32.totalorder %s63, %s64
      %p73 = scmp.eq.s32.totalorder %s32, 0
      %p74 = por %p72, %p73
      %p75 = scmp.ne.s32.totalorder %s63, %s64
      %p76 = scmp.eq.s32.totalorder %s33, 1
      %p77 = por %p75, %p76
      %p79 = scmp.ne.s32.totalorder %s64, %s78
      %p80 = scmp.eq.s32.totalorder %s33, 0
      %p81 = por %p79, %p80
      %s83 = sadd.s32 %s82, 1
      %p86 = scmp.eq.s32.totalorder %s27, 1
      %p87 = scmp.ne.s32.totalorder %s82, %s84
      %p88 = scmp.eq.s32.totalorder %s27, 0
      %p89 = por %p87, %p88
      %p90 = scmp.ne.s32.totalorder %s82, %s84
      %p91 = scmp.eq.s32.totalorder %s32, 1
      %p92 = por %p90, %p91
      %p93 = scmp.ne.s32.totalorder %s84, %s85
      %p94 = scmp.eq.s32.totalorder %s32, 0
      %p95 = por %p93, %p94
      %p96 = scmp.ne.s32.totalorder %s84, %s85
      %p97 = scmp.eq.s32.totalorder %s33, 1
      %p98 = por %p96, %p97
      %p100 = scmp.ne.s32.totalorder %s85, %s99
      %p101 = scmp.eq.s32.totalorder %s33, 0
      %p102 = por %p100, %p101
      %s104 = sadd.s32 %s103, 1
      %p107 = scmp.eq.s32.totalorder %s27, 1
      %p108 = scmp.ne.s32.totalorder %s103, %s105
      %p109 = scmp.eq.s32.totalorder %s27, 0
      %p110 = por %p108, %p109
      %p111 = scmp.ne.s32.totalorder %s103, %s105
      %p112 = scmp.eq.s32.totalorder %s32, 1
      %p113 = por %p111, %p112
      %p114 = scmp.ne.s32.totalorder %s105, %s106
      %p115 = scmp.eq.s32.totalorder %s32, 0
      %p116 = por %p114, %p115
      %p117 = scmp.ne.s32.totalorder %s105, %s106
      %p118 = scmp.eq.s32.totalorder %s33, 1
      %p119 = por %p117, %p118
      %p121 = scmp.ne.s32.totalorder %s106, %s120
      %p122 = scmp.eq.s32.totalorder %s33, 0
      %p123 = por %p121, %p122
      %s125 = sadd.s32 %s124, 1
      %p128 = scmp.eq.s32.totalorder %s27, 1
      %p129 = scmp.ne.s32.totalorder %s124, %s126
      %p130 = scmp.eq.s32.totalorder %s27, 0
      %p131 = por %p129, %p130
      %p132 = scmp.ne.s32.totalorder %s124, %s126
      %p133 = scmp.eq.s32.totalorder %s32, 1
      %p134 = por %p132, %p133
      %p135 = scmp.ne.s32.totalorder %s126, %s127
      %p136 = scmp.eq.s32.totalorder %s32, 0
      %p137 = por %p135, %p136
      %p138 = scmp.ne.s32.totalorder %s126, %s127
      %p139 = scmp.eq.s32.totalorder %s33, 1
      %p140 = por %p138, %p139
      %p142 = scmp.ne.s32.totalorder %s127, %s141
      %p143 = scmp.eq.s32.totalorder %s33, 0
      %p144 = por %p142, %p143
      %s146 = sadd.s32 %s145, 1
      %p149 = scmp.eq.s32.totalorder %s27, 1
      %p150 = scmp.ne.s32.totalorder %s145, %s147
      %p151 = scmp.eq.s32.totalorder %s27, 0
      %p152 = por %p150, %p151
      %p153 = scmp.ne.s32.totalorder %s145, %s147
      %p154 = scmp.eq.s32.totalorder %s32, 1
      %p155 = por %p153, %p154
      %p156 = scmp.ne.s32.totalorder %s147, %s148
      %p157 = scmp.eq.s32.totalorder %s32, 0
      %p158 = por %p156, %p157
      %p159 = scmp.ne.s32.totalorder %s147, %s148
      %p160 = scmp.eq.s32.totalorder %s33, 1
      %p161 = por %p159, %p160
      %p163 = scmp.ne.s32.totalorder %s148, %s162
      %p164 = scmp.eq.s32.totalorder %s33, 0
      %p165 = por %p163, %p164
      %s167 = sadd.s32 %s166, 1
      %p170 = scmp.eq.s32.totalorder %s27, 1
      %p171 = scmp.ne.s32.totalorder %s166, %s168
      %p172 = scmp.eq.s32.totalorder %s27, 0
      %p173 = por %p171, %p172
      %p174 = scmp.ne.s32.totalorder %s166, %s168
      %p175 = scmp.eq.s32.totalorder %s32, 1
      %p176 = por %p174, %p175
      %p177 = scmp.ne.s32.totalorder %s168, %s169
      %p178 = scmp.eq.s32.totalorder %s32, 0
      %p179 = por %p177, %p178
      %p180 = scmp.ne.s32.totalorder %s168, %s169
      %p181 = scmp.eq.s32.totalorder %s33, 1
      %p182 = por %p180, %p181
      %p184 = scmp.ne.s32.totalorder %s169, %s183
      %p185 = scmp.eq.s32.totalorder %s33, 0
      %p186 = por %p184, %p185
      %s188 = sadd.s32 %s187, 1
      %p191 = scmp.eq.s32.totalorder %s27, 1
      %p192 = scmp.ne.s32.totalorder %s187, %s189
      %p193 = scmp.eq.s32.totalorder %s27, 0
      %p194 = por %p192, %p193
      %p195 = scmp.ne.s32.totalorder %s187, %s189
      %p196 = scmp.eq.s32.totalorder %s32, 1
      %p197 = por %p195, %p196
      %p198 = scmp.ne.s32.totalorder %s189, %s190
      %p199 = scmp.eq.s32.totalorder %s32, 0
      %p200 = por %p198, %p199
      %p201 = scmp.ne.s32.totalorder %s189, %s190
      %p202 = scmp.eq.s32.totalorder %s33, 1
      %p203 = por %p201, %p202
      %p205 = scmp.ne.s32.totalorder %s190, %s204
      %p206 = scmp.eq.s32.totalorder %s33, 0
      %p207 = por %p205, %p206
      %s209 = sadd.s32 %s208, 1
      %p212 = scmp.eq.s32.totalorder %s27, 1
      %p213 = scmp.ne.s32.totalorder %s208, %s210
      %p214 = scmp.eq.s32.totalorder %s27, 0
      %p215 = por %p213, %p214
      %p216 = scmp.ne.s32.totalorder %s208, %s210
      %p217 = scmp.eq.s32.totalorder %s32, 1
      %p218 = por %p216, %p217
      %p219 = scmp.ne.s32.totalorder %s210, %s211
      %p220 = scmp.eq.s32.totalorder %s32, 0
      %p221 = por %p219, %p220
      %p222 = scmp.ne.s32.totalorder %s210, %s211
      %p223 = scmp.eq.s32.totalorder %s33, 1
      %p224 = por %p222, %p223
      %p226 = scmp.ne.s32.totalorder %s211, %s225
      %p227 = scmp.eq.s32.totalorder %s33, 0
      %p228 = por %p226, %p227
      %s230 = sadd.s32 %s229, 1
      %p233 = scmp.eq.s32.totalorder %s27, 1
      %p234 = scmp.ne.s32.totalorder %s229, %s231
      %p235 = scmp.eq.s32.totalorder %s27, 0
      %p236 = por %p234, %p235
      %p237 = scmp.ne.s32.totalorder %s229, %s231
      %p238 = scmp.eq.s32.totalorder %s32, 1
      %p239 = por %p237, %p238
      %p240 = scmp.ne.s32.totalorder %s231, %s232
      %p241 = scmp.eq.s32.totalorder %s32, 0
      %p242 = por %p240, %p241
      %p243 = scmp.ne.s32.totalorder %s231, %s232
      %p244 = scmp.eq.s32.totalorder %s33, 1
      %p245 = por %p243, %p244
      %p247 = scmp.ne.s32.totalorder %s232, %s246
      %p248 = scmp.eq.s32.totalorder %s33, 0
      %p249 = por %p247, %p248
      %s251 = sadd.s32 %s250, 1
      %p254 = scmp.eq.s32.totalorder %s27, 1
      %p255 = scmp.ne.s32.totalorder %s250, %s252
      %p256 = scmp.eq.s32.totalorder %s27, 0
      %p257 = por %p255, %p256
      %p258 = scmp.ne.s32.totalorder %s250, %s252
      %p259 = scmp.eq.s32.totalorder %s32, 1
      %p260 = por %p258, %p259
      %p261 = scmp.ne.s32.totalorder %s252, %s253
      %p262 = scmp.eq.s32.totalorder %s32, 0
      %p263 = por %p261, %p262
      %p264 = scmp.ne.s32.totalorder %s252, %s253
      %p265 = scmp.eq.s32.totalorder %s33, 1
      %p266 = por %p264, %p265
      %p268 = scmp.ne.s32.totalorder %s253, %s267
      %p269 = scmp.eq.s32.totalorder %s33, 0
      %p270 = por %p268, %p269
      %s271 = ssub.s32 %s27, %s34
      %p272 = scmp.eq.s32.totalorder %s271, 0
      %s274 = sadd.s32 %s273, 1
      %s275 = scalar_select %p272, %s273, %s274
      %p278 = pneg %p272
      %p279 = scmp.eq.s32.totalorder %s27, 1
      %p280 = por %p278, %p279
      %p281 = scmp.ne.s32.totalorder %s273, %s276
      %p282 = scmp.eq.s32.totalorder %s27, 0
      %p283 = por %p281, %p282
      %p284 = scmp.ne.s32.totalorder %s273, %s276
      %p285 = scmp.eq.s32.totalorder %s32, 1
      %p286 = por %p284, %p285
      %p287 = scmp.ne.s32.totalorder %s276, %s277
      %p288 = scmp.eq.s32.totalorder %s32, 0
      %p289 = por %p287, %p288
      %p290 = scmp.ne.s32.totalorder %s276, %s277
      %p291 = scmp.eq.s32.totalorder %s33, 1
      %p292 = por %p290, %p291
      %p294 = scmp.ne.s32.totalorder %s277, %s293
      %p295 = scmp.eq.s32.totalorder %s33, 0
      %p296 = por %p294, %p295
      %p297 = scmp.le.s32.totalorder 1, %s27
      %p298 = scmp.lt.s32.totalorder %s27, 3
      %p299 = pnand %p297, %p298
      %p300 = pneg %p299
      // Predicated region
      $region9: #{tpu_custom_call.1} parent=5 // pred_check
        _
      $region10: #{tpu_custom_call.1} parent=5 // pred_check_branch
        %302 = sbr.rel (%p299) target = $region12
      $region11: #{tpu_custom_call.1} parent=5 // pred_region
        %s303 = ssub.s32 %s27, 1
        // Predicated region
        $region13: #{tpu_custom_call.1} parent=11 // pred_check
          %p304 = pneg %p74
        $region14: #{tpu_custom_call.1} parent=11 // pred_check_branch
          %306 = sbr.rel (%p304) target = $region16
        $region15: #{tpu_custom_call.1} parent=11 // pred_region
          _
        $region16: #{tpu_custom_call.1} parent=11 // pred_fallthru
          _
        // Predicated region
        $region17: #{tpu_custom_call.1} parent=11 // pred_check
          %p307 = pneg %p95
        $region18: #{tpu_custom_call.1} parent=11 // pred_check_branch
          %309 = sbr.rel (%p307) target = $region20
        $region19: #{tpu_custom_call.1} parent=11 // pred_region
          _
        $region20: #{tpu_custom_call.1} parent=11 // pred_fallthru
          _
        // Predicated region
        $region21: #{tpu_custom_call.1} parent=11 // pred_check
          %p310 = pneg %p116
        $region22: #{tpu_custom_call.1} parent=11 // pred_check_branch
          %312 = sbr.rel (%p310) target = $region24
        $region23: #{tpu_custom_call.1} parent=11 // pred_region
          _
        $region24: #{tpu_custom_call.1} parent=11 // pred_fallthru
          _
        // Predicated region
        $region25: #{tpu_custom_call.1} parent=11 // pred_check
          %p313 = pneg %p137
        $region26: #{tpu_custom_call.1} parent=11 // pred_check_branch
          %315 = sbr.rel (%p313) target = $region28
        $region27: #{tpu_custom_call.1} parent=11 // pred_region
          _
        $region28: #{tpu_custom_call.1} parent=11 // pred_fallthru
          _
        // Predicated region
        $region29: #{tpu_custom_call.1} parent=11 // pred_check
          %p316 = pneg %p158
        $region30: #{tpu_custom_call.1} parent=11 // pred_check_branch
          %318 = sbr.rel (%p316) target = $region32
        $region31: #{tpu_custom_call.1} parent=11 // pred_region
          _
        $region32: #{tpu_custom_call.1} parent=11 // pred_fallthru
          _
        // Predicated region
        $region33: #{tpu_custom_call.1} parent=11 // pred_check
          %p319 = pneg %p179
        $region34: #{tpu_custom_call.1} parent=11 // pred_check_branch
          %321 = sbr.rel (%p319) target = $region36
        $region35: #{tpu_custom_call.1} parent=11 // pred_region
          _
        $region36: #{tpu_custom_call.1} parent=11 // pred_fallthru
          _
        // Predicated region
        $region37: #{tpu_custom_call.1} parent=11 // pred_check
          %p322 = pneg %p200
        $region38: #{tpu_custom_call.1} parent=11 // pred_check_branch
          %324 = sbr.rel (%p322) target = $region40
        $region39: #{tpu_custom_call.1} parent=11 // pred_region
          _
        $region40: #{tpu_custom_call.1} parent=11 // pred_fallthru
          _
        // Predicated region
        $region41: #{tpu_custom_call.1} parent=11 // pred_check
          %p325 = pneg %p221
        $region42: #{tpu_custom_call.1} parent=11 // pred_check_branch
          %327 = sbr.rel (%p325) target = $region44
        $region43: #{tpu_custom_call.1} parent=11 // pred_region
          _
        $region44: #{tpu_custom_call.1} parent=11 // pred_fallthru
          _
        // Predicated region
        $region45: #{tpu_custom_call.1} parent=11 // pred_check
          %p328 = pneg %p242
        $region46: #{tpu_custom_call.1} parent=11 // pred_check_branch
          %330 = sbr.rel (%p328) target = $region48
        $region47: #{tpu_custom_call.1} parent=11 // pred_region
          _
        $region48: #{tpu_custom_call.1} parent=11 // pred_fallthru
          _
        // Predicated region
        $region49: #{tpu_custom_call.1} parent=11 // pred_check
          %p331 = pneg %p263
        $region50: #{tpu_custom_call.1} parent=11 // pred_check_branch
          %333 = sbr.rel (%p331) target = $region52
        $region51: #{tpu_custom_call.1} parent=11 // pred_region
          _
        $region52: #{tpu_custom_call.1} parent=11 // pred_fallthru
          _
      $region12: #{tpu_custom_call.1} parent=5 // pred_fallthru
        _
      %p334 = scmp.lt.s32.totalorder %s27, 2
      // Predicated region
      $region53: #{tpu_custom_call.1} parent=5 // pred_check
        %p335 = pneg %p334
      $region54: #{tpu_custom_call.1} parent=5 // pred_check_branch
        %337 = sbr.rel (%p335) target = $region56
      $region55: #{tpu_custom_call.1} parent=5 // pred_region
        // Predicated region
        $region57: #{tpu_custom_call.1} parent=55 // pred_check
          %p338 = pneg %p47
        $region58: #{tpu_custom_call.1} parent=55 // pred_check_branch
          %340 = sbr.rel (%p338) target = $region60
        $region59: #{tpu_custom_call.1} parent=55 // pred_region
          %p341 = scmp.lt.s32.totalorder %s27, 1
          %s342 = scalar_select %p341, %s27, 1
          %s343 = smul.addr %s342, 16
          %s344 = smul.addr %s343, 8
          %s345 = scalar_lea.vmem %s1, %s344
        $region60: #{tpu_custom_call.1} parent=55 // pred_fallthru
          _
      $region56: #{tpu_custom_call.1} parent=5 // pred_fallthru
        _
      %p346 = scmp.le.s32.totalorder 1, %s27
      %p347 = scmp.lt.s32.totalorder %s27, 3
      %p348 = pnand %p346, %p347
      %p349 = pneg %p348
      // Predicated region
      $region61: #{tpu_custom_call.1} parent=5 // pred_check
        _
      $region62: #{tpu_custom_call.1} parent=5 // pred_check_branch
        %351 = sbr.rel (%p348) target = $region64
      $region63: #{tpu_custom_call.1} parent=5 // pred_region
        %s352 = ssub.s32 %s27, 1
        %p353 = scmp.lt.s32.totalorder %s32, 1
        %s354 = scalar_select %p353, %s32, 1
        %s355 = smul.addr %s354, 16
        %s356 = smul.addr %s355, 8
        %s357 = scalar_lea.vmem %s1, %s356
        %p358 = pneg %p53
        %p359 = pneg %p50
        %p360 = pneg %p74
        %p361 = pneg %p71
        %p362 = pneg %p95
        %p363 = pneg %p92
        %p364 = pneg %p116
        %p365 = pneg %p113
        %p366 = pneg %p137
        %p367 = pneg %p134
        %p368 = pneg %p158
        %p369 = pneg %p155
        %p370 = pneg %p179
        %p371 = pneg %p176
        %p372 = pneg %p200
        %p373 = pneg %p197
        %p374 = pneg %p221
        %p375 = pneg %p218
        %p376 = pneg %p242
        %p377 = pneg %p239
        %p378 = pneg %p263
        %p379 = pneg %p260
        %p380 = pneg %p289
        %p381 = pneg %p286
        %s382 = sand.u32 %s276, 1
        %s383 = scalar_lea.sflag [#allocation5], %s382
        %s384 = sand.u32 %s276, 1
        %s385 = smul.addr %s384, 8
        %s386 = scalar_lea.vmem [#allocation4], %s385
        %p387 = scmp.lt.s32.totalorder %s32, 1
        %s388 = scalar_select %p387, %s32, 1
        %s389 = smul.addr %s388, 16
        %s390 = smul.addr %s389, 8
        %s391 = scalar_lea.vmem %s1, %s390
        %s393 = sld [smem:[#allocation3 + %s32]]
        %v394 = vlaneseq
        %v395 = vshrl.u32 %v394, 7
        %v396 = vadd.s32 %v395, 8
        %v397 = vadd.s32 %v395, 16
        %v398 = vadd.s32 %v395, 24
        %v399 = vadd.s32 %v395, 32
        %v400 = vadd.s32 %v395, 40
        %v401 = vadd.s32 %v395, 48
        %v402 = vadd.s32 %v395, 56
        %v403 = vadd.s32 %v395, 64
        %v404 = vadd.s32 %v395, 72
        %v405 = vadd.s32 %v395, 80
        %v406 = vadd.s32 %v395, 88
        %v407 = vadd.s32 %v395, 96
        %v408 = vadd.s32 %v395, 104
        %v409 = vadd.s32 %v395, 112
        %v410 = vadd.s32 %v395, 120
        %v411 = vstv %s393
        %vm412 = vcmp.lt.s32.totalorder %v395, %v411
        %vm413 = vcmp.lt.s32.totalorder %v396, %v411
        %vm414 = vcmp.lt.s32.totalorder %v397, %v411
        %vm415 = vcmp.lt.s32.totalorder %v398, %v411
        %vm416 = vcmp.lt.s32.totalorder %v399, %v411
        %vm417 = vcmp.lt.s32.totalorder %v400, %v411
        %vm418 = vcmp.lt.s32.totalorder %v401, %v411
        %vm419 = vcmp.lt.s32.totalorder %v402, %v411
        %vm420 = vcmp.lt.s32.totalorder %v403, %v411
        %vm421 = vcmp.lt.s32.totalorder %v404, %v411
        %vm422 = vcmp.lt.s32.totalorder %v405, %v411
        %vm423 = vcmp.lt.s32.totalorder %v406, %v411
        %vm424 = vcmp.lt.s32.totalorder %v407, %v411
        %vm425 = vcmp.lt.s32.totalorder %v408, %v411
        %vm426 = vcmp.lt.s32.totalorder %v409, %v411
        %vm427 = vcmp.lt.s32.totalorder %v410, %v411
        %v428 = vsel %vm412, 1, 0
        %v429 = vsel %vm413, 1, 0
        %v430 = vsel %vm414, 1, 0
        %v431 = vsel %vm415, 1, 0
        %v432 = vsel %vm416, 1, 0
        %v433 = vsel %vm417, 1, 0
        %v434 = vsel %vm418, 1, 0
        %v435 = vsel %vm419, 1, 0
        %v436 = vsel %vm420, 1, 0
        %v437 = vsel %vm421, 1, 0
        %v438 = vsel %vm422, 1, 0
        %v439 = vsel %vm423, 1, 0
        %v440 = vsel %vm424, 1, 0
        %v441 = vsel %vm425, 1, 0
        %v442 = vsel %vm426, 1, 0
        %v443 = vsel %vm427, 1, 0
        %v444 = vcvt.s32.f32 %v428
        %v445 = vcvt.s32.f32 %v429
        %v446 = vcvt.s32.f32 %v430
        %v447 = vcvt.s32.f32 %v431
        %v448 = vcvt.s32.f32 %v432
        %v449 = vcvt.s32.f32 %v433
        %v450 = vcvt.s32.f32 %v434
        %v451 = vcvt.s32.f32 %v435
        %v452 = vcvt.s32.f32 %v436
        %v453 = vcvt.s32.f32 %v437
        %v454 = vcvt.s32.f32 %v438
        %v455 = vcvt.s32.f32 %v439
        %v456 = vcvt.s32.f32 %v440
        %v457 = vcvt.s32.f32 %v441
        %v458 = vcvt.s32.f32 %v442
        %v459 = vcvt.s32.f32 %v443
        %v460 = vld [vmem:[%s391] sm:$0xff]
        %v461 = vld [vmem:[%s391 + $0x8] sm:$0xff]
        %v462 = vld [vmem:[%s391 + $0x10] sm:$0xff]
        %v463 = vld [vmem:[%s391 + $0x18] sm:$0xff]
        %v464 = vld [vmem:[%s391 + $0x20] sm:$0xff]
        %v465 = vld [vmem:[%s391 + $0x28] sm:$0xff]
        %v466 = vld [vmem:[%s391 + $0x30] sm:$0xff]
        %v467 = vld [vmem:[%s391 + $0x38] sm:$0xff]
        %v468 = vld [vmem:[%s391 + $0x40] sm:$0xff]
        %v469 = vld [vmem:[%s391 + $0x48] sm:$0xff]
        %v470 = vld [vmem:[%s391 + $0x50] sm:$0xff]
        %v471 = vld [vmem:[%s391 + $0x58] sm:$0xff]
        %v472 = vld [vmem:[%s391 + $0x60] sm:$0xff]
        %v473 = vld [vmem:[%s391 + $0x68] sm:$0xff]
        %v474 = vld [vmem:[%s391 + $0x70] sm:$0xff]
        %v475 = vld [vmem:[%s391 + $0x78] sm:$0xff]
        loop: start=0, step=1, limit=2
        $region65: #{tpu_custom_call.1} parent=63 // loop_pre_header
          _
        $region66: #{tpu_custom_call.1} parent=63 // loop_header
          %s477 = sphi 0, %s481
          %p478 = scmp.ge.s32.totalorder %s477, 2
          %v482 = vphi %v460, %v1713
          %v483 = vphi %v461, %v1714
          %v484 = vphi %v462, %v1715
          %v485 = vphi %v463, %v1716
          %v486 = vphi %v464, %v1717
          %v487 = vphi %v465, %v1718
          %v488 = vphi %v466, %v1719
          %v489 = vphi %v467, %v1720
          %v490 = vphi %v468, %v1721
          %v491 = vphi %v469, %v1722
          %v492 = vphi %v470, %v1723
          %v493 = vphi %v471, %v1724
          %v494 = vphi %v472, %v1725
          %v495 = vphi %v473, %v1726
          %v496 = vphi %v474, %v1727
          %v497 = vphi %v475, %v1728
        $region67: #{tpu_custom_call.1} parent=63 // loop_header_branch
          %480 = sbr.rel (%p478) target = $region71
        $region68: #{tpu_custom_call.1} parent=63 // loop_body
          %s498 = smul.u32 %s477, 8
          %s499 = scalar_lea.vmem %s2, %s498
          %v500 = vld [vmem:[%s499] sm:$0x7f]
          %v501 = vlaneseq
          %v502 = vshrl.u32 %v501, 7
          %v503 = vsub.s32 3, %v502
          %v504 = vrot.slane %v500, %v503
          %v505 = vmul.f32 %v482, %v504
          %v506 = vmul.f32 %v483, %v504
          %v507 = vmul.f32 %v484, %v504
          %v508 = vmul.f32 %v485, %v504
          %v509 = vmul.f32 %v486, %v504
          %v510 = vmul.f32 %v487, %v504
          %v511 = vmul.f32 %v488, %v504
          %v512 = vmul.f32 %v489, %v504
          %v513 = vmul.f32 %v490, %v504
          %v514 = vmul.f32 %v491, %v504
          %v515 = vmul.f32 %v492, %v504
          %v516 = vmul.f32 %v493, %v504
          %v517 = vmul.f32 %v494, %v504
          %v518 = vmul.f32 %v495, %v504
          %v519 = vmul.f32 %v496, %v504
          %v520 = vmul.f32 %v497, %v504
          %v521 = vrot.slane %v482, 5
          %v522 = vrot.slane %v483, 5
          %v523 = vrot.slane %v484, 5
          %v524 = vrot.slane %v485, 5
          %v525 = vrot.slane %v486, 5
          %v526 = vrot.slane %v487, 5
          %v527 = vrot.slane %v488, 5
          %v528 = vrot.slane %v489, 5
          %v529 = vrot.slane %v490, 5
          %v530 = vrot.slane %v491, 5
          %v531 = vrot.slane %v492, 5
          %v532 = vrot.slane %v493, 5
          %v533 = vrot.slane %v494, 5
          %v534 = vrot.slane %v495, 5
          %v535 = vrot.slane %v496, 5
          %v536 = vrot.slane %v497, 5
          %vm537 = vcmp.lt.s32.totalorder %v395, 3
          %v538 = vsel %vm537, %v535, %v536
          %v539 = vsel %vm537, %v534, %v535
          %v540 = vsel %vm537, %v533, %v534
          %v541 = vsel %vm537, %v532, %v533
          %v542 = vsel %vm537, %v531, %v532
          %v543 = vsel %vm537, %v530, %v531
          %v544 = vsel %vm537, %v529, %v530
          %v545 = vsel %vm537, %v528, %v529
          %v546 = vsel %vm537, %v527, %v528
          %v547 = vsel %vm537, %v526, %v527
          %v548 = vsel %vm537, %v525, %v526
          %v549 = vsel %vm537, %v524, %v525
          %v550 = vsel %vm537, %v523, %v524
          %v551 = vsel %vm537, %v522, %v523
          %v552 = vsel %vm537, %v521, %v522
          %v553 = vsel %vm537, %v536, %v521
          %v554 = vlaneseq
          %v555 = vshrl.u32 %v554, 7
          %v556 = vsub.s32 0, %v555
          %v557 = vrot.slane %v500, %v556
          %v558 = vmul.f32 %v553, %v557
          %v559 = vmul.f32 %v552, %v557
          %v560 = vmul.f32 %v551, %v557
          %v561 = vmul.f32 %v550, %v557
          %v562 = vmul.f32 %v549, %v557
          %v563 = vmul.f32 %v548, %v557
          %v564 = vmul.f32 %v547, %v557
          %v565 = vmul.f32 %v546, %v557
          %v566 = vmul.f32 %v545, %v557
          %v567 = vmul.f32 %v544, %v557
          %v568 = vmul.f32 %v543, %v557
          %v569 = vmul.f32 %v542, %v557
          %v570 = vmul.f32 %v541, %v557
          %v571 = vmul.f32 %v540, %v557
          %v572 = vmul.f32 %v539, %v557
          %v573 = vmul.f32 %v538, %v557
          %v574 = vadd.f32 %v505, %v558
          %v575 = vadd.f32 %v506, %v559
          %v576 = vadd.f32 %v507, %v560
          %v577 = vadd.f32 %v508, %v561
          %v578 = vadd.f32 %v509, %v562
          %v579 = vadd.f32 %v510, %v563
          %v580 = vadd.f32 %v511, %v564
          %v581 = vadd.f32 %v512, %v565
          %v582 = vadd.f32 %v513, %v566
          %v583 = vadd.f32 %v514, %v567
          %v584 = vadd.f32 %v515, %v568
          %v585 = vadd.f32 %v516, %v569
          %v586 = vadd.f32 %v517, %v570
          %v587 = vadd.f32 %v518, %v571
          %v588 = vadd.f32 %v519, %v572
          %v589 = vadd.f32 %v520, %v573
          %v590 = vrot.slane %v482, 6
          %v591 = vrot.slane %v483, 6
          %v592 = vrot.slane %v484, 6
          %v593 = vrot.slane %v485, 6
          %v594 = vrot.slane %v486, 6
          %v595 = vrot.slane %v487, 6
          %v596 = vrot.slane %v488, 6
          %v597 = vrot.slane %v489, 6
          %v598 = vrot.slane %v490, 6
          %v599 = vrot.slane %v491, 6
          %v600 = vrot.slane %v492, 6
          %v601 = vrot.slane %v493, 6
          %v602 = vrot.slane %v494, 6
          %v603 = vrot.slane %v495, 6
          %v604 = vrot.slane %v496, 6
          %v605 = vrot.slane %v497, 6
          %vm606 = vcmp.lt.s32.totalorder %v395, 2
          %v607 = vsel %vm606, %v604, %v605
          %v608 = vsel %vm606, %v603, %v604
          %v609 = vsel %vm606, %v602, %v603
          %v610 = vsel %vm606, %v601, %v602
          %v611 = vsel %vm606, %v600, %v601
          %v612 = vsel %vm606, %v599, %v600
          %v613 = vsel %vm606, %v598, %v599
          %v614 = vsel %vm606, %v597, %v598
          %v615 = vsel %vm606, %v596, %v597
          %v616 = vsel %vm606, %v595, %v596
          %v617 = vsel %vm606, %v594, %v595
          %v618 = vsel %vm606, %v593, %v594
          %v619 = vsel %vm606, %v592, %v593
          %v620 = vsel %vm606, %v591, %v592
          %v621 = vsel %vm606, %v590, %v591
          %v622 = vsel %vm606, %v605, %v590
          %v623 = vlaneseq
          %v624 = vshrl.u32 %v623, 7
          %v625 = vsub.s32 1, %v624
          %v626 = vrot.slane %v500, %v625
          %v627 = vmul.f32 %v622, %v626
          %v628 = vmul.f32 %v621, %v626
          %v629 = vmul.f32 %v620, %v626
          %v630 = vmul.f32 %v619, %v626
          %v631 = vmul.f32 %v618, %v626
          %v632 = vmul.f32 %v617, %v626
          %v633 = vmul.f32 %v616, %v626
          %v634 = vmul.f32 %v615, %v626
          %v635 = vmul.f32 %v614, %v626
          %v636 = vmul.f32 %v613, %v626
          %v637 = vmul.f32 %v612, %v626
          %v638 = vmul.f32 %v611, %v626
          %v639 = vmul.f32 %v610, %v626
          %v640 = vmul.f32 %v609, %v626
          %v641 = vmul.f32 %v608, %v626
          %v642 = vmul.f32 %v607, %v626
          %v643 = vadd.f32 %v574, %v627
          %v644 = vadd.f32 %v575, %v628
          %v645 = vadd.f32 %v576, %v629
          %v646 = vadd.f32 %v577, %v630
          %v647 = vadd.f32 %v578, %v631
          %v648 = vadd.f32 %v579, %v632
          %v649 = vadd.f32 %v580, %v633
          %v650 = vadd.f32 %v581, %v634
          %v651 = vadd.f32 %v582, %v635
          %v652 = vadd.f32 %v583, %v636
          %v653 = vadd.f32 %v584, %v637
          %v654 = vadd.f32 %v585, %v638
          %v655 = vadd.f32 %v586, %v639
          %v656 = vadd.f32 %v587, %v640
          %v657 = vadd.f32 %v588, %v641
          %v658 = vadd.f32 %v589, %v642
          %v659 = vrot.slane %v482, 7
          %v660 = vrot.slane %v483, 7
          %v661 = vrot.slane %v484, 7
          %v662 = vrot.slane %v485, 7
          %v663 = vrot.slane %v486, 7
          %v664 = vrot.slane %v487, 7
          %v665 = vrot.slane %v488, 7
          %v666 = vrot.slane %v489, 7
          %v667 = vrot.slane %v490, 7
          %v668 = vrot.slane %v491, 7
          %v669 = vrot.slane %v492, 7
          %v670 = vrot.slane %v493, 7
          %v671 = vrot.slane %v494, 7
          %v672 = vrot.slane %v495, 7
          %v673 = vrot.slane %v496, 7
          %v674 = vrot.slane %v497, 7
          %vm675 = vcmp.lt.s32.totalorder %v395, 1
          %v676 = vsel %vm675, %v673, %v674
          %v677 = vsel %vm675, %v672, %v673
          %v678 = vsel %vm675, %v671, %v672
          %v679 = vsel %vm675, %v670, %v671
          %v680 = vsel %vm675, %v669, %v670
          %v681 = vsel %vm675, %v668, %v669
          %v682 = vsel %vm675, %v667, %v668
          %v683 = vsel %vm675, %v666, %v667
          %v684 = vsel %vm675, %v665, %v666
          %v685 = vsel %vm675, %v664, %v665
          %v686 = vsel %vm675, %v663, %v664
          %v687 = vsel %vm675, %v662, %v663
          %v688 = vsel %vm675, %v661, %v662
          %v689 = vsel %vm675, %v660, %v661
          %v690 = vsel %vm675, %v659, %v660
          %v691 = vsel %vm675, %v674, %v659
          %v692 = vlaneseq
          %v693 = vshrl.u32 %v692, 7
          %v694 = vsub.s32 2, %v693
          %v695 = vrot.slane %v500, %v694
          %v696 = vmul.f32 %v691, %v695
          %v697 = vmul.f32 %v690, %v695
          %v698 = vmul.f32 %v689, %v695
          %v699 = vmul.f32 %v688, %v695
          %v700 = vmul.f32 %v687, %v695
          %v701 = vmul.f32 %v686, %v695
          %v702 = vmul.f32 %v685, %v695
          %v703 = vmul.f32 %v684, %v695
          %v704 = vmul.f32 %v683, %v695
          %v705 = vmul.f32 %v682, %v695
          %v706 = vmul.f32 %v681, %v695
          %v707 = vmul.f32 %v680, %v695
          %v708 = vmul.f32 %v679, %v695
          %v709 = vmul.f32 %v678, %v695
          %v710 = vmul.f32 %v677, %v695
          %v711 = vmul.f32 %v676, %v695
          %v712 = vadd.f32 %v643, %v696
          %v713 = vadd.f32 %v644, %v697
          %v714 = vadd.f32 %v645, %v698
          %v715 = vadd.f32 %v646, %v699
          %v716 = vadd.f32 %v647, %v700
          %v717 = vadd.f32 %v648, %v701
          %v718 = vadd.f32 %v649, %v702
          %v719 = vadd.f32 %v650, %v703
          %v720 = vadd.f32 %v651, %v704
          %v721 = vadd.f32 %v652, %v705
          %v722 = vadd.f32 %v653, %v706
          %v723 = vadd.f32 %v654, %v707
          %v724 = vadd.f32 %v655, %v708
          %v725 = vadd.f32 %v656, %v709
          %v726 = vadd.f32 %v657, %v710
          %v727 = vadd.f32 %v658, %v711
          %v728 = vrot.slane %v482, 1
          %v729 = vrot.slane %v483, 1
          %v730 = vrot.slane %v484, 1
          %v731 = vrot.slane %v485, 1
          %v732 = vrot.slane %v486, 1
          %v733 = vrot.slane %v487, 1
          %v734 = vrot.slane %v488, 1
          %v735 = vrot.slane %v489, 1
          %v736 = vrot.slane %v490, 1
          %v737 = vrot.slane %v491, 1
          %v738 = vrot.slane %v492, 1
          %v739 = vrot.slane %v493, 1
          %v740 = vrot.slane %v494, 1
          %v741 = vrot.slane %v495, 1
          %v742 = vrot.slane %v496, 1
          %v743 = vrot.slane %v497, 1
          %vm744 = vcmp.lt.s32.totalorder %v395, 7
          %v745 = vsel %vm744, %v742, %v743
          %v746 = vsel %vm744, %v741, %v742
          %v747 = vsel %vm744, %v740, %v741
          %v748 = vsel %vm744, %v739, %v740
          %v749 = vsel %vm744, %v738, %v739
          %v750 = vsel %vm744, %v737, %v738
          %v751 = vsel %vm744, %v736, %v737
          %v752 = vsel %vm744, %v735, %v736
          %v753 = vsel %vm744, %v734, %v735
          %v754 = vsel %vm744, %v733, %v734
          %v755 = vsel %vm744, %v732, %v733
          %v756 = vsel %vm744, %v731, %v732
          %v757 = vsel %vm744, %v730, %v731
          %v758 = vsel %vm744, %v729, %v730
          %v759 = vsel %vm744, %v728, %v729
          %v760 = vsel %vm744, %v743, %v728
          %v761 = vlaneseq
          %v762 = vshrl.u32 %v761, 7
          %v763 = vsub.s32 4, %v762
          %v764 = vrot.slane %v500, %v763
          %v765 = vmul.f32 %v759, %v764
          %v766 = vmul.f32 %v758, %v764
          %v767 = vmul.f32 %v757, %v764
          %v768 = vmul.f32 %v756, %v764
          %v769 = vmul.f32 %v755, %v764
          %v770 = vmul.f32 %v754, %v764
          %v771 = vmul.f32 %v753, %v764
          %v772 = vmul.f32 %v752, %v764
          %v773 = vmul.f32 %v751, %v764
          %v774 = vmul.f32 %v750, %v764
          %v775 = vmul.f32 %v749, %v764
          %v776 = vmul.f32 %v748, %v764
          %v777 = vmul.f32 %v747, %v764
          %v778 = vmul.f32 %v746, %v764
          %v779 = vmul.f32 %v745, %v764
          %v780 = vmul.f32 %v760, %v764
          %v781 = vadd.f32 %v712, %v765
          %v782 = vadd.f32 %v713, %v766
          %v783 = vadd.f32 %v714, %v767
          %v784 = vadd.f32 %v715, %v768
          %v785 = vadd.f32 %v716, %v769
          %v786 = vadd.f32 %v717, %v770
          %v787 = vadd.f32 %v718, %v771
          %v788 = vadd.f32 %v719, %v772
          %v789 = vadd.f32 %v720, %v773
          %v790 = vadd.f32 %v721, %v774
          %v791 = vadd.f32 %v722, %v775
          %v792 = vadd.f32 %v723, %v776
          %v793 = vadd.f32 %v724, %v777
          %v794 = vadd.f32 %v725, %v778
          %v795 = vadd.f32 %v726, %v779
          %v796 = vadd.f32 %v727, %v780
          %v797 = vrot.slane %v482, 2
          %v798 = vrot.slane %v483, 2
          %v799 = vrot.slane %v484, 2
          %v800 = vrot.slane %v485, 2
          %v801 = vrot.slane %v486, 2
          %v802 = vrot.slane %v487, 2
          %v803 = vrot.slane %v488, 2
          %v804 = vrot.slane %v489, 2
          %v805 = vrot.slane %v490, 2
          %v806 = vrot.slane %v491, 2
          %v807 = vrot.slane %v492, 2
          %v808 = vrot.slane %v493, 2
          %v809 = vrot.slane %v494, 2
          %v810 = vrot.slane %v495, 2
          %v811 = vrot.slane %v496, 2
          %v812 = vrot.slane %v497, 2
          %vm813 = vcmp.lt.s32.totalorder %v395, 6
          %v814 = vsel %vm813, %v811, %v812
          %v815 = vsel %vm813, %v810, %v811
          %v816 = vsel %vm813, %v809, %v810
          %v817 = vsel %vm813, %v808, %v809
          %v818 = vsel %vm813, %v807, %v808
          %v819 = vsel %vm813, %v806, %v807
          %v820 = vsel %vm813, %v805, %v806
          %v821 = vsel %vm813, %v804, %v805
          %v822 = vsel %vm813, %v803, %v804
          %v823 = vsel %vm813, %v802, %v803
          %v824 = vsel %vm813, %v801, %v802
          %v825 = vsel %vm813, %v800, %v801
          %v826 = vsel %vm813, %v799, %v800
          %v827 = vsel %vm813, %v798, %v799
          %v828 = vsel %vm813, %v797, %v798
          %v829 = vsel %vm813, %v812, %v797
          %v830 = vlaneseq
          %v831 = vshrl.u32 %v830, 7
          %v832 = vsub.s32 5, %v831
          %v833 = vrot.slane %v500, %v832
          %v834 = vmul.f32 %v828, %v833
          %v835 = vmul.f32 %v827, %v833
          %v836 = vmul.f32 %v826, %v833
          %v837 = vmul.f32 %v825, %v833
          %v838 = vmul.f32 %v824, %v833
          %v839 = vmul.f32 %v823, %v833
          %v840 = vmul.f32 %v822, %v833
          %v841 = vmul.f32 %v821, %v833
          %v842 = vmul.f32 %v820, %v833
          %v843 = vmul.f32 %v819, %v833
          %v844 = vmul.f32 %v818, %v833
          %v845 = vmul.f32 %v817, %v833
          %v846 = vmul.f32 %v816, %v833
          %v847 = vmul.f32 %v815, %v833
          %v848 = vmul.f32 %v814, %v833
          %v849 = vmul.f32 %v829, %v833
          %v850 = vadd.f32 %v781, %v834
          %v851 = vadd.f32 %v782, %v835
          %v852 = vadd.f32 %v783, %v836
          %v853 = vadd.f32 %v784, %v837
          %v854 = vadd.f32 %v785, %v838
          %v855 = vadd.f32 %v786, %v839
          %v856 = vadd.f32 %v787, %v840
          %v857 = vadd.f32 %v788, %v841
          %v858 = vadd.f32 %v789, %v842
          %v859 = vadd.f32 %v790, %v843
          %v860 = vadd.f32 %v791, %v844
          %v861 = vadd.f32 %v792, %v845
          %v862 = vadd.f32 %v793, %v846
          %v863 = vadd.f32 %v794, %v847
          %v864 = vadd.f32 %v795, %v848
          %v865 = vadd.f32 %v796, %v849
          %v866 = vrot.slane %v482, 3
          %v867 = vrot.slane %v483, 3
          %v868 = vrot.slane %v484, 3
          %v869 = vrot.slane %v485, 3
          %v870 = vrot.slane %v486, 3
          %v871 = vrot.slane %v487, 3
          %v872 = vrot.slane %v488, 3
          %v873 = vrot.slane %v489, 3
          %v874 = vrot.slane %v490, 3
          %v875 = vrot.slane %v491, 3
          %v876 = vrot.slane %v492, 3
          %v877 = vrot.slane %v493, 3
          %v878 = vrot.slane %v494, 3
          %v879 = vrot.slane %v495, 3
          %v880 = vrot.slane %v496, 3
          %v881 = vrot.slane %v497, 3
          %vm882 = vcmp.lt.s32.totalorder %v395, 5
          %v883 = vsel %vm882, %v880, %v881
          %v884 = vsel %vm882, %v879, %v880
          %v885 = vsel %vm882, %v878, %v879
          %v886 = vsel %vm882, %v877, %v878
          %v887 = vsel %vm882, %v876, %v877
          %v888 = vsel %vm882, %v875, %v876
          %v889 = vsel %vm882, %v874, %v875
          %v890 = vsel %vm882, %v873, %v874
          %v891 = vsel %vm882, %v872, %v873
          %v892 = vsel %vm882, %v871, %v872
          %v893 = vsel %vm882, %v870, %v871
          %v894 = vsel %vm882, %v869, %v870
          %v895 = vsel %vm882, %v868, %v869
          %v896 = vsel %vm882, %v867, %v868
          %v897 = vsel %vm882, %v866, %v867
          %v898 = vsel %vm882, %v881, %v866
          %v899 = vlaneseq
          %v900 = vshrl.u32 %v899, 7
          %v901 = vsub.s32 6, %v900
          %v902 = vrot.slane %v500, %v901
          %v903 = vmul.f32 %v897, %v902
          %v904 = vmul.f32 %v896, %v902
          %v905 = vmul.f32 %v895, %v902
          %v906 = vmul.f32 %v894, %v902
          %v907 = vmul.f32 %v893, %v902
          %v908 = vmul.f32 %v892, %v902
          %v909 = vmul.f32 %v891, %v902
          %v910 = vmul.f32 %v890, %v902
          %v911 = vmul.f32 %v889, %v902
          %v912 = vmul.f32 %v888, %v902
          %v913 = vmul.f32 %v887, %v902
          %v914 = vmul.f32 %v886, %v902
          %v915 = vmul.f32 %v885, %v902
          %v916 = vmul.f32 %v884, %v902
          %v917 = vmul.f32 %v883, %v902
          %v918 = vmul.f32 %v898, %v902
          %v919 = vadd.f32 %v850, %v903
          %v920 = vadd.f32 %v851, %v904
          %v921 = vadd.f32 %v852, %v905
          %v922 = vadd.f32 %v853, %v906
          %v923 = vadd.f32 %v854, %v907
          %v924 = vadd.f32 %v855, %v908
          %v925 = vadd.f32 %v856, %v909
          %v926 = vadd.f32 %v857, %v910
          %v927 = vadd.f32 %v858, %v911
          %v928 = vadd.f32 %v859, %v912
          %v929 = vadd.f32 %v860, %v913
          %v930 = vadd.f32 %v861, %v914
          %v931 = vadd.f32 %v862, %v915
          %v932 = vadd.f32 %v863, %v916
          %v933 = vadd.f32 %v864, %v917
          %v934 = vadd.f32 %v865, %v918
          %s935 = scalar_lea.vmem %s3, %s477
          %v936 = vld [vmem:[%s935] sm:$0x1]
          %v938 = vlaneseq
          %v939 = vshrl.u32 %v938, 7
          %v940 = vsub.s32 0, %v939
          %v941 = vrot.slane %v936, %v940
          %v943 = vadd.f32 %v919, %v941
          %v944 = vadd.f32 %v920, %v941
          %v945 = vadd.f32 %v921, %v941
          %v946 = vadd.f32 %v922, %v941
          %v947 = vadd.f32 %v923, %v941
          %v948 = vadd.f32 %v924, %v941
          %v949 = vadd.f32 %v925, %v941
          %v950 = vadd.f32 %v926, %v941
          %v951 = vadd.f32 %v927, %v941
          %v952 = vadd.f32 %v928, %v941
          %v953 = vadd.f32 %v929, %v941
          %v954 = vadd.f32 %v930, %v941
          %v955 = vadd.f32 %v931, %v941
          %v956 = vadd.f32 %v932, %v941
          %v957 = vadd.f32 %v933, %v941
          %v958 = vadd.f32 %v934, %v941
          %vm959 = vcmask 261120
          %v960 = vsel %vm959, %v943, 0.0
          %961 = vadd.xlane.f32.xlu0 %v960
          %v962 = vpop.xlane.xlu0 %961
          %v963 = vsel %vm959, %v944, 0.0
          %964 = vadd.xlane.f32.xlu0 %v963
          %v965 = vpop.xlane.xlu0 %964
          %v966 = vsel %vm959, %v945, 0.0
          %967 = vadd.xlane.f32.xlu0 %v966
          %v968 = vpop.xlane.xlu0 %967
          %v969 = vsel %vm959, %v946, 0.0
          %970 = vadd.xlane.f32.xlu0 %v969
          %v971 = vpop.xlane.xlu0 %970
          %v972 = vsel %vm959, %v947, 0.0
          %973 = vadd.xlane.f32.xlu0 %v972
          %v974 = vpop.xlane.xlu0 %973
          %v975 = vsel %vm959, %v948, 0.0
          %976 = vadd.xlane.f32.xlu0 %v975
          %v977 = vpop.xlane.xlu0 %976
          %v978 = vsel %vm959, %v949, 0.0
          %979 = vadd.xlane.f32.xlu0 %v978
          %v980 = vpop.xlane.xlu0 %979
          %v981 = vsel %vm959, %v950, 0.0
          %982 = vadd.xlane.f32.xlu0 %v981
          %v983 = vpop.xlane.xlu0 %982
          %v984 = vsel %vm959, %v951, 0.0
          %985 = vadd.xlane.f32.xlu0 %v984
          %v986 = vpop.xlane.xlu0 %985
          %v987 = vsel %vm959, %v952, 0.0
          %988 = vadd.xlane.f32.xlu0 %v987
          %v989 = vpop.xlane.xlu0 %988
          %v990 = vsel %vm959, %v953, 0.0
          %991 = vadd.xlane.f32.xlu0 %v990
          %v992 = vpop.xlane.xlu0 %991
          %v993 = vsel %vm959, %v954, 0.0
          %994 = vadd.xlane.f32.xlu0 %v993
          %v995 = vpop.xlane.xlu0 %994
          %v996 = vsel %vm959, %v955, 0.0
          %997 = vadd.xlane.f32.xlu0 %v996
          %v998 = vpop.xlane.xlu0 %997
          %v999 = vsel %vm959, %v956, 0.0
          %1000 = vadd.xlane.f32.xlu0 %v999
          %v1001 = vpop.xlane.xlu0 %1000
          %v1002 = vsel %vm959, %v957, 0.0
          %1003 = vadd.xlane.f32.xlu0 %v1002
          %v1004 = vpop.xlane.xlu0 %1003
          %v1005 = vsel %vm959, %v958, 0.0
          %1006 = vadd.xlane.f32.xlu0 %v1005
          %v1007 = vpop.xlane.xlu0 %1006
          %v1008 = vrcp.pop 32.0
          %v1009 = vmul.f32 %v962, %v1008
          %v1010 = vmul.f32 %v965, %v1008
          %v1011 = vmul.f32 %v968, %v1008
          %v1012 = vmul.f32 %v971, %v1008
          %v1013 = vmul.f32 %v974, %v1008
          %v1014 = vmul.f32 %v977, %v1008
          %v1015 = vmul.f32 %v980, %v1008
          %v1016 = vmul.f32 %v983, %v1008
          %v1017 = vmul.f32 %v986, %v1008
          %v1018 = vmul.f32 %v989, %v1008
          %v1019 = vmul.f32 %v992, %v1008
          %v1020 = vmul.f32 %v995, %v1008
          %v1021 = vmul.f32 %v998, %v1008
          %v1022 = vmul.f32 %v1001, %v1008
          %v1023 = vmul.f32 %v1004, %v1008
          %v1024 = vmul.f32 %v1007, %v1008
          %v1025 = vsub.f32 %v943, %v1009
          %v1026 = vsub.f32 %v944, %v1010
          %v1027 = vsub.f32 %v945, %v1011
          %v1028 = vsub.f32 %v946, %v1012
          %v1029 = vsub.f32 %v947, %v1013
          %v1030 = vsub.f32 %v948, %v1014
          %v1031 = vsub.f32 %v949, %v1015
          %v1032 = vsub.f32 %v950, %v1016
          %v1033 = vsub.f32 %v951, %v1017
          %v1034 = vsub.f32 %v952, %v1018
          %v1035 = vsub.f32 %v953, %v1019
          %v1036 = vsub.f32 %v954, %v1020
          %v1037 = vsub.f32 %v955, %v1021
          %v1038 = vsub.f32 %v956, %v1022
          %v1039 = vsub.f32 %v957, %v1023
          %v1040 = vsub.f32 %v958, %v1024
          %v1041 = vmul.f32 %v1025, %v1025
          %v1042 = vmul.f32 %v1026, %v1026
          %v1043 = vmul.f32 %v1027, %v1027
          %v1044 = vmul.f32 %v1028, %v1028
          %v1045 = vmul.f32 %v1029, %v1029
          %v1046 = vmul.f32 %v1030, %v1030
          %v1047 = vmul.f32 %v1031, %v1031
          %v1048 = vmul.f32 %v1032, %v1032
          %v1049 = vmul.f32 %v1033, %v1033
          %v1050 = vmul.f32 %v1034, %v1034
          %v1051 = vmul.f32 %v1035, %v1035
          %v1052 = vmul.f32 %v1036, %v1036
          %v1053 = vmul.f32 %v1037, %v1037
          %v1054 = vmul.f32 %v1038, %v1038
          %v1055 = vmul.f32 %v1039, %v1039
          %v1056 = vmul.f32 %v1040, %v1040
          %v1057 = vsel %vm959, %v1041, 0.0
          %1058 = vadd.xlane.f32.xlu0 %v1057
          %v1059 = vpop.xlane.xlu0 %1058
          %v1060 = vsel %vm959, %v1042, 0.0
          %1061 = vadd.xlane.f32.xlu0 %v1060
          %v1062 = vpop.xlane.xlu0 %1061
          %v1063 = vsel %vm959, %v1043, 0.0
          %1064 = vadd.xlane.f32.xlu0 %v1063
          %v1065 = vpop.xlane.xlu0 %1064
          %v1066 = vsel %vm959, %v1044, 0.0
          %1067 = vadd.xlane.f32.xlu0 %v1066
          %v1068 = vpop.xlane.xlu0 %1067
          %v1069 = vsel %vm959, %v1045, 0.0
          %1070 = vadd.xlane.f32.xlu0 %v1069
          %v1071 = vpop.xlane.xlu0 %1070
          %v1072 = vsel %vm959, %v1046, 0.0
          %1073 = vadd.xlane.f32.xlu0 %v1072
          %v1074 = vpop.xlane.xlu0 %1073
          %v1075 = vsel %vm959, %v1047, 0.0
          %1076 = vadd.xlane.f32.xlu0 %v1075
          %v1077 = vpop.xlane.xlu0 %1076
          %v1078 = vsel %vm959, %v1048, 0.0
          %1079 = vadd.xlane.f32.xlu0 %v1078
          %v1080 = vpop.xlane.xlu0 %1079
          %v1081 = vsel %vm959, %v1049, 0.0
          %1082 = vadd.xlane.f32.xlu0 %v1081
          %v1083 = vpop.xlane.xlu0 %1082
          %v1084 = vsel %vm959, %v1050, 0.0
          %1085 = vadd.xlane.f32.xlu0 %v1084
          %v1086 = vpop.xlane.xlu0 %1085
          %v1087 = vsel %vm959, %v1051, 0.0
          %1088 = vadd.xlane.f32.xlu0 %v1087
          %v1089 = vpop.xlane.xlu0 %1088
          %v1090 = vsel %vm959, %v1052, 0.0
          %1091 = vadd.xlane.f32.xlu0 %v1090
          %v1092 = vpop.xlane.xlu0 %1091
          %v1093 = vsel %vm959, %v1053, 0.0
          %1094 = vadd.xlane.f32.xlu0 %v1093
          %v1095 = vpop.xlane.xlu0 %1094
          %v1096 = vsel %vm959, %v1054, 0.0
          %1097 = vadd.xlane.f32.xlu0 %v1096
          %v1098 = vpop.xlane.xlu0 %1097
          %v1099 = vsel %vm959, %v1055, 0.0
          %1100 = vadd.xlane.f32.xlu0 %v1099
          %v1101 = vpop.xlane.xlu0 %1100
          %v1102 = vsel %vm959, %v1056, 0.0
          %1103 = vadd.xlane.f32.xlu0 %v1102
          %v1104 = vpop.xlane.xlu0 %1103
          %v1105 = vmul.f32 %v1059, %v1008
          %v1106 = vmul.f32 %v1062, %v1008
          %v1107 = vmul.f32 %v1065, %v1008
          %v1108 = vmul.f32 %v1068, %v1008
          %v1109 = vmul.f32 %v1071, %v1008
          %v1110 = vmul.f32 %v1074, %v1008
          %v1111 = vmul.f32 %v1077, %v1008
          %v1112 = vmul.f32 %v1080, %v1008
          %v1113 = vmul.f32 %v1083, %v1008
          %v1114 = vmul.f32 %v1086, %v1008
          %v1115 = vmul.f32 %v1089, %v1008
          %v1116 = vmul.f32 %v1092, %v1008
          %v1117 = vmul.f32 %v1095, %v1008
          %v1118 = vmul.f32 %v1098, %v1008
          %v1119 = vmul.f32 %v1101, %v1008
          %v1120 = vmul.f32 %v1104, %v1008
          %v1121 = vadd.f32 %v1105, 1e-05
          %v1122 = vadd.f32 %v1106, 1e-05
          %v1123 = vadd.f32 %v1107, 1e-05
          %v1124 = vadd.f32 %v1108, 1e-05
          %v1125 = vadd.f32 %v1109, 1e-05
          %v1126 = vadd.f32 %v1110, 1e-05
          %v1127 = vadd.f32 %v1111, 1e-05
          %v1128 = vadd.f32 %v1112, 1e-05
          %v1129 = vadd.f32 %v1113, 1e-05
          %v1130 = vadd.f32 %v1114, 1e-05
          %v1131 = vadd.f32 %v1115, 1e-05
          %v1132 = vadd.f32 %v1116, 1e-05
          %v1133 = vadd.f32 %v1117, 1e-05
          %v1134 = vadd.f32 %v1118, 1e-05
          %v1135 = vadd.f32 %v1119, 1e-05
          %v1136 = vadd.f32 %v1120, 1e-05
          %v1137 = vrsqrt.pop %v1121
          %v1138 = vrsqrt.pop %v1122
          %v1139 = vrsqrt.pop %v1123
          %v1140 = vrsqrt.pop %v1124
          %v1141 = vrsqrt.pop %v1125
          %v1142 = vrsqrt.pop %v1126
          %v1143 = vrsqrt.pop %v1127
          %v1144 = vrsqrt.pop %v1128
          %v1145 = vrsqrt.pop %v1129
          %v1146 = vrsqrt.pop %v1130
          %v1147 = vrsqrt.pop %v1131
          %v1148 = vrsqrt.pop %v1132
          %v1149 = vrsqrt.pop %v1133
          %v1150 = vrsqrt.pop %v1134
          %v1151 = vrsqrt.pop %v1135
          %v1152 = vrsqrt.pop %v1136
          %v1153 = vmul.f32 %v1025, %v1137
          %v1154 = vmul.f32 %v1026, %v1138
          %v1155 = vmul.f32 %v1027, %v1139
          %v1156 = vmul.f32 %v1028, %v1140
          %v1157 = vmul.f32 %v1029, %v1141
          %v1158 = vmul.f32 %v1030, %v1142
          %v1159 = vmul.f32 %v1031, %v1143
          %v1160 = vmul.f32 %v1032, %v1144
          %v1161 = vmul.f32 %v1033, %v1145
          %v1162 = vmul.f32 %v1034, %v1146
          %v1163 = vmul.f32 %v1035, %v1147
          %v1164 = vmul.f32 %v1036, %v1148
          %v1165 = vmul.f32 %v1037, %v1149
          %v1166 = vmul.f32 %v1038, %v1150
          %v1167 = vmul.f32 %v1039, %v1151
          %v1168 = vmul.f32 %v1040, %v1152
          %s1169 = scalar_lea.vmem %s4, %s477
          %v1170 = vld [vmem:[%s1169] sm:$0x1]
          %v1172 = vlaneseq
          %v1173 = vshrl.u32 %v1172, 7
          %v1174 = vsub.s32 0, %v1173
          %v1175 = vrot.slane %v1170, %v1174
          %v1177 = vmul.f32 %v1153, %v1175
          %v1178 = vmul.f32 %v1154, %v1175
          %v1179 = vmul.f32 %v1155, %v1175
          %v1180 = vmul.f32 %v1156, %v1175
          %v1181 = vmul.f32 %v1157, %v1175
          %v1182 = vmul.f32 %v1158, %v1175
          %v1183 = vmul.f32 %v1159, %v1175
          %v1184 = vmul.f32 %v1160, %v1175
          %v1185 = vmul.f32 %v1161, %v1175
          %v1186 = vmul.f32 %v1162, %v1175
          %v1187 = vmul.f32 %v1163, %v1175
          %v1188 = vmul.f32 %v1164, %v1175
          %v1189 = vmul.f32 %v1165, %v1175
          %v1190 = vmul.f32 %v1166, %v1175
          %v1191 = vmul.f32 %v1167, %v1175
          %v1192 = vmul.f32 %v1168, %v1175
          %s1193 = scalar_lea.vmem %s5, %s477
          %v1194 = vld [vmem:[%s1193] sm:$0x1]
          %v1196 = vlaneseq
          %v1197 = vshrl.u32 %v1196, 7
          %v1198 = vsub.s32 0, %v1197
          %v1199 = vrot.slane %v1194, %v1198
          %v1201 = vadd.f32 %v1177, %v1199
          %v1202 = vadd.f32 %v1178, %v1199
          %v1203 = vadd.f32 %v1179, %v1199
          %v1204 = vadd.f32 %v1180, %v1199
          %v1205 = vadd.f32 %v1181, %v1199
          %v1206 = vadd.f32 %v1182, %v1199
          %v1207 = vadd.f32 %v1183, %v1199
          %v1208 = vadd.f32 %v1184, %v1199
          %v1209 = vadd.f32 %v1185, %v1199
          %v1210 = vadd.f32 %v1186, %v1199
          %v1211 = vadd.f32 %v1187, %v1199
          %v1212 = vadd.f32 %v1188, %v1199
          %v1213 = vadd.f32 %v1189, %v1199
          %v1214 = vadd.f32 %v1190, %v1199
          %v1215 = vadd.f32 %v1191, %v1199
          %v1216 = vadd.f32 %v1192, %v1199
          %v1217 = vpack.c.bf16 %v1202, %v1201
          %v1218 = vpack.c.bf16 %v1204, %v1203
          %v1219 = vpack.c.bf16 %v1206, %v1205
          %v1220 = vpack.c.bf16 %v1208, %v1207
          %v1221 = vpack.c.bf16 %v1210, %v1209
          %v1222 = vpack.c.bf16 %v1212, %v1211
          %v1223 = vpack.c.bf16 %v1214, %v1213
          %v1224 = vpack.c.bf16 %v1216, %v1215
          %s1225 = smul.u32 %s477, 4
          %s1226 = smul.addr %s1225, 4
          %s1227 = scalar_lea.vmem %s6, %s1226
          %v1228 = vld [vmem:[%s1227] sm:$0xf]
          %v1229 = vld [vmem:[%s1227 + $0x4] sm:$0xf]
          %v1230 = vld [vmem:[%s1227 + $0x8] sm:$0xf]
          %v1231 = vld [vmem:[%s1227 + $0xc] sm:$0xf]
          %s1232 = scalar_lea.vmem %s7, %s477
          %v1233 = vld [vmem:[%s1232] sm:$0x1]
          %v1235 = vlaneseq
          %v1236 = vshrl.u32 %v1235, 7
          %v1237 = vsub.s32 0, %v1236
          %v1238 = vrot.slane %v1233, %v1237
          %v1244 = vunpack.c.l.b16 %v1228
          %v1245 = vunpack.c.l.b16 %v1229
          %v1246 = vunpack.c.l.b16 %v1230
          %v1247 = vunpack.c.l.b16 %v1231
          %v1248 = vpack.c.b16 %v1245, %v1244
          %v1249 = vpack.c.b16 %v1247, %v1246
          %v1253 = vsel %vm959, %v1217, 0
          %v1256 = vsel %vm959, %v1218, 0
          %v1259 = vsel %vm959, %v1219, 0
          %v1262 = vsel %vm959, %v1220, 0
          %v1265 = vsel %vm959, %v1221, 0
          %v1268 = vsel %vm959, %v1222, 0
          %v1271 = vsel %vm959, %v1223, 0
          %v1274 = vsel %vm959, %v1224, 0
          %1276 = vmatprep.subr.bf16.mxu0 0
          %1277 = vmatpush1.bf16.msra.mxu0 %v1248
          %1278 = vmatprep.subr.bf16.mxu0 0
          %1279 = vmatpush1.bf16.msra.mxu0 %v1249
          %1280 = vmatprep.subr.bf16.mxu0 0
          %1281 = vmatpush1.bf16.msra.mxu0 0
          %1282 = vmatprep.subr.bf16.mxu0 0
          %1283 = vmatpush1.bf16.msra.mxu0 0
          %1284 = vmatprep.subr.bf16.mxu0 0
          %1285 = vmatpush1.bf16.msra.mxu0 0
          %1286 = vmatprep.subr.bf16.mxu0 0
          %1287 = vmatpush1.bf16.msra.mxu0 0
          %1288 = vmatprep.subr.bf16.mxu0 0
          %1289 = vmatpush1.bf16.msra.mxu0 0
          %1290 = vmatprep.subr.bf16.mxu0 0
          %1291 = vmatpush1.bf16.msra.mxu0 0
          %1292 = vmatprep.subr.bf16.mxu0 0
          %1293 = vmatpush1.bf16.msra.mxu0 0
          %1294 = vmatprep.subr.bf16.mxu0 0
          %1295 = vmatpush1.bf16.msra.mxu0 0
          %1296 = vmatprep.subr.bf16.mxu0 0
          %1297 = vmatpush1.bf16.msra.mxu0 0
          %1298 = vmatprep.subr.bf16.mxu0 0
          %1299 = vmatpush1.bf16.msra.mxu0 0
          %1300 = vmatprep.subr.bf16.mxu0 0
          %1301 = vmatpush1.bf16.msra.mxu0 0
          %1302 = vmatprep.subr.bf16.mxu0 0
          %1303 = vmatpush1.bf16.msra.mxu0 0
          %1304 = vmatprep.subr.bf16.mxu0 0
          %1305 = vmatpush1.bf16.msra.mxu0 0
          %1306 = vmatprep.subr.bf16.mxu0 0
          %1307 = vmatpush1.bf16.msra.mxu0 0
          %1308 = vmatprep.mubr.bf16.mxu0 0
          %1309 = vmatmul.mubr.bf16.gmra.mrb[0].mxu0 %v1253
          %v1310 = vpop.f32.mrb[0].mxu0
          %v1311 = vadd.f32 %v1238, %v1310
          %v1312 = vpop.f32.mrb[0].mxu0
          %v1313 = vpop.f32.mrb[0].mxu0
          %v1314 = vadd.f32 %v1238, %v1313
          %v1315 = vpop.f32.mrb[0].mxu0
          %1316 = vmatprep.mubr.bf16.mxu0 0
          %1317 = vmatmul.mubr.bf16.gmra.mrb[0].mxu0 %v1256
          %v1318 = vpop.f32.mrb[0].mxu0
          %v1319 = vadd.f32 %v1238, %v1318
          %v1320 = vpop.f32.mrb[0].mxu0
          %v1321 = vpop.f32.mrb[0].mxu0
          %v1322 = vadd.f32 %v1238, %v1321
          %v1323 = vpop.f32.mrb[0].mxu0
          %1324 = vmatprep.mubr.bf16.mxu0 0
          %1325 = vmatmul.mubr.bf16.gmra.mrb[0].mxu0 %v1259
          %v1326 = vpop.f32.mrb[0].mxu0
          %v1327 = vadd.f32 %v1238, %v1326
          %v1328 = vpop.f32.mrb[0].mxu0
          %v1329 = vpop.f32.mrb[0].mxu0
          %v1330 = vadd.f32 %v1238, %v1329
          %v1331 = vpop.f32.mrb[0].mxu0
          %1332 = vmatprep.mubr.bf16.mxu0 0
          %1333 = vmatmul.mubr.bf16.gmra.mrb[0].mxu0 %v1262
          %v1334 = vpop.f32.mrb[0].mxu0
          %v1335 = vadd.f32 %v1238, %v1334
          %v1336 = vpop.f32.mrb[0].mxu0
          %v1337 = vpop.f32.mrb[0].mxu0
          %v1338 = vadd.f32 %v1238, %v1337
          %v1339 = vpop.f32.mrb[0].mxu0
          %1340 = vmatprep.mubr.bf16.mxu0 0
          %1341 = vmatmul.mubr.bf16.gmra.mrb[0].mxu0 %v1265
          %v1342 = vpop.f32.mrb[0].mxu0
          %v1343 = vadd.f32 %v1238, %v1342
          %v1344 = vpop.f32.mrb[0].mxu0
          %v1345 = vpop.f32.mrb[0].mxu0
          %v1346 = vadd.f32 %v1238, %v1345
          %v1347 = vpop.f32.mrb[0].mxu0
          %1348 = vmatprep.mubr.bf16.mxu0 0
          %1349 = vmatmul.mubr.bf16.gmra.mrb[0].mxu0 %v1268
          %v1350 = vpop.f32.mrb[0].mxu0
          %v1351 = vadd.f32 %v1238, %v1350
          %v1352 = vpop.f32.mrb[0].mxu0
          %v1353 = vpop.f32.mrb[0].mxu0
          %v1354 = vadd.f32 %v1238, %v1353
          %v1355 = vpop.f32.mrb[0].mxu0
          %1356 = vmatprep.mubr.bf16.mxu0 0
          %1357 = vmatmul.mubr.bf16.gmra.mrb[0].mxu0 %v1271
          %v1358 = vpop.f32.mrb[0].mxu0
          %v1359 = vadd.f32 %v1238, %v1358
          %v1360 = vpop.f32.mrb[0].mxu0
          %v1361 = vpop.f32.mrb[0].mxu0
          %v1362 = vadd.f32 %v1238, %v1361
          %v1363 = vpop.f32.mrb[0].mxu0
          %1364 = vmatprep.mubr.bf16.mxu0 0
          %1365 = vmatmul.mubr.bf16.gmra.mrb[0].mxu0 %v1274
          %v1366 = vpop.f32.mrb[0].mxu0
          %v1367 = vadd.f32 %v1238, %v1366
          %v1368 = vpop.f32.mrb[0].mxu0
          %v1369 = vpop.f32.mrb[0].mxu0
          %v1370 = vadd.f32 %v1238, %v1369
          %v1371 = vpop.f32.mrb[0].mxu0
          %1372 = vdwg.mxu0
          %v1373 = vmul.f32 %v1311, 0.044715
          %v1374 = vmul.f32 %v1314, 0.044715
          %v1375 = vmul.f32 %v1319, 0.044715
          %v1376 = vmul.f32 %v1322, 0.044715
          %v1377 = vmul.f32 %v1327, 0.044715
          %v1378 = vmul.f32 %v1330, 0.044715
          %v1379 = vmul.f32 %v1335, 0.044715
          %v1380 = vmul.f32 %v1338, 0.044715
          %v1381 = vmul.f32 %v1343, 0.044715
          %v1382 = vmul.f32 %v1346, 0.044715
          %v1383 = vmul.f32 %v1351, 0.044715
          %v1384 = vmul.f32 %v1354, 0.044715
          %v1385 = vmul.f32 %v1359, 0.044715
          %v1386 = vmul.f32 %v1362, 0.044715
          %v1387 = vmul.f32 %v1367, 0.044715
          %v1388 = vmul.f32 %v1370, 0.044715
          %v1389 = vmul.f32 %v1373, %v1311
          %v1390 = vmul.f32 %v1374, %v1314
          %v1391 = vmul.f32 %v1375, %v1319
          %v1392 = vmul.f32 %v1376, %v1322
          %v1393 = vmul.f32 %v1377, %v1327
          %v1394 = vmul.f32 %v1378, %v1330
          %v1395 = vmul.f32 %v1379, %v1335
          %v1396 = vmul.f32 %v1380, %v1338
          %v1397 = vmul.f32 %v1381, %v1343
          %v1398 = vmul.f32 %v1382, %v1346
          %v1399 = vmul.f32 %v1383, %v1351
          %v1400 = vmul.f32 %v1384, %v1354
          %v1401 = vmul.f32 %v1385, %v1359
          %v1402 = vmul.f32 %v1386, %v1362
          %v1403 = vmul.f32 %v1387, %v1367
          %v1404 = vmul.f32 %v1388, %v1370
          %v1405 = vmul.f32 %v1389, %v1311
          %v1406 = vmul.f32 %v1390, %v1314
          %v1407 = vmul.f32 %v1391, %v1319
          %v1408 = vmul.f32 %v1392, %v1322
          %v1409 = vmul.f32 %v1393, %v1327
          %v1410 = vmul.f32 %v1394, %v1330
          %v1411 = vmul.f32 %v1395, %v1335
          %v1412 = vmul.f32 %v1396, %v1338
          %v1413 = vmul.f32 %v1397, %v1343
          %v1414 = vmul.f32 %v1398, %v1346
          %v1415 = vmul.f32 %v1399, %v1351
          %v1416 = vmul.f32 %v1400, %v1354
          %v1417 = vmul.f32 %v1401, %v1359
          %v1418 = vmul.f32 %v1402, %v1362
          %v1419 = vmul.f32 %v1403, %v1367
          %v1420 = vmul.f32 %v1404, %v1370
          %v1421 = vadd.f32 %v1311, %v1405
          %v1422 = vadd.f32 %v1314, %v1406
          %v1423 = vadd.f32 %v1319, %v1407
          %v1424 = vadd.f32 %v1322, %v1408
          %v1425 = vadd.f32 %v1327, %v1409
          %v1426 = vadd.f32 %v1330, %v1410
          %v1427 = vadd.f32 %v1335, %v1411
          %v1428 = vadd.f32 %v1338, %v1412
          %v1429 = vadd.f32 %v1343, %v1413
          %v1430 = vadd.f32 %v1346, %v1414
          %v1431 = vadd.f32 %v1351, %v1415
          %v1432 = vadd.f32 %v1354, %v1416
          %v1433 = vadd.f32 %v1359, %v1417
          %v1434 = vadd.f32 %v1362, %v1418
          %v1435 = vadd.f32 %v1367, %v1419
          %v1436 = vadd.f32 %v1370, %v1420
          %v1437 = vmul.f32 %v1421, 0.7978846
          %v1438 = vmul.f32 %v1422, 0.7978846
          %v1439 = vmul.f32 %v1423, 0.7978846
          %v1440 = vmul.f32 %v1424, 0.7978846
          %v1441 = vmul.f32 %v1425, 0.7978846
          %v1442 = vmul.f32 %v1426, 0.7978846
          %v1443 = vmul.f32 %v1427, 0.7978846
          %v1444 = vmul.f32 %v1428, 0.7978846
          %v1445 = vmul.f32 %v1429, 0.7978846
          %v1446 = vmul.f32 %v1430, 0.7978846
          %v1447 = vmul.f32 %v1431, 0.7978846
          %v1448 = vmul.f32 %v1432, 0.7978846
          %v1449 = vmul.f32 %v1433, 0.7978846
          %v1450 = vmul.f32 %v1434, 0.7978846
          %v1451 = vmul.f32 %v1435, 0.7978846
          %v1452 = vmul.f32 %v1436, 0.7978846
          %v1453 = vmul.f32 %v1311, 0.5
          %v1454 = vmul.f32 %v1314, 0.5
          %v1455 = vmul.f32 %v1319, 0.5
          %v1456 = vmul.f32 %v1322, 0.5
          %v1457 = vmul.f32 %v1327, 0.5
          %v1458 = vmul.f32 %v1330, 0.5
          %v1459 = vmul.f32 %v1335, 0.5
          %v1460 = vmul.f32 %v1338, 0.5
          %v1461 = vmul.f32 %v1343, 0.5
          %v1462 = vmul.f32 %v1346, 0.5
          %v1463 = vmul.f32 %v1351, 0.5
          %v1464 = vmul.f32 %v1354, 0.5
          %v1465 = vmul.f32 %v1359, 0.5
          %v1466 = vmul.f32 %v1362, 0.5
          %v1467 = vmul.f32 %v1367, 0.5
          %v1468 = vmul.f32 %v1370, 0.5
          %v1469 = vtanh.pop %v1437
          %v1470 = vtanh.pop %v1438
          %v1471 = vtanh.pop %v1439
          %v1472 = vtanh.pop %v1440
          %v1473 = vtanh.pop %v1441
          %v1474 = vtanh.pop %v1442
          %v1475 = vtanh.pop %v1443
          %v1476 = vtanh.pop %v1444
          %v1477 = vtanh.pop %v1445
          %v1478 = vtanh.pop %v1446
          %v1479 = vtanh.pop %v1447
          %v1480 = vtanh.pop %v1448
          %v1481 = vtanh.pop %v1449
          %v1482 = vtanh.pop %v1450
          %v1483 = vtanh.pop %v1451
          %v1484 = vtanh.pop %v1452
          %v1485 = vadd.f32 %v1469, 1.0
          %v1486 = vadd.f32 %v1470, 1.0
          %v1487 = vadd.f32 %v1471, 1.0
          %v1488 = vadd.f32 %v1472, 1.0
          %v1489 = vadd.f32 %v1473, 1.0
          %v1490 = vadd.f32 %v1474, 1.0
          %v1491 = vadd.f32 %v1475, 1.0
          %v1492 = vadd.f32 %v1476, 1.0
          %v1493 = vadd.f32 %v1477, 1.0
          %v1494 = vadd.f32 %v1478, 1.0
          %v1495 = vadd.f32 %v1479, 1.0
          %v1496 = vadd.f32 %v1480, 1.0
          %v1497 = vadd.f32 %v1481, 1.0
          %v1498 = vadd.f32 %v1482, 1.0
          %v1499 = vadd.f32 %v1483, 1.0
          %v1500 = vadd.f32 %v1484, 1.0
          %v1501 = vmul.f32 %v1453, %v1485
          %v1502 = vmul.f32 %v1454, %v1486
          %v1503 = vmul.f32 %v1455, %v1487
          %v1504 = vmul.f32 %v1456, %v1488
          %v1505 = vmul.f32 %v1457, %v1489
          %v1506 = vmul.f32 %v1458, %v1490
          %v1507 = vmul.f32 %v1459, %v1491
          %v1508 = vmul.f32 %v1460, %v1492
          %v1509 = vmul.f32 %v1461, %v1493
          %v1510 = vmul.f32 %v1462, %v1494
          %v1511 = vmul.f32 %v1463, %v1495
          %v1512 = vmul.f32 %v1464, %v1496
          %v1513 = vmul.f32 %v1465, %v1497
          %v1514 = vmul.f32 %v1466, %v1498
          %v1515 = vmul.f32 %v1467, %v1499
          %v1516 = vmul.f32 %v1468, %v1500
          %v1517 = vpack.c.bf16 %v1502, %v1501
          %v1518 = vpack.c.bf16 %v1504, %v1503
          %v1519 = vpack.c.bf16 %v1506, %v1505
          %v1520 = vpack.c.bf16 %v1508, %v1507
          %v1521 = vpack.c.bf16 %v1510, %v1509
          %v1522 = vpack.c.bf16 %v1512, %v1511
          %v1523 = vpack.c.bf16 %v1514, %v1513
          %v1524 = vpack.c.bf16 %v1516, %v1515
          %s1525 = smul.u32 %s477, 16
          %s1526 = smul.addr %s1525, 4
          %s1527 = scalar_lea.vmem %s8, %s1526
          %v1528 = vld [vmem:[%s1527] sm:$0xf]
          %v1529 = vld [vmem:[%s1527 + $0x4] sm:$0xf]
          %v1530 = vld [vmem:[%s1527 + $0x8] sm:$0xf]
          %v1531 = vld [vmem:[%s1527 + $0xc] sm:$0xf]
          %v1532 = vld [vmem:[%s1527 + $0x10] sm:$0xf]
          %v1533 = vld [vmem:[%s1527 + $0x14] sm:$0xf]
          %v1534 = vld [vmem:[%s1527 + $0x18] sm:$0xf]
          %v1535 = vld [vmem:[%s1527 + $0x1c] sm:$0xf]
          %v1536 = vld [vmem:[%s1527 + $0x20] sm:$0xf]
          %v1537 = vld [vmem:[%s1527 + $0x24] sm:$0xf]
          %v1538 = vld [vmem:[%s1527 + $0x28] sm:$0xf]
          %v1539 = vld [vmem:[%s1527 + $0x2c] sm:$0xf]
          %v1540 = vld [vmem:[%s1527 + $0x30] sm:$0xf]
          %v1541 = vld [vmem:[%s1527 + $0x34] sm:$0xf]
          %v1542 = vld [vmem:[%s1527 + $0x38] sm:$0xf]
          %v1543 = vld [vmem:[%s1527 + $0x3c] sm:$0xf]
          %s1544 = scalar_lea.vmem %s9, %s477
          %v1545 = vld [vmem:[%s1544] sm:$0x1]
          %v1547 = vlaneseq
          %v1548 = vshrl.u32 %v1547, 7
          %v1549 = vsub.s32 0, %v1548
          %v1550 = vrot.slane %v1545, %v1549
          %v1568 = vunpack.c.l.b16 %v1528
          %v1569 = vunpack.c.l.b16 %v1529
          %v1570 = vunpack.c.l.b16 %v1530
          %v1571 = vunpack.c.l.b16 %v1531
          %v1572 = vunpack.c.l.b16 %v1532
          %v1573 = vunpack.c.l.b16 %v1533
          %v1574 = vunpack.c.l.b16 %v1534
          %v1575 = vunpack.c.l.b16 %v1535
          %v1576 = vunpack.c.l.b16 %v1536
          %v1577 = vunpack.c.l.b16 %v1537
          %v1578 = vunpack.c.l.b16 %v1538
          %v1579 = vunpack.c.l.b16 %v1539
          %v1580 = vunpack.c.l.b16 %v1540
          %v1581 = vunpack.c.l.b16 %v1541
          %v1582 = vunpack.c.l.b16 %v1542
          %v1583 = vunpack.c.l.b16 %v1543
          %v1584 = vpack.c.b16 %v1569, %v1568
          %v1585 = vpack.c.b16 %v1571, %v1570
          %v1586 = vpack.c.b16 %v1573, %v1572
          %v1587 = vpack.c.b16 %v1575, %v1574
          %v1588 = vpack.c.b16 %v1577, %v1576
          %v1589 = vpack.c.b16 %v1579, %v1578
          %v1590 = vpack.c.b16 %v1581, %v1580
          %v1591 = vpack.c.b16 %v1583, %v1582
          %1600 = vmatprep.subr.bf16.mxu0 0
          %1601 = vmatpush1.bf16.msra.mxu0 %v1584
          %1602 = vmatprep.subr.bf16.mxu0 0
          %1603 = vmatpush1.bf16.msra.mxu0 %v1585
          %1604 = vmatprep.subr.bf16.mxu0 0
          %1605 = vmatpush1.bf16.msra.mxu0 %v1586
          %1606 = vmatprep.subr.bf16.mxu0 0
          %1607 = vmatpush1.bf16.msra.mxu0 %v1587
          %1608 = vmatprep.subr.bf16.mxu0 0
          %1609 = vmatpush1.bf16.msra.mxu0 %v1588
          %1610 = vmatprep.subr.bf16.mxu0 0
          %1611 = vmatpush1.bf16.msra.mxu0 %v1589
          %1612 = vmatprep.subr.bf16.mxu0 0
          %1613 = vmatpush1.bf16.msra.mxu0 %v1590
          %1614 = vmatprep.subr.bf16.mxu0 0
          %1615 = vmatpush1.bf16.msra.mxu0 %v1591
          %1616 = vmatprep.subr.bf16.mxu0 0
          %1617 = vmatpush1.bf16.msra.mxu0 0
          %1618 = vmatprep.subr.bf16.mxu0 0
          %1619 = vmatpush1.bf16.msra.mxu0 0
          %1620 = vmatprep.subr.bf16.mxu0 0
          %1621 = vmatpush1.bf16.msra.mxu0 0
          %1622 = vmatprep.subr.bf16.mxu0 0
          %1623 = vmatpush1.bf16.msra.mxu0 0
          %1624 = vmatprep.subr.bf16.mxu0 0
          %1625 = vmatpush1.bf16.msra.mxu0 0
          %1626 = vmatprep.subr.bf16.mxu0 0
          %1627 = vmatpush1.bf16.msra.mxu0 0
          %1628 = vmatprep.subr.bf16.mxu0 0
          %1629 = vmatpush1.bf16.msra.mxu0 0
          %1630 = vmatprep.subr.bf16.mxu0 0
          %1631 = vmatpush1.bf16.msra.mxu0 0
          %1632 = vmatprep.mubr.bf16.mxu0 0
          %1633 = vmatmul.mubr.bf16.gmra.mrb[0].mxu0 %v1517
          %v1634 = vpop.f32.mrb[0].mxu0
          %v1635 = vadd.f32 %v1550, %v1634
          %v1636 = vpop.f32.mrb[0].mxu0
          %v1637 = vpop.f32.mrb[0].mxu0
          %v1638 = vadd.f32 %v1550, %v1637
          %v1639 = vpop.f32.mrb[0].mxu0
          %1640 = vmatprep.mubr.bf16.mxu0 0
          %1641 = vmatmul.mubr.bf16.gmra.mrb[0].mxu0 %v1518
          %v1642 = vpop.f32.mrb[0].mxu0
          %v1643 = vadd.f32 %v1550, %v1642
          %v1644 = vpop.f32.mrb[0].mxu0
          %v1645 = vpop.f32.mrb[0].mxu0
          %v1646 = vadd.f32 %v1550, %v1645
          %v1647 = vpop.f32.mrb[0].mxu0
          %1648 = vmatprep.mubr.bf16.mxu0 0
          %1649 = vmatmul.mubr.bf16.gmra.mrb[0].mxu0 %v1519
          %v1650 = vpop.f32.mrb[0].mxu0
          %v1651 = vadd.f32 %v1550, %v1650
          %v1652 = vpop.f32.mrb[0].mxu0
          %v1653 = vpop.f32.mrb[0].mxu0
          %v1654 = vadd.f32 %v1550, %v1653
          %v1655 = vpop.f32.mrb[0].mxu0
          %1656 = vmatprep.mubr.bf16.mxu0 0
          %1657 = vmatmul.mubr.bf16.gmra.mrb[0].mxu0 %v1520
          %v1658 = vpop.f32.mrb[0].mxu0
          %v1659 = vadd.f32 %v1550, %v1658
          %v1660 = vpop.f32.mrb[0].mxu0
          %v1661 = vpop.f32.mrb[0].mxu0
          %v1662 = vadd.f32 %v1550, %v1661
          %v1663 = vpop.f32.mrb[0].mxu0
          %1664 = vmatprep.mubr.bf16.mxu0 0
          %1665 = vmatmul.mubr.bf16.gmra.mrb[0].mxu0 %v1521
          %v1666 = vpop.f32.mrb[0].mxu0
          %v1667 = vadd.f32 %v1550, %v1666
          %v1668 = vpop.f32.mrb[0].mxu0
          %v1669 = vpop.f32.mrb[0].mxu0
          %v1670 = vadd.f32 %v1550, %v1669
          %v1671 = vpop.f32.mrb[0].mxu0
          %1672 = vmatprep.mubr.bf16.mxu0 0
          %1673 = vmatmul.mubr.bf16.gmra.mrb[0].mxu0 %v1522
          %v1674 = vpop.f32.mrb[0].mxu0
          %v1675 = vadd.f32 %v1550, %v1674
          %v1676 = vpop.f32.mrb[0].mxu0
          %v1677 = vpop.f32.mrb[0].mxu0
          %v1678 = vadd.f32 %v1550, %v1677
          %v1679 = vpop.f32.mrb[0].mxu0
          %1680 = vmatprep.mubr.bf16.mxu0 0
          %1681 = vmatmul.mubr.bf16.gmra.mrb[0].mxu0 %v1523
          %v1682 = vpop.f32.mrb[0].mxu0
          %v1683 = vadd.f32 %v1550, %v1682
          %v1684 = vpop.f32.mrb[0].mxu0
          %v1685 = vpop.f32.mrb[0].mxu0
          %v1686 = vadd.f32 %v1550, %v1685
          %v1687 = vpop.f32.mrb[0].mxu0
          %1688 = vmatprep.mubr.bf16.mxu0 0
          %1689 = vmatmul.mubr.bf16.gmra.mrb[0].mxu0 %v1524
          %v1690 = vpop.f32.mrb[0].mxu0
          %v1691 = vadd.f32 %v1550, %v1690
          %v1692 = vpop.f32.mrb[0].mxu0
          %v1693 = vpop.f32.mrb[0].mxu0
          %v1694 = vadd.f32 %v1550, %v1693
          %v1695 = vpop.f32.mrb[0].mxu0
          %1696 = vdwg.mxu0
          %v1697 = vadd.f32 %v482, %v1635
          %v1698 = vadd.f32 %v483, %v1638
          %v1699 = vadd.f32 %v484, %v1643
          %v1700 = vadd.f32 %v485, %v1646
          %v1701 = vadd.f32 %v486, %v1651
          %v1702 = vadd.f32 %v487, %v1654
          %v1703 = vadd.f32 %v488, %v1659
          %v1704 = vadd.f32 %v489, %v1662
          %v1705 = vadd.f32 %v490, %v1667
          %v1706 = vadd.f32 %v491, %v1670
          %v1707 = vadd.f32 %v492, %v1675
          %v1708 = vadd.f32 %v493, %v1678
          %v1709 = vadd.f32 %v494, %v1683
          %v1710 = vadd.f32 %v495, %v1686
          %v1711 = vadd.f32 %v496, %v1691
          %v1712 = vadd.f32 %v497, %v1694
          %v1713 = vmul.f32 %v1697, %v444
          %v1714 = vmul.f32 %v1698, %v445
          %v1715 = vmul.f32 %v1699, %v446
          %v1716 = vmul.f32 %v1700, %v447
          %v1717 = vmul.f32 %v1701, %v448
          %v1718 = vmul.f32 %v1702, %v449
          %v1719 = vmul.f32 %v1703, %v450
          %v1720 = vmul.f32 %v1704, %v451
          %v1721 = vmul.f32 %v1705, %v452
          %v1722 = vmul.f32 %v1706, %v453
          %v1723 = vmul.f32 %v1707, %v454
          %v1724 = vmul.f32 %v1708, %v455
          %v1725 = vmul.f32 %v1709, %v456
          %v1726 = vmul.f32 %v1710, %v457
          %v1727 = vmul.f32 %v1711, %v458
          %v1728 = vmul.f32 %v1712, %v459
        $region69: #{tpu_custom_call.1} parent=63 // loop_footer
          %s481 = sadd.s32 1, %s477
        $region70: #{tpu_custom_call.1} parent=63 // loop_footer_branch
          %476 = sbr.rel target = $region66
        $region71: #{tpu_custom_call.1} parent=63 // loop_exit
          _
        %v1729 = vld [vmem:[%s10] sm:$0xf]
        %v1730 = vpack.c.bf16 %v483, %v482
        %v1731 = vpack.c.bf16 %v485, %v484
        %v1732 = vpack.c.bf16 %v487, %v486
        %v1733 = vpack.c.bf16 %v489, %v488
        %v1734 = vpack.c.bf16 %v491, %v490
        %v1735 = vpack.c.bf16 %v493, %v492
        %v1736 = vpack.c.bf16 %v495, %v494
        %v1737 = vpack.c.bf16 %v497, %v496
        %v1738 = vld [vmem:[%s11] sm:$0xff]
        %1740 = vset.pattern.permute.xlu0 0
        %1741 = vperm.xlu0 %1740, %v1738
        %v1742 = vpop.permute.xlu0 %1741
        %vm1744 = vcmask 261120
        %v1746 = vsel %vm1744, %v1729, 0
        %v1749 = vsel %vm1744, %v1730, 0
        %v1752 = vsel %vm1744, %v1731, 0
        %v1755 = vsel %vm1744, %v1732, 0
        %v1758 = vsel %vm1744, %v1733, 0
        %v1761 = vsel %vm1744, %v1734, 0
        %v1764 = vsel %vm1744, %v1735, 0
        %v1767 = vsel %vm1744, %v1736, 0
        %v1770 = vsel %vm1744, %v1737, 0
        %1772 = vmatprep.subr.bf16.mxu0 0
        %1773 = vmatpush1.bf16.xpose.msra.mxu0 %v1749
        %1774 = vmatprep.subr.bf16.mxu0 0
        %1775 = vmatpush1.bf16.xpose.msra.mxu0 %v1752
        %1776 = vmatprep.subr.bf16.mxu0 0
        %1777 = vmatpush1.bf16.xpose.msra.mxu0 %v1755
        %1778 = vmatprep.subr.bf16.mxu0 0
        %1779 = vmatpush1.bf16.xpose.msra.mxu0 %v1758
        %1780 = vmatprep.subr.bf16.mxu0 0
        %1781 = vmatpush1.bf16.xpose.msra.mxu0 %v1761
        %1782 = vmatprep.subr.bf16.mxu0 0
        %1783 = vmatpush1.bf16.xpose.msra.mxu0 %v1764
        %1784 = vmatprep.subr.bf16.mxu0 0
        %1785 = vmatpush1.bf16.xpose.msra.mxu0 %v1767
        %1786 = vmatprep.subr.bf16.mxu0 0
        %1787 = vmatpush1.bf16.xpose.msra.mxu0 %v1770
        %1788 = vmatprep.subr.bf16.mxu0 0
        %1789 = vmatpush1.bf16.xpose.msra.mxu0 0
        %1790 = vmatprep.subr.bf16.mxu0 0
        %1791 = vmatpush1.bf16.xpose.msra.mxu0 0
        %1792 = vmatprep.subr.bf16.mxu0 0
        %1793 = vmatpush1.bf16.xpose.msra.mxu0 0
        %1794 = vmatprep.subr.bf16.mxu0 0
        %1795 = vmatpush1.bf16.xpose.msra.mxu0 0
        %1796 = vmatprep.subr.bf16.mxu0 0
        %1797 = vmatpush1.bf16.xpose.msra.mxu0 0
        %1798 = vmatprep.subr.bf16.mxu0 0
        %1799 = vmatpush1.bf16.xpose.msra.mxu0 0
        %1800 = vmatprep.subr.bf16.mxu0 0
        %1801 = vmatpush1.bf16.xpose.msra.mxu0 0
        %1802 = vmatprep.subr.bf16.mxu0 0
        %1803 = vmatpush1.bf16.xpose.msra.mxu0 0
        %1804 = vmatprep.mubr.bf16.mxu0 0
        %1805 = vmatmul.mubr.bf16.gmra.mrb[0].mxu0 %v1746
        %v1806 = vpop.f32.mrb[0].mxu0
        %v1807 = vadd.f32 %v1742, %v1806
        %v1808 = vpop.f32.mrb[0].mxu0
        %v1809 = vpop.f32.mrb[0].mxu0
        %v1810 = vpop.f32.mrb[0].mxu0
        %1811 = vdwg.mxu0
        %1812 = vst [vmem:[%s386] sm:$0xff] %v1807
        %s1813 = sand.u32 %s276, 1
        %s1814 = scalar_lea.sflag [#allocation5], %s1813
        %s1815 = sand.u32 %s276, 1
        %s1816 = smul.addr %s1815, 8
        %s1817 = scalar_lea.vmem [#allocation4], %s1816
        // Predicated region
        $region72: #{tpu_custom_call.1} parent=63 // pred_check
          %p1818 = pneg %p286
        $region73: #{tpu_custom_call.1} parent=63 // pred_check_branch
          %1820 = sbr.rel (%p1818) target = $region75
        $region74: #{tpu_custom_call.1} parent=63 // pred_region
          %s1822 = ssub.s32 128, 128
          %1823 = vsyncadd %s1814, %s1822
          %s1824 = smul.addr %s32, 128
          %s1825 = scalar_lea.hbm %s12, %s1824
          %s1827 = sshll.u32 %s1817, 4
          %s1828 = int_to_ptr.vmem [resolvable:$true] %s1827
          %1830 = dma.vmem_to_hbm [thread:$0]  %s1828, 128, %s1825, %s1814
        $region75: #{tpu_custom_call.1} parent=63 // pred_fallthru
          _
      $region64: #{tpu_custom_call.1} parent=5 // pred_fallthru
        _
      %p1831 = scmp.le.s32.totalorder 2, %s27
      // Predicated region
      $region76: #{tpu_custom_call.1} parent=5 // pred_check
        %p1832 = pneg %p1831
      $region77: #{tpu_custom_call.1} parent=5 // pred_check_branch
        %1834 = sbr.rel (%p1832) target = $region79
      $region78: #{tpu_custom_call.1} parent=5 // pred_region
        %s1835 = ssub.s32 %s27, 2
        // Predicated region
        $region80: #{tpu_custom_call.1} parent=78 // pred_check
          %p1836 = pneg %p292
        $region81: #{tpu_custom_call.1} parent=78 // pred_check_branch
          %1838 = sbr.rel (%p1836) target = $region83
        $region82: #{tpu_custom_call.1} parent=78 // pred_region
          %s1839 = sand.u32 %s277, 1
          %s1840 = scalar_lea.sflag [#allocation5], %s1839
          %s1841 = sand.u32 %s277, 1
          %s1842 = smul.addr %s1841, 8
          %s1843 = scalar_lea.vmem [#allocation4], %s1842
          %1844 = dma.done %s1840, 128
        $region83: #{tpu_custom_call.1} parent=78 // pred_fallthru
          _
      $region79: #{tpu_custom_call.1} parent=5 // pred_fallthru
        _
    $region6: #{tpu_custom_call.1} parent=1 // loop_footer
      %s31 = sadd.s32 1, %s27
    $region7: #{tpu_custom_call.1} parent=1 // loop_footer_branch
      %26 = sbr.rel target = $region3
    $region8: #{tpu_custom_call.1} parent=1 // loop_exit
      _
    %1845 = vsyncpa [#allocation5], 1
    %s1846 = scalar_lea.sflag [#allocation5], 1
    %1847 = vsyncpa %s1846, 1

</llo_original>
